<compile_context>
chip_gen: v7x
topology: tpu7x:2x2x1
jax: 0.10.0
libtpu: 0.0.40
codegen_flags: <defaults>
</compile_context>

<pallas_src>
import functools
import math

import jax
import jax.numpy as jnp
import numpy as np
from jax.experimental import pallas as pl
from jax.experimental.pallas import tpu as pltpu


# ---------------------------------------------------------------------------
# Fused Pallas kernel: both Channel_GCN branches for one batch element
# ---------------------------------------------------------------------------
def _fused_xyzr_kernel(*args, num_stage, N, C_x, C_r, n_params, swap_first):
    """args = (x_ref, r_ref, *xyz_weight_refs, *r_weight_refs, x_out_ref, r_out_ref).

    Per-branch weight layout (all 2-D, VMEM-resident for the whole forward):
      [w, att, scale, shift]                 for gc1 (+ BN1, gc bias folded in shift)
      num_stage * 2 * [w, att, scale, shift] for the residual blocks
      [w1, b1, w2, b2]                        for gc_out (Linear/ReLU/Linear)
    """
    x_ref, r_ref = args[0], args[1]
    xo_ref, ro_ref = args[-2], args[-1]
    wrefs = args[2:-2]
    xyz_refs = wrefs[:n_params]
    r_refs = wrefs[n_params:]

    def gc_bn_tanh(y, w, att, scale, shift, reorder):
        # GraphConvolution (bias folded into `shift`) + eval-BN affine + tanh.
        if reorder:   # (att @ y) @ W — cheaper when Fin < Fout (first layer)
            out = jnp.dot(jnp.dot(att, y, preferred_element_type=jnp.float32),
                          w, preferred_element_type=jnp.float32)
        else:         # att @ (y @ W) — spec order
            out = jnp.dot(att, jnp.dot(y, w, preferred_element_type=jnp.float32),
                          preferred_element_type=jnp.float32)
        return jnp.tanh(out * scale + shift)

    def run_branch(y, refs, out_ref, normalize, C):
        pos = 0

        def take(n):
            nonlocal pos
            vals = tuple(refs[pos + i][...] for i in range(n))
            pos += n
            return vals

        # gc1 + bn1 + tanh
        y = gc_bn_tanh(y, *take(4), reorder=swap_first)

        # residual GC blocks, fully unrolled (num_stage is a trace-time constant)
        for _ in range(num_stage):
            y_in = y
            y = gc_bn_tanh(y, *take(4), reorder=False)
            y = gc_bn_tanh(y, *take(4), reorder=False)
            y = y + y_in                  # fused residual add (free VPU filler)

        # gc_out: Linear -> ReLU -> Linear
        w1, b1, w2, b2 = take(4)
        h = jnp.maximum(jnp.dot(y, w1, preferred_element_type=jnp.float32) + b1, 0.0)
        y = jnp.dot(h, w2, preferred_element_type=jnp.float32) + b2

        if normalize:
            # F.normalize(dim=channel): rows are channel-major (c*N + n); reduce
            # the C channel slices, then write everything back with one store.
            parts = [y[c * N:(c + 1) * N, :] for c in range(C)]
            ssq = parts[0] * parts[0]
            for p in parts[1:]:
                ssq = ssq + p * p
            inv = 1.0 / jnp.maximum(jnp.sqrt(ssq), 1e-12)
            out_ref[...] = jnp.concatenate([p * inv for p in parts], axis=0)
        else:
            out_ref[...] = y

    run_branch(x_ref[...], xyz_refs, xo_ref, normalize=False, C=C_x)
    run_branch(r_ref[...], r_refs, ro_ref, normalize=True, C=C_r)


# ---------------------------------------------------------------------------
# Wrapper: single pallas_call for the whole GCN_xyzr forward
# ---------------------------------------------------------------------------
@functools.partial(jax.jit, static_argnames=("out_f", "num_stage"))
def gcn_xyzr_forward(flat_xyz, flat_r, x, r, *, out_f, num_stage):
    """x:(B,3,node_n,Fin), r:(B,4,node_n,Fin) -> ((B,3,node_n,out_f), (B,4,node_n,out_f))."""
    B, C_x, N, Fin = x.shape
    _, C_r, N_r, _ = r.shape
    assert N_r == N
    node_x, node_r = C_x * N, C_r * N
    hid = flat_xyz[0].shape[1]

    xr = x.reshape(B, node_x, Fin)
    rr = r.reshape(B, node_r, Fin)
    n_params = len(flat_xyz)

    kernel = functools.partial(
        _fused_xyzr_kernel, num_stage=num_stage, N=N, C_x=C_x, C_r=C_r,
        n_params=n_params, swap_first=Fin < hid)

    in_specs = [pl.BlockSpec((None, node_x, Fin), lambda b: (b, 0, 0)),
                pl.BlockSpec((None, node_r, Fin), lambda b: (b, 0, 0))]
    # Weights/affines are batch-invariant: constant block index -> fetched once
    # and kept resident in VMEM across the whole batch grid.
    in_specs += [pl.BlockSpec(p.shape, lambda b: (0, 0)) for p in flat_xyz]
    in_specs += [pl.BlockSpec(p.shape, lambda b: (0, 0)) for p in flat_r]

    out_shape = (jax.ShapeDtypeStruct((B, node_x, out_f), jnp.float32),
                 jax.ShapeDtypeStruct((B, node_r, out_f), jnp.float32))
    out_specs = (pl.BlockSpec((None, node_x, out_f), lambda b: (b, 0, 0)),
                 pl.BlockSpec((None, node_r, out_f), lambda b: (b, 0, 0)))

    x_out, r_out = pl.pallas_call(
        kernel,
        out_shape=out_shape,
        grid=(B,),
        in_specs=in_specs,
        out_specs=out_specs,
        compiler_params=pltpu.CompilerParams(dimension_semantics=("parallel",)),
    )(xr, rr, *flat_xyz, *flat_r)

    return x_out.reshape(B, C_x, N, out_f), r_out.reshape(B, C_r, N, out_f)


# ---------------------------------------------------------------------------
# Parameter init (deterministic, PyTorch-style ranges) + host-side folding
# ---------------------------------------------------------------------------
def init_gc(key, fin, fout, node):
    stdv = 1.0 / math.sqrt(fout)
    k1, k2, k3 = jax.random.split(key, 3)
    return dict(
        w=jax.random.uniform(k1, (fin, fout), jnp.float32, -stdv, stdv),
        att=jax.random.uniform(k2, (node, node), jnp.float32, -stdv, stdv),
        b=jax.random.uniform(k3, (fout,), jnp.float32, -stdv, stdv),
    )


def init_bn(node, feat, eps=1e-5):
    # Fresh BatchNorm1d(node*feat), eval mode: gamma=1, beta=0, mean=0, var=1.
    gamma = jnp.ones((node, feat), jnp.float32)
    beta = jnp.zeros((node, feat), jnp.float32)
    mean = jnp.zeros((node, feat), jnp.float32)
    var = jnp.ones((node, feat), jnp.float32)
    scale = gamma / jnp.sqrt(var + eps)
    shift = beta - mean * scale
    return scale, shift


def init_linear(key, fin, fout):
    bound = 1.0 / math.sqrt(fin)
    k1, k2 = jax.random.split(key)
    # stored pre-transposed as (in, out) so the kernel does x @ W
    w = jax.random.uniform(k1, (fin, fout), jnp.float32, -bound, bound)
    b = jax.random.uniform(k2, (fout,), jnp.float32, -bound, bound)
    return w, b


def init_channel_gcn(key, fin, hid, fout, node_n, channel, num_stage):
    node = node_n * channel
    keys = jax.random.split(key, 3 + 2 * num_stage)
    params = {'gc1': init_gc(keys[0], fin, hid, node),
              'bn1': init_bn(node, hid),
              'blocks': []}
    for i in range(num_stage):
        params['blocks'].append(dict(
            gc1=init_gc(keys[1 + 2 * i], hid, hid, node),
            bn1=init_bn(node, hid),
            gc2=init_gc(keys[2 + 2 * i], hid, hid, node),
            bn2=init_bn(node, hid),
        ))
    w1, b1 = init_linear(keys[-2], hid, hid)
    w2, b2 = init_linear(keys[-1], hid, fout)
    params['out'] = (w1, b1, w2, b2)
    return params


def fuse_params(params):
    """Flatten layer params for the fused kernel; fold the gc bias into the BN shift
    (eval mode):  (att@support + b)*scale + shift == (att@support)*scale + (shift + scale*b)."""
    flat = []

    def gc_bn(gc, bn):
        scale, shift = bn
        flat.extend([gc['w'], gc['att'], scale, shift + scale * gc['b'][None, :]])

    gc_bn(params['gc1'], params['bn1'])
    for blk in params['blocks']:
        gc_bn(blk['gc1'], blk['bn1'])
        gc_bn(blk['gc2'], blk['bn2'])
    w1, b1, w2, b2 = params['out']
    flat.extend([w1, b1.reshape(1, -1), w2, b2.reshape(1, -1)])
    return flat


# ---------------------------------------------------------------------------
# Pure-JAX reference (module-spec ordering, for correctness check)
# ---------------------------------------------------------------------------
def _ref_gc(x, w, att, b):
    return jnp.einsum('nm,bmf->bnf', att, x @ w) + b


def _ref_channel_gcn(params, x, out_f):
    B, C, N, Fin = x.shape
    y = x.reshape(B, C * N, Fin)
    p = params

    def bn_tanh(v, scale, shift):
        return jnp.tanh(v * scale[None] + shift[None])

    y = bn_tanh(_ref_gc(y, p['gc1']['w'], p['gc1']['att'], p['gc1']['b']), *p['bn1'])
    for blk in p['blocks']:
        yi = y
        y = bn_tanh(_ref_gc(y, blk['gc1']['w'], blk['gc1']['att'], blk['gc1']['b']),
                    *blk['bn1'])
        y = bn_tanh(_ref_gc(y, blk['gc2']['w'], blk['gc2']['att'], blk['gc2']['b']),
                    *blk['bn2'])
        y = y + yi
    w1, b1, w2, b2 = p['out']
    y = jnp.maximum(y @ w1 + b1, 0.0) @ w2 + b2
    return y.reshape(B, C, N, out_f)


def _ref_forward(params_xyz, params_r, x, r, out_f):
    x_out = _ref_channel_gcn(params_xyz, x, out_f)
    r_out = _ref_channel_gcn(params_r, r, out_f)
    norm = jnp.sqrt(jnp.sum(r_out * r_out, axis=1, keepdims=True))
    r_out = r_out / jnp.maximum(norm, 1e-12)
    return x_out, r_out


# ---------------------------------------------------------------------------
if __name__ == "__main__":
    # small shapes consistent with the module
    B, node_n = 2, 8
    input_feature, hidden_feature, output_feature = 10, 32, 10
    num_stage = 1

    key = jax.random.PRNGKey(0)
    k_xyz, k_r, k_x, k_rr = jax.random.split(key, 4)

    params_xyz = init_channel_gcn(k_xyz, input_feature, hidden_feature,
                                  output_feature, node_n, 3, num_stage)
    params_r = init_channel_gcn(k_r, input_feature, hidden_feature,
                                output_feature, node_n, 4, num_stage)
    flat_xyz = fuse_params(params_xyz)
    flat_r = fuse_params(params_r)

    x = jax.random.normal(k_x, (B, 3, node_n, input_feature), jnp.float32)
    r = jax.random.normal(k_rr, (B, 4, node_n, input_feature), jnp.float32)

    x_out, r_out = gcn_xyzr_forward(flat_xyz, flat_r, x, r,
                                    out_f=output_feature, num_stage=num_stage)
    jax.block_until_ready((x_out, r_out))

    x_ref, r_ref = _ref_forward(params_xyz, params_r, x, r, output_feature)
    # Tolerance accounts for the (mathematically identical) first-layer matmul
    # reassociation, the bias->shift fold and the reciprocal-based normalize
    # (a few f32 ulps).
    np.testing.assert_allclose(np.asarray(x_out), np.asarray(x_ref),
                               rtol=2e-5, atol=2e-5)
    np.testing.assert_allclose(np.asarray(r_out), np.asarray(r_ref),
                               rtol=2e-5, atol=2e-5)

    # TODO(synk): training-mode BatchNorm (batch statistics + running-stat updates)
    # and Dropout sampling are not implemented; eval semantics are used.
    print("KERNEL_OK")
</pallas_src>

<mosaic_0001>
module attributes {stable_mosaic.version = 11 : i64} {
  func.func @_fused_xyzr_kernel(%arg0: i32, %arg1: memref<1x24x10xf32, #tpu.memory_space<vmem>>, %arg2: memref<1x32x10xf32, #tpu.memory_space<vmem>>, %arg3: memref<10x32xf32, #tpu.memory_space<vmem>>, %arg4: memref<24x24xf32, #tpu.memory_space<vmem>>, %arg5: memref<24x32xf32, #tpu.memory_space<vmem>>, %arg6: memref<24x32xf32, #tpu.memory_space<vmem>>, %arg7: memref<32x32xf32, #tpu.memory_space<vmem>>, %arg8: memref<24x24xf32, #tpu.memory_space<vmem>>, %arg9: memref<24x32xf32, #tpu.memory_space<vmem>>, %arg10: memref<24x32xf32, #tpu.memory_space<vmem>>, %arg11: memref<32x32xf32, #tpu.memory_space<vmem>>, %arg12: memref<24x24xf32, #tpu.memory_space<vmem>>, %arg13: memref<24x32xf32, #tpu.memory_space<vmem>>, %arg14: memref<24x32xf32, #tpu.memory_space<vmem>>, %arg15: memref<32x32xf32, #tpu.memory_space<vmem>>, %arg16: memref<1x32xf32, #tpu.memory_space<vmem>>, %arg17: memref<32x10xf32, #tpu.memory_space<vmem>>, %arg18: memref<1x10xf32, #tpu.memory_space<vmem>>, %arg19: memref<10x32xf32, #tpu.memory_space<vmem>>, %arg20: memref<32x32xf32, #tpu.memory_space<vmem>>, %arg21: memref<32x32xf32, #tpu.memory_space<vmem>>, %arg22: memref<32x32xf32, #tpu.memory_space<vmem>>, %arg23: memref<32x32xf32, #tpu.memory_space<vmem>>, %arg24: memref<32x32xf32, #tpu.memory_space<vmem>>, %arg25: memref<32x32xf32, #tpu.memory_space<vmem>>, %arg26: memref<32x32xf32, #tpu.memory_space<vmem>>, %arg27: memref<32x32xf32, #tpu.memory_space<vmem>>, %arg28: memref<32x32xf32, #tpu.memory_space<vmem>>, %arg29: memref<32x32xf32, #tpu.memory_space<vmem>>, %arg30: memref<32x32xf32, #tpu.memory_space<vmem>>, %arg31: memref<32x32xf32, #tpu.memory_space<vmem>>, %arg32: memref<1x32xf32, #tpu.memory_space<vmem>>, %arg33: memref<32x10xf32, #tpu.memory_space<vmem>>, %arg34: memref<1x10xf32, #tpu.memory_space<vmem>>, %arg35: memref<1x24x10xf32, #tpu.memory_space<vmem>>, %arg36: memref<1x32x10xf32, #tpu.memory_space<vmem>>) attributes {dimension_semantics = [#tpu.dimension_semantics<parallel>], iteration_bounds = array<i64: 2>, scalar_prefetch = 0 : i64, scratch_operands = 0 : i64, tpu.core_type = #tpu.core_type<tc>, window_params = [{transform_indices = @transform_0, window_bounds = array<i64: 1, 24, 10>}, {transform_indices = @transform_1, window_bounds = array<i64: 1, 32, 10>}, {pipeline_mode = #tpu.pipeline_mode<synchronous>, transform_indices = @transform_2, window_bounds = array<i64: 10, 32>}, {pipeline_mode = #tpu.pipeline_mode<synchronous>, transform_indices = @transform_3, window_bounds = array<i64: 24, 24>}, {pipeline_mode = #tpu.pipeline_mode<synchronous>, transform_indices = @transform_4, window_bounds = array<i64: 24, 32>}, {pipeline_mode = #tpu.pipeline_mode<synchronous>, transform_indices = @transform_5, window_bounds = array<i64: 24, 32>}, {pipeline_mode = #tpu.pipeline_mode<synchronous>, transform_indices = @transform_6, window_bounds = array<i64: 32, 32>}, {pipeline_mode = #tpu.pipeline_mode<synchronous>, transform_indices = @transform_7, window_bounds = array<i64: 24, 24>}, {pipeline_mode = #tpu.pipeline_mode<synchronous>, transform_indices = @transform_8, window_bounds = array<i64: 24, 32>}, {pipeline_mode = #tpu.pipeline_mode<synchronous>, transform_indices = @transform_9, window_bounds = array<i64: 24, 32>}, {pipeline_mode = #tpu.pipeline_mode<synchronous>, transform_indices = @transform_10, window_bounds = array<i64: 32, 32>}, {pipeline_mode = #tpu.pipeline_mode<synchronous>, transform_indices = @transform_11, window_bounds = array<i64: 24, 24>}, {pipeline_mode = #tpu.pipeline_mode<synchronous>, transform_indices = @transform_12, window_bounds = array<i64: 24, 32>}, {pipeline_mode = #tpu.pipeline_mode<synchronous>, transform_indices = @transform_13, window_bounds = array<i64: 24, 32>}, {pipeline_mode = #tpu.pipeline_mode<synchronous>, transform_indices = @transform_14, window_bounds = array<i64: 32, 32>}, {pipeline_mode = #tpu.pipeline_mode<synchronous>, transform_indices = @transform_15, window_bounds = array<i64: 1, 32>}, {pipeline_mode = #tpu.pipeline_mode<synchronous>, transform_indices = @transform_16, window_bounds = array<i64: 32, 10>}, {pipeline_mode = #tpu.pipeline_mode<synchronous>, transform_indices = @transform_17, window_bounds = array<i64: 1, 10>}, {pipeline_mode = #tpu.pipeline_mode<synchronous>, transform_indices = @transform_18, window_bounds = array<i64: 10, 32>}, {pipeline_mode = #tpu.pipeline_mode<synchronous>, transform_indices = @transform_19, window_bounds = array<i64: 32, 32>}, {pipeline_mode = #tpu.pipeline_mode<synchronous>, transform_indices = @transform_20, window_bounds = array<i64: 32, 32>}, {pipeline_mode = #tpu.pipeline_mode<synchronous>, transform_indices = @transform_21, window_bounds = array<i64: 32, 32>}, {pipeline_mode = #tpu.pipeline_mode<synchronous>, transform_indices = @transform_22, window_bounds = array<i64: 32, 32>}, {pipeline_mode = #tpu.pipeline_mode<synchronous>, transform_indices = @transform_23, window_bounds = array<i64: 32, 32>}, {pipeline_mode = #tpu.pipeline_mode<synchronous>, transform_indices = @transform_24, window_bounds = array<i64: 32, 32>}, {pipeline_mode = #tpu.pipeline_mode<synchronous>, transform_indices = @transform_25, window_bounds = array<i64: 32, 32>}, {pipeline_mode = #tpu.pipeline_mode<synchronous>, transform_indices = @transform_26, window_bounds = array<i64: 32, 32>}, {pipeline_mode = #tpu.pipeline_mode<synchronous>, transform_indices = @transform_27, window_bounds = array<i64: 32, 32>}, {pipeline_mode = #tpu.pipeline_mode<synchronous>, transform_indices = @transform_28, window_bounds = array<i64: 32, 32>}, {pipeline_mode = #tpu.pipeline_mode<synchronous>, transform_indices = @transform_29, window_bounds = array<i64: 32, 32>}, {pipeline_mode = #tpu.pipeline_mode<synchronous>, transform_indices = @transform_30, window_bounds = array<i64: 32, 32>}, {pipeline_mode = #tpu.pipeline_mode<synchronous>, transform_indices = @transform_31, window_bounds = array<i64: 1, 32>}, {pipeline_mode = #tpu.pipeline_mode<synchronous>, transform_indices = @transform_32, window_bounds = array<i64: 32, 10>}, {pipeline_mode = #tpu.pipeline_mode<synchronous>, transform_indices = @transform_33, window_bounds = array<i64: 1, 10>}, {transform_indices = @transform_34, window_bounds = array<i64: 1, 24, 10>}, {transform_indices = @transform_35, window_bounds = array<i64: 1, 32, 10>}]} {
    %c0 = arith.constant 0 : index
    %c0_0 = arith.constant 0 : index
    %c0_1 = arith.constant 0 : index
    %0 = vector.load %arg1[%c0, %c0_0, %c0_1] : memref<1x24x10xf32, #tpu.memory_space<vmem>>, vector<1x24x10xf32>
    %1 = vector.shape_cast %0 : vector<1x24x10xf32> to vector<24x10xf32>
    %c0_2 = arith.constant 0 : index
    %c0_3 = arith.constant 0 : index
    %2 = vector.load %arg3[%c0_2, %c0_3] : memref<10x32xf32, #tpu.memory_space<vmem>>, vector<10x32xf32>
    %c0_4 = arith.constant 0 : index
    %c0_5 = arith.constant 0 : index
    %3 = vector.load %arg4[%c0_4, %c0_5] : memref<24x24xf32, #tpu.memory_space<vmem>>, vector<24x24xf32>
    %c0_6 = arith.constant 0 : index
    %c0_7 = arith.constant 0 : index
    %4 = vector.load %arg5[%c0_6, %c0_7] : memref<24x32xf32, #tpu.memory_space<vmem>>, vector<24x32xf32>
    %c0_8 = arith.constant 0 : index
    %c0_9 = arith.constant 0 : index
    %5 = vector.load %arg6[%c0_8, %c0_9] : memref<24x32xf32, #tpu.memory_space<vmem>>, vector<24x32xf32>
    %cst = arith.constant dense<0.000000e+00> : vector<24x10xf32>
    %6 = tpu.matmul %3, %1, %cst {dimension_numbers = #tpu.dot_dimension_numbers<[1], [0], [0], [1], [0, 0, 1, 1], [], []>} : vector<24x24xf32>, vector<24x10xf32>, vector<24x10xf32> -> vector<24x10xf32>
    %cst_10 = arith.constant dense<0.000000e+00> : vector<24x32xf32>
    %7 = tpu.matmul %6, %2, %cst_10 {dimension_numbers = #tpu.dot_dimension_numbers<[1], [0], [0], [1], [0, 0, 1, 1], [], []>} : vector<24x10xf32>, vector<10x32xf32>, vector<24x32xf32> -> vector<24x32xf32>
    %8 = arith.mulf %7, %4 : vector<24x32xf32>
    %9 = arith.addf %8, %5 : vector<24x32xf32>
    %10 = math.tanh %9 : vector<24x32xf32>
    %c0_11 = arith.constant 0 : index
    %c0_12 = arith.constant 0 : index
    %11 = vector.load %arg7[%c0_11, %c0_12] : memref<32x32xf32, #tpu.memory_space<vmem>>, vector<32x32xf32>
    %c0_13 = arith.constant 0 : index
    %c0_14 = arith.constant 0 : index
    %12 = vector.load %arg8[%c0_13, %c0_14] : memref<24x24xf32, #tpu.memory_space<vmem>>, vector<24x24xf32>
    %c0_15 = arith.constant 0 : index
    %c0_16 = arith.constant 0 : index
    %13 = vector.load %arg9[%c0_15, %c0_16] : memref<24x32xf32, #tpu.memory_space<vmem>>, vector<24x32xf32>
    %c0_17 = arith.constant 0 : index
    %c0_18 = arith.constant 0 : index
    %14 = vector.load %arg10[%c0_17, %c0_18] : memref<24x32xf32, #tpu.memory_space<vmem>>, vector<24x32xf32>
    %cst_19 = arith.constant dense<0.000000e+00> : vector<24x32xf32>
    %15 = tpu.matmul %10, %11, %cst_19 {dimension_numbers = #tpu.dot_dimension_numbers<[1], [0], [0], [1], [0, 0, 1, 1], [], []>} : vector<24x32xf32>, vector<32x32xf32>, vector<24x32xf32> -> vector<24x32xf32>
    %cst_20 = arith.constant dense<0.000000e+00> : vector<24x32xf32>
    %16 = tpu.matmul %12, %15, %cst_20 {dimension_numbers = #tpu.dot_dimension_numbers<[1], [0], [0], [1], [0, 0, 1, 1], [], []>} : vector<24x24xf32>, vector<24x32xf32>, vector<24x32xf32> -> vector<24x32xf32>
    %17 = arith.mulf %16, %13 : vector<24x32xf32>
    %18 = arith.addf %17, %14 : vector<24x32xf32>
    %19 = math.tanh %18 : vector<24x32xf32>
    %c0_21 = arith.constant 0 : index
    %c0_22 = arith.constant 0 : index
    %20 = vector.load %arg11[%c0_21, %c0_22] : memref<32x32xf32, #tpu.memory_space<vmem>>, vector<32x32xf32>
    %c0_23 = arith.constant 0 : index
    %c0_24 = arith.constant 0 : index
    %21 = vector.load %arg12[%c0_23, %c0_24] : memref<24x24xf32, #tpu.memory_space<vmem>>, vector<24x24xf32>
    %c0_25 = arith.constant 0 : index
    %c0_26 = arith.constant 0 : index
    %22 = vector.load %arg13[%c0_25, %c0_26] : memref<24x32xf32, #tpu.memory_space<vmem>>, vector<24x32xf32>
    %c0_27 = arith.constant 0 : index
    %c0_28 = arith.constant 0 : index
    %23 = vector.load %arg14[%c0_27, %c0_28] : memref<24x32xf32, #tpu.memory_space<vmem>>, vector<24x32xf32>
    %cst_29 = arith.constant dense<0.000000e+00> : vector<24x32xf32>
    %24 = tpu.matmul %19, %20, %cst_29 {dimension_numbers = #tpu.dot_dimension_numbers<[1], [0], [0], [1], [0, 0, 1, 1], [], []>} : vector<24x32xf32>, vector<32x32xf32>, vector<24x32xf32> -> vector<24x32xf32>
    %cst_30 = arith.constant dense<0.000000e+00> : vector<24x32xf32>
    %25 = tpu.matmul %21, %24, %cst_30 {dimension_numbers = #tpu.dot_dimension_numbers<[1], [0], [0], [1], [0, 0, 1, 1], [], []>} : vector<24x24xf32>, vector<24x32xf32>, vector<24x32xf32> -> vector<24x32xf32>
    %26 = arith.mulf %25, %22 : vector<24x32xf32>
    %27 = arith.addf %26, %23 : vector<24x32xf32>
    %28 = math.tanh %27 : vector<24x32xf32>
    %29 = arith.addf %28, %10 : vector<24x32xf32>
    %c0_31 = arith.constant 0 : index
    %c0_32 = arith.constant 0 : index
    %30 = vector.load %arg15[%c0_31, %c0_32] : memref<32x32xf32, #tpu.memory_space<vmem>>, vector<32x32xf32>
    %c0_33 = arith.constant 0 : index
    %c0_34 = arith.constant 0 : index
    %31 = vector.load %arg16[%c0_33, %c0_34] : memref<1x32xf32, #tpu.memory_space<vmem>>, vector<1x32xf32>
    %c0_35 = arith.constant 0 : index
    %c0_36 = arith.constant 0 : index
    %32 = vector.load %arg17[%c0_35, %c0_36] : memref<32x10xf32, #tpu.memory_space<vmem>>, vector<32x10xf32>
    %c0_37 = arith.constant 0 : index
    %c0_38 = arith.constant 0 : index
    %33 = vector.load %arg18[%c0_37, %c0_38] : memref<1x10xf32, #tpu.memory_space<vmem>>, vector<1x10xf32>
    %cst_39 = arith.constant dense<0.000000e+00> : vector<24x32xf32>
    %34 = tpu.matmul %29, %30, %cst_39 {dimension_numbers = #tpu.dot_dimension_numbers<[1], [0], [0], [1], [0, 0, 1, 1], [], []>} : vector<24x32xf32>, vector<32x32xf32>, vector<24x32xf32> -> vector<24x32xf32>
    %35 = vector.broadcast %31 : vector<1x32xf32> to vector<24x32xf32>
    %36 = arith.addf %34, %35 : vector<24x32xf32>
    %cst_40 = arith.constant 0.000000e+00 : f32
    %37 = vector.broadcast %cst_40 : f32 to vector<24x32xf32>
    %38 = arith.maximumf %36, %37 : vector<24x32xf32>
    %cst_41 = arith.constant dense<0.000000e+00> : vector<24x10xf32>
    %39 = tpu.matmul %38, %32, %cst_41 {dimension_numbers = #tpu.dot_dimension_numbers<[1], [0], [0], [1], [0, 0, 1, 1], [], []>} : vector<24x32xf32>, vector<32x10xf32>, vector<24x10xf32> -> vector<24x10xf32>
    %40 = vector.broadcast %33 : vector<1x10xf32> to vector<24x10xf32>
    %41 = arith.addf %39, %40 : vector<24x10xf32>
    %c0_42 = arith.constant 0 : index
    %c0_43 = arith.constant 0 : index
    %c0_44 = arith.constant 0 : index
    %42 = vector.load %arg35[%c0_42, %c0_43, %c0_44] : memref<1x24x10xf32, #tpu.memory_space<vmem>>, vector<1x24x10xf32>
    %43 = vector.shape_cast %42 : vector<1x24x10xf32> to vector<24x10xf32>
    %44 = vector.shape_cast %41 : vector<24x10xf32> to vector<1x24x10xf32>
    tpu.vector_store %arg35[%c0_42, %c0_43, %c0_44], %44 {strides = array<i32>} : memref<1x24x10xf32, #tpu.memory_space<vmem>>, vector<1x24x10xf32>,
    %c0_45 = arith.constant 0 : index
    %c0_46 = arith.constant 0 : index
    %c0_47 = arith.constant 0 : index
    %45 = vector.load %arg2[%c0_45, %c0_46, %c0_47] : memref<1x32x10xf32, #tpu.memory_space<vmem>>, vector<1x32x10xf32>
    %46 = vector.shape_cast %45 : vector<1x32x10xf32> to vector<32x10xf32>
    %c0_48 = arith.constant 0 : index
    %c0_49 = arith.constant 0 : index
    %47 = vector.load %arg19[%c0_48, %c0_49] : memref<10x32xf32, #tpu.memory_space<vmem>>, vector<10x32xf32>
    %c0_50 = arith.constant 0 : index
    %c0_51 = arith.constant 0 : index
    %48 = vector.load %arg20[%c0_50, %c0_51] : memref<32x32xf32, #tpu.memory_space<vmem>>, vector<32x32xf32>
    %c0_52 = arith.constant 0 : index
    %c0_53 = arith.constant 0 : index
    %49 = vector.load %arg21[%c0_52, %c0_53] : memref<32x32xf32, #tpu.memory_space<vmem>>, vector<32x32xf32>
    %c0_54 = arith.constant 0 : index
    %c0_55 = arith.constant 0 : index
    %50 = vector.load %arg22[%c0_54, %c0_55] : memref<32x32xf32, #tpu.memory_space<vmem>>, vector<32x32xf32>
    %cst_56 = arith.constant dense<0.000000e+00> : vector<32x10xf32>
    %51 = tpu.matmul %48, %46, %cst_56 {dimension_numbers = #tpu.dot_dimension_numbers<[1], [0], [0], [1], [0, 0, 1, 1], [], []>} : vector<32x32xf32>, vector<32x10xf32>, vector<32x10xf32> -> vector<32x10xf32>
    %cst_57 = arith.constant dense<0.000000e+00> : vector<32x32xf32>
    %52 = tpu.matmul %51, %47, %cst_57 {dimension_numbers = #tpu.dot_dimension_numbers<[1], [0], [0], [1], [0, 0, 1, 1], [], []>} : vector<32x10xf32>, vector<10x32xf32>, vector<32x32xf32> -> vector<32x32xf32>
    %53 = arith.mulf %52, %49 : vector<32x32xf32>
    %54 = arith.addf %53, %50 : vector<32x32xf32>
    %55 = math.tanh %54 : vector<32x32xf32>
    %c0_58 = arith.constant 0 : index
    %c0_59 = arith.constant 0 : index
    %56 = vector.load %arg23[%c0_58, %c0_59] : memref<32x32xf32, #tpu.memory_space<vmem>>, vector<32x32xf32>
    %c0_60 = arith.constant 0 : index
    %c0_61 = arith.constant 0 : index
    %57 = vector.load %arg24[%c0_60, %c0_61] : memref<32x32xf32, #tpu.memory_space<vmem>>, vector<32x32xf32>
    %c0_62 = arith.constant 0 : index
    %c0_63 = arith.constant 0 : index
    %58 = vector.load %arg25[%c0_62, %c0_63] : memref<32x32xf32, #tpu.memory_space<vmem>>, vector<32x32xf32>
    %c0_64 = arith.constant 0 : index
    %c0_65 = arith.constant 0 : index
    %59 = vector.load %arg26[%c0_64, %c0_65] : memref<32x32xf32, #tpu.memory_space<vmem>>, vector<32x32xf32>
    %cst_66 = arith.constant dense<0.000000e+00> : vector<32x32xf32>
    %60 = tpu.matmul %55, %56, %cst_66 {dimension_numbers = #tpu.dot_dimension_numbers<[1], [0], [0], [1], [0, 0, 1, 1], [], []>} : vector<32x32xf32>, vector<32x32xf32>, vector<32x32xf32> -> vector<32x32xf32>
    %cst_67 = arith.constant dense<0.000000e+00> : vector<32x32xf32>
    %61 = tpu.matmul %57, %60, %cst_67 {dimension_numbers = #tpu.dot_dimension_numbers<[1], [0], [0], [1], [0, 0, 1, 1], [], []>} : vector<32x32xf32>, vector<32x32xf32>, vector<32x32xf32> -> vector<32x32xf32>
    %62 = arith.mulf %61, %58 : vector<32x32xf32>
    %63 = arith.addf %62, %59 : vector<32x32xf32>
    %64 = math.tanh %63 : vector<32x32xf32>
    %c0_68 = arith.constant 0 : index
    %c0_69 = arith.constant 0 : index
    %65 = vector.load %arg27[%c0_68, %c0_69] : memref<32x32xf32, #tpu.memory_space<vmem>>, vector<32x32xf32>
    %c0_70 = arith.constant 0 : index
    %c0_71 = arith.constant 0 : index
    %66 = vector.load %arg28[%c0_70, %c0_71] : memref<32x32xf32, #tpu.memory_space<vmem>>, vector<32x32xf32>
    %c0_72 = arith.constant 0 : index
    %c0_73 = arith.constant 0 : index
    %67 = vector.load %arg29[%c0_72, %c0_73] : memref<32x32xf32, #tpu.memory_space<vmem>>, vector<32x32xf32>
    %c0_74 = arith.constant 0 : index
    %c0_75 = arith.constant 0 : index
    %68 = vector.load %arg30[%c0_74, %c0_75] : memref<32x32xf32, #tpu.memory_space<vmem>>, vector<32x32xf32>
    %cst_76 = arith.constant dense<0.000000e+00> : vector<32x32xf32>
    %69 = tpu.matmul %64, %65, %cst_76 {dimension_numbers = #tpu.dot_dimension_numbers<[1], [0], [0], [1], [0, 0, 1, 1], [], []>} : vector<32x32xf32>, vector<32x32xf32>, vector<32x32xf32> -> vector<32x32xf32>
    %cst_77 = arith.constant dense<0.000000e+00> : vector<32x32xf32>
    %70 = tpu.matmul %66, %69, %cst_77 {dimension_numbers = #tpu.dot_dimension_numbers<[1], [0], [0], [1], [0, 0, 1, 1], [], []>} : vector<32x32xf32>, vector<32x32xf32>, vector<32x32xf32> -> vector<32x32xf32>
    %71 = arith.mulf %70, %67 : vector<32x32xf32>
    %72 = arith.addf %71, %68 : vector<32x32xf32>
    %73 = math.tanh %72 : vector<32x32xf32>
    %74 = arith.addf %73, %55 : vector<32x32xf32>
    %c0_78 = arith.constant 0 : index
    %c0_79 = arith.constant 0 : index
    %75 = vector.load %arg31[%c0_78, %c0_79] : memref<32x32xf32, #tpu.memory_space<vmem>>, vector<32x32xf32>
    %c0_80 = arith.constant 0 : index
    %c0_81 = arith.constant 0 : index
    %76 = vector.load %arg32[%c0_80, %c0_81] : memref<1x32xf32, #tpu.memory_space<vmem>>, vector<1x32xf32>
    %c0_82 = arith.constant 0 : index
    %c0_83 = arith.constant 0 : index
    %77 = vector.load %arg33[%c0_82, %c0_83] : memref<32x10xf32, #tpu.memory_space<vmem>>, vector<32x10xf32>
    %c0_84 = arith.constant 0 : index
    %c0_85 = arith.constant 0 : index
    %78 = vector.load %arg34[%c0_84, %c0_85] : memref<1x10xf32, #tpu.memory_space<vmem>>, vector<1x10xf32>
    %cst_86 = arith.constant dense<0.000000e+00> : vector<32x32xf32>
    %79 = tpu.matmul %74, %75, %cst_86 {dimension_numbers = #tpu.dot_dimension_numbers<[1], [0], [0], [1], [0, 0, 1, 1], [], []>} : vector<32x32xf32>, vector<32x32xf32>, vector<32x32xf32> -> vector<32x32xf32>
    %80 = vector.broadcast %76 : vector<1x32xf32> to vector<32x32xf32>
    %81 = arith.addf %79, %80 : vector<32x32xf32>
    %cst_87 = arith.constant 0.000000e+00 : f32
    %82 = vector.broadcast %cst_87 : f32 to vector<32x32xf32>
    %83 = arith.maximumf %81, %82 : vector<32x32xf32>
    %cst_88 = arith.constant dense<0.000000e+00> : vector<32x10xf32>
    %84 = tpu.matmul %83, %77, %cst_88 {dimension_numbers = #tpu.dot_dimension_numbers<[1], [0], [0], [1], [0, 0, 1, 1], [], []>} : vector<32x32xf32>, vector<32x10xf32>, vector<32x10xf32> -> vector<32x10xf32>
    %85 = vector.broadcast %78 : vector<1x10xf32> to vector<32x10xf32>
    %86 = arith.addf %84, %85 : vector<32x10xf32>
    %87 = vector.extract_strided_slice %86 {offsets = [0, 0], sizes = [8, 10], strides = [1, 1]} : vector<32x10xf32> to vector<8x10xf32>
    %88 = vector.extract_strided_slice %86 {offsets = [8, 0], sizes = [8, 10], strides = [1, 1]} : vector<32x10xf32> to vector<8x10xf32>
    %89 = vector.extract_strided_slice %86 {offsets = [16, 0], sizes = [8, 10], strides = [1, 1]} : vector<32x10xf32> to vector<8x10xf32>
    %90 = vector.extract_strided_slice %86 {offsets = [24, 0], sizes = [8, 10], strides = [1, 1]} : vector<32x10xf32> to vector<8x10xf32>
    %91 = arith.mulf %87, %87 : vector<8x10xf32>
    %92 = arith.mulf %88, %88 : vector<8x10xf32>
    %93 = arith.addf %91, %92 : vector<8x10xf32>
    %94 = arith.mulf %89, %89 : vector<8x10xf32>
    %95 = arith.addf %93, %94 : vector<8x10xf32>
    %96 = arith.mulf %90, %90 : vector<8x10xf32>
    %97 = arith.addf %95, %96 : vector<8x10xf32>
    %98 = math.sqrt %97 : vector<8x10xf32>
    %cst_89 = arith.constant 9.99999996E-13 : f32
    %99 = vector.broadcast %cst_89 : f32 to vector<8x10xf32>
    %100 = arith.maximumf %98, %99 : vector<8x10xf32>
    %cst_90 = arith.constant 1.000000e+00 : f32
    %101 = vector.broadcast %cst_90 : f32 to vector<8x10xf32>
    %102 = arith.divf %101, %100 : vector<8x10xf32>
    %103 = arith.mulf %87, %102 : vector<8x10xf32>
    %104 = arith.mulf %88, %102 : vector<8x10xf32>
    %105 = arith.mulf %89, %102 : vector<8x10xf32>
    %106 = arith.mulf %90, %102 : vector<8x10xf32>
    %107 = tpu.concatenate %103, %104, %105, %106 in 0 : vector<8x10xf32>, vector<8x10xf32>, vector<8x10xf32>, vector<8x10xf32> -> vector<32x10xf32>
    %c0_91 = arith.constant 0 : index
    %c0_92 = arith.constant 0 : index
    %c0_93 = arith.constant 0 : index
    %108 = vector.load %arg36[%c0_91, %c0_92, %c0_93] : memref<1x32x10xf32, #tpu.memory_space<vmem>>, vector<1x32x10xf32>
    %109 = vector.shape_cast %108 : vector<1x32x10xf32> to vector<32x10xf32>
    %110 = vector.shape_cast %107 : vector<32x10xf32> to vector<1x32x10xf32>
    tpu.vector_store %arg36[%c0_91, %c0_92, %c0_93], %110 {strides = array<i32>} : memref<1x32x10xf32, #tpu.memory_space<vmem>>, vector<1x32x10xf32>,
    return
  }
  func.func @transform_0(%arg0: i32) -> (i32, i32, i32) {
    %c0_i32 = arith.constant 0 : i32
    %c0_i32_0 = arith.constant 0 : i32
    %c0_i32_1 = arith.constant 0 : i32
    return %arg0, %c0_i32, %c0_i32_0 : i32, i32, i32
  }
  func.func @transform_1(%arg0: i32) -> (i32, i32, i32) {
    %c0_i32 = arith.constant 0 : i32
    %c0_i32_0 = arith.constant 0 : i32
    %c0_i32_1 = arith.constant 0 : i32
    return %arg0, %c0_i32, %c0_i32_0 : i32, i32, i32
  }
  func.func @transform_2(%arg0: i32) -> (i32, i32) {
    %c0_i32 = arith.constant 0 : i32
    %c0_i32_0 = arith.constant 0 : i32
    %c0_i32_1 = arith.constant 0 : i32
    return %c0_i32, %c0_i32_0 : i32, i32
  }
  func.func @transform_3(%arg0: i32) -> (i32, i32) {
    %c0_i32 = arith.constant 0 : i32
    %c0_i32_0 = arith.constant 0 : i32
    %c0_i32_1 = arith.constant 0 : i32
    return %c0_i32, %c0_i32_0 : i32, i32
  }
  func.func @transform_4(%arg0: i32) -> (i32, i32) {
    %c0_i32 = arith.constant 0 : i32
    %c0_i32_0 = arith.constant 0 : i32
    %c0_i32_1 = arith.constant 0 : i32
    return %c0_i32, %c0_i32_0 : i32, i32
  }
  func.func @transform_5(%arg0: i32) -> (i32, i32) {
    %c0_i32 = arith.constant 0 : i32
    %c0_i32_0 = arith.constant 0 : i32
    %c0_i32_1 = arith.constant 0 : i32
    return %c0_i32, %c0_i32_0 : i32, i32
  }
  func.func @transform_6(%arg0: i32) -> (i32, i32) {
    %c0_i32 = arith.constant 0 : i32
    %c0_i32_0 = arith.constant 0 : i32
    %c0_i32_1 = arith.constant 0 : i32
    return %c0_i32, %c0_i32_0 : i32, i32
  }
  func.func @transform_7(%arg0: i32) -> (i32, i32) {
    %c0_i32 = arith.constant 0 : i32
    %c0_i32_0 = arith.constant 0 : i32
    %c0_i32_1 = arith.constant 0 : i32
    return %c0_i32, %c0_i32_0 : i32, i32
  }
  func.func @transform_8(%arg0: i32) -> (i32, i32) {
    %c0_i32 = arith.constant 0 : i32
    %c0_i32_0 = arith.constant 0 : i32
    %c0_i32_1 = arith.constant 0 : i32
    return %c0_i32, %c0_i32_0 : i32, i32
  }
  func.func @transform_9(%arg0: i32) -> (i32, i32) {
    %c0_i32 = arith.constant 0 : i32
    %c0_i32_0 = arith.constant 0 : i32
    %c0_i32_1 = arith.constant 0 : i32
    return %c0_i32, %c0_i32_0 : i32, i32
  }
  func.func @transform_10(%arg0: i32) -> (i32, i32) {
    %c0_i32 = arith.constant 0 : i32
    %c0_i32_0 = arith.constant 0 : i32
    %c0_i32_1 = arith.constant 0 : i32
    return %c0_i32, %c0_i32_0 : i32, i32
  }
  func.func @transform_11(%arg0: i32) -> (i32, i32) {
    %c0_i32 = arith.constant 0 : i32
    %c0_i32_0 = arith.constant 0 : i32
    %c0_i32_1 = arith.constant 0 : i32
    return %c0_i32, %c0_i32_0 : i32, i32
  }
  func.func @transform_12(%arg0: i32) -> (i32, i32) {
    %c0_i32 = arith.constant 0 : i32
    %c0_i32_0 = arith.constant 0 : i32
    %c0_i32_1 = arith.constant 0 : i32
    return %c0_i32, %c0_i32_0 : i32, i32
  }
  func.func @transform_13(%arg0: i32) -> (i32, i32) {
    %c0_i32 = arith.constant 0 : i32
    %c0_i32_0 = arith.constant 0 : i32
    %c0_i32_1 = arith.constant 0 : i32
    return %c0_i32, %c0_i32_0 : i32, i32
  }
  func.func @transform_14(%arg0: i32) -> (i32, i32) {
    %c0_i32 = arith.constant 0 : i32
    %c0_i32_0 = arith.constant 0 : i32
    %c0_i32_1 = arith.constant 0 : i32
    return %c0_i32, %c0_i32_0 : i32, i32
  }
  func.func @transform_15(%arg0: i32) -> (i32, i32) {
    %c0_i32 = arith.constant 0 : i32
    %c0_i32_0 = arith.constant 0 : i32
    %c0_i32_1 = arith.constant 0 : i32
    return %c0_i32, %c0_i32_0 : i32, i32
  }
  func.func @transform_16(%arg0: i32) -> (i32, i32) {
    %c0_i32 = arith.constant 0 : i32
    %c0_i32_0 = arith.constant 0 : i32
    %c0_i32_1 = arith.constant 0 : i32
    return %c0_i32, %c0_i32_0 : i32, i32
  }
  func.func @transform_17(%arg0: i32) -> (i32, i32) {
    %c0_i32 = arith.constant 0 : i32
    %c0_i32_0 = arith.constant 0 : i32
    %c0_i32_1 = arith.constant 0 : i32
    return %c0_i32, %c0_i32_0 : i32, i32
  }
  func.func @transform_18(%arg0: i32) -> (i32, i32) {
    %c0_i32 = arith.constant 0 : i32
    %c0_i32_0 = arith.constant 0 : i32
    %c0_i32_1 = arith.constant 0 : i32
    return %c0_i32, %c0_i32_0 : i32, i32
  }
  func.func @transform_19(%arg0: i32) -> (i32, i32) {
    %c0_i32 = arith.constant 0 : i32
    %c0_i32_0 = arith.constant 0 : i32
    %c0_i32_1 = arith.constant 0 : i32
    return %c0_i32, %c0_i32_0 : i32, i32
  }
  func.func @transform_20(%arg0: i32) -> (i32, i32) {
    %c0_i32 = arith.constant 0 : i32
    %c0_i32_0 = arith.constant 0 : i32
    %c0_i32_1 = arith.constant 0 : i32
    return %c0_i32, %c0_i32_0 : i32, i32
  }
  func.func @transform_21(%arg0: i32) -> (i32, i32) {
    %c0_i32 = arith.constant 0 : i32
    %c0_i32_0 = arith.constant 0 : i32
    %c0_i32_1 = arith.constant 0 : i32
    return %c0_i32, %c0_i32_0 : i32, i32
  }
  func.func @transform_22(%arg0: i32) -> (i32, i32) {
    %c0_i32 = arith.constant 0 : i32
    %c0_i32_0 = arith.constant 0 : i32
    %c0_i32_1 = arith.constant 0 : i32
    return %c0_i32, %c0_i32_0 : i32, i32
  }
  func.func @transform_23(%arg0: i32) -> (i32, i32) {
    %c0_i32 = arith.constant 0 : i32
    %c0_i32_0 = arith.constant 0 : i32
    %c0_i32_1 = arith.constant 0 : i32
    return %c0_i32, %c0_i32_0 : i32, i32
  }
  func.func @transform_24(%arg0: i32) -> (i32, i32) {
    %c0_i32 = arith.constant 0 : i32
    %c0_i32_0 = arith.constant 0 : i32
    %c0_i32_1 = arith.constant 0 : i32
    return %c0_i32, %c0_i32_0 : i32, i32
  }
  func.func @transform_25(%arg0: i32) -> (i32, i32) {
    %c0_i32 = arith.constant 0 : i32
    %c0_i32_0 = arith.constant 0 : i32
    %c0_i32_1 = arith.constant 0 : i32
    return %c0_i32, %c0_i32_0 : i32, i32
  }
  func.func @transform_26(%arg0: i32) -> (i32, i32) {
    %c0_i32 = arith.constant 0 : i32
    %c0_i32_0 = arith.constant 0 : i32
    %c0_i32_1 = arith.constant 0 : i32
    return %c0_i32, %c0_i32_0 : i32, i32
  }
  func.func @transform_27(%arg0: i32) -> (i32, i32) {
    %c0_i32 = arith.constant 0 : i32
    %c0_i32_0 = arith.constant 0 : i32
    %c0_i32_1 = arith.constant 0 : i32
    return %c0_i32, %c0_i32_0 : i32, i32
  }
  func.func @transform_28(%arg0: i32) -> (i32, i32) {
    %c0_i32 = arith.constant 0 : i32
    %c0_i32_0 = arith.constant 0 : i32
    %c0_i32_1 = arith.constant 0 : i32
    return %c0_i32, %c0_i32_0 : i32, i32
  }
  func.func @transform_29(%arg0: i32) -> (i32, i32) {
    %c0_i32 = arith.constant 0 : i32
    %c0_i32_0 = arith.constant 0 : i32
    %c0_i32_1 = arith.constant 0 : i32
    return %c0_i32, %c0_i32_0 : i32, i32
  }
  func.func @transform_30(%arg0: i32) -> (i32, i32) {
    %c0_i32 = arith.constant 0 : i32
    %c0_i32_0 = arith.constant 0 : i32
    %c0_i32_1 = arith.constant 0 : i32
    return %c0_i32, %c0_i32_0 : i32, i32
  }
  func.func @transform_31(%arg0: i32) -> (i32, i32) {
    %c0_i32 = arith.constant 0 : i32
    %c0_i32_0 = arith.constant 0 : i32
    %c0_i32_1 = arith.constant 0 : i32
    return %c0_i32, %c0_i32_0 : i32, i32
  }
  func.func @transform_32(%arg0: i32) -> (i32, i32) {
    %c0_i32 = arith.constant 0 : i32
    %c0_i32_0 = arith.constant 0 : i32
    %c0_i32_1 = arith.constant 0 : i32
    return %c0_i32, %c0_i32_0 : i32, i32
  }
  func.func @transform_33(%arg0: i32) -> (i32, i32) {
    %c0_i32 = arith.constant 0 : i32
    %c0_i32_0 = arith.constant 0 : i32
    %c0_i32_1 = arith.constant 0 : i32
    return %c0_i32, %c0_i32_0 : i32, i32
  }
  func.func @transform_34(%arg0: i32) -> (i32, i32, i32) {
    %c0_i32 = arith.constant 0 : i32
    %c0_i32_0 = arith.constant 0 : i32
    %c0_i32_1 = arith.constant 0 : i32
    return %arg0, %c0_i32, %c0_i32_0 : i32, i32, i32
  }
  func.func @transform_35(%arg0: i32) -> (i32, i32, i32) {
    %c0_i32 = arith.constant 0 : i32
    %c0_i32_0 = arith.constant 0 : i32
    %c0_i32_1 = arith.constant 0 : i32
    return %arg0, %c0_i32, %c0_i32_0 : i32, i32, i32
  }
}

</mosaic_0001>

<llo_original>
// kernel: gcn_xyzr_forward.1
$region0: #{gcn_xyzr_forward.1}
  #allocation0 [shape = 'u32[]', space=smem, size = 0x4, offset = 0x4, fixed_abs, tag = 'smem constant byte address 0x4 - core index']
  #allocation1 [shape = 'u32[144,128]{1,0:T(1,128)}', space=vmem, size = 0x12000, scoped, tag = 'internal scratch']
  %s0 = inlined_call_operand.smem [shape: u32[36], index: -1, kind: input, shape index: {}]
  %s1 = sld [smem:[%s0]]
  %s2 = scalar_lea.smem %s0, 1
  %s3 = sld [smem:[%s2]]
  %s4 = scalar_lea.smem %s0, 2
  %s5 = sld [smem:[%s4]]
  %s6 = scalar_lea.smem %s0, 3
  %s7 = sld [smem:[%s6]]
  %s8 = scalar_lea.smem %s0, 4
  %s9 = sld [smem:[%s8]]
  %s10 = scalar_lea.smem %s0, 5
  %s11 = sld [smem:[%s10]]
  %s12 = scalar_lea.smem %s0, 6
  %s13 = sld [smem:[%s12]]
  %s14 = scalar_lea.smem %s0, 7
  %s15 = sld [smem:[%s14]]
  %s16 = scalar_lea.smem %s0, 8
  %s17 = sld [smem:[%s16]]
  %s18 = scalar_lea.smem %s0, 9
  %s19 = sld [smem:[%s18]]
  %s20 = scalar_lea.smem %s0, 10
  %s21 = sld [smem:[%s20]]
  %s22 = scalar_lea.smem %s0, 11
  %s23 = sld [smem:[%s22]]
  %s24 = scalar_lea.smem %s0, 12
  %s25 = sld [smem:[%s24]]
  %s26 = scalar_lea.smem %s0, 13
  %s27 = sld [smem:[%s26]]
  %s28 = scalar_lea.smem %s0, 14
  %s29 = sld [smem:[%s28]]
  %s30 = scalar_lea.smem %s0, 15
  %s31 = sld [smem:[%s30]]
  %s32 = scalar_lea.smem %s0, 16
  %s33 = sld [smem:[%s32]]
  %s34 = scalar_lea.smem %s0, 17
  %s35 = sld [smem:[%s34]]
  %s36 = scalar_lea.smem %s0, 18
  %s37 = sld [smem:[%s36]]
  %s38 = scalar_lea.smem %s0, 19
  %s39 = sld [smem:[%s38]]
  %s40 = scalar_lea.smem %s0, 20
  %s41 = sld [smem:[%s40]]
  %s42 = scalar_lea.smem %s0, 21
  %s43 = sld [smem:[%s42]]
  %s44 = scalar_lea.smem %s0, 22
  %s45 = sld [smem:[%s44]]
  %s46 = scalar_lea.smem %s0, 23
  %s47 = sld [smem:[%s46]]
  %s48 = scalar_lea.smem %s0, 24
  %s49 = sld [smem:[%s48]]
  %s50 = scalar_lea.smem %s0, 25
  %s51 = sld [smem:[%s50]]
  %s52 = scalar_lea.smem %s0, 26
  %s53 = sld [smem:[%s52]]
  %s54 = scalar_lea.smem %s0, 27
  %s55 = sld [smem:[%s54]]
  %s56 = scalar_lea.smem %s0, 28
  %s57 = sld [smem:[%s56]]
  %s58 = scalar_lea.smem %s0, 29
  %s59 = sld [smem:[%s58]]
  %s60 = scalar_lea.smem %s0, 30
  %s61 = sld [smem:[%s60]]
  %s62 = scalar_lea.smem %s0, 31
  %s63 = sld [smem:[%s62]]
  %s64 = scalar_lea.smem %s0, 32
  %s65 = sld [smem:[%s64]]
  %s66 = scalar_lea.smem %s0, 33
  %s67 = sld [smem:[%s66]]
  %s68 = scalar_lea.smem %s0, 34
  %s69 = sld [smem:[%s68]]
  %s70 = scalar_lea.smem %s0, 35
  %s71 = sld [smem:[%s70]]
  %72 = xla_tuple %s69, %s71
  %s73 = sld [smem:[#allocation0]]
  $region273: #{gcn_xyzr_forward.1} parent=0
    _
  %s75 = ssub.s32 1, %s73
  %s76 = scalar_select 0, %s75, %s73
  $region1: #{gcn_xyzr_forward.1} parent=0
    #allocation2 [shape = 'u8[8192]{0}', space=vmem, size = 0x2000, scoped, tag = 'input window, operand 2, single buffered']
    #allocation3 [shape = 's32[2]{0}', space=sflag, size = 0x8, scoped, tag = 'scoped memory for gcn_xyzr_forward.1']
    #allocation4 [shape = 's32[2]{0}', space=sflag, size = 0x8, scoped, tag = 'scoped memory for gcn_xyzr_forward.1']
    #allocation5 [shape = 'u8[12288]{0}', space=vmem, size = 0x3000, scoped, tag = 'input window, operand 3, single buffered']
    #allocation6 [shape = 's32[1]{0}', space=sflag, size = 0x4, scoped, tag = 'scoped memory for gcn_xyzr_forward.1']
    #allocation7 [shape = 'u8[12288]{0}', space=vmem, size = 0x3000, scoped, tag = 'input window, operand 4, single buffered']
    #allocation8 [shape = 'u8[12288]{0}', space=vmem, size = 0x3000, scoped, tag = 'input window, operand 5, single buffered']
    #allocation9 [shape = 's32[1]{0}', space=sflag, size = 0x4, scoped, tag = 'scoped memory for gcn_xyzr_forward.1']
    #allocation10 [shape = 'u8[16384]{0}', space=vmem, size = 0x4000, scoped, tag = 'input window, operand 6, single buffered']
    #allocation11 [shape = 'u8[12288]{0}', space=vmem, size = 0x3000, scoped, tag = 'input window, operand 7, single buffered']
    #allocation12 [shape = 's32[1]{0}', space=sflag, size = 0x4, scoped, tag = 'scoped memory for gcn_xyzr_forward.1']
    #allocation13 [shape = 'u8[12288]{0}', space=vmem, size = 0x3000, scoped, tag = 'input window, operand 8, single buffered']
    #allocation14 [shape = 'u8[12288]{0}', space=vmem, size = 0x3000, scoped, tag = 'input window, operand 9, single buffered']
    #allocation15 [shape = 's32[1]{0}', space=sflag, size = 0x4, scoped, tag = 'scoped memory for gcn_xyzr_forward.1']
    #allocation16 [shape = 'u8[16384]{0}', space=vmem, size = 0x4000, scoped, tag = 'input window, operand 10, single buffered']
    #allocation17 [shape = 'u8[12288]{0}', space=vmem, size = 0x3000, scoped, tag = 'input window, operand 11, single buffered']
    #allocation18 [shape = 's32[1]{0}', space=sflag, size = 0x4, scoped, tag = 'scoped memory for gcn_xyzr_forward.1']
    #allocation19 [shape = 'u8[12288]{0}', space=vmem, size = 0x3000, scoped, tag = 'input window, operand 12, single buffered']
    #allocation20 [shape = 'u8[12288]{0}', space=vmem, size = 0x3000, scoped, tag = 'input window, operand 13, single buffered']
    #allocation21 [shape = 's32[1]{0}', space=sflag, size = 0x4, scoped, tag = 'scoped memory for gcn_xyzr_forward.1']
    #allocation22 [shape = 'u8[512]{0}', space=vmem, size = 0x400, scoped, tag = 'input window, operand 17, single buffered']
    #allocation23 [shape = 'u8[8192]{0}', space=vmem, size = 0x2000, scoped, tag = 'input window, operand 18, single buffered']
    #allocation24 [shape = 's32[1]{0}', space=sflag, size = 0x4, scoped, tag = 'scoped memory for gcn_xyzr_forward.1']
    #allocation25 [shape = 'u8[16384]{0}', space=vmem, size = 0x4000, scoped, tag = 'input window, operand 19, single buffered']
    #allocation26 [shape = 'u8[16384]{0}', space=vmem, size = 0x4000, scoped, tag = 'input window, operand 20, single buffered']
    #allocation27 [shape = 's32[1]{0}', space=sflag, size = 0x4, scoped, tag = 'scoped memory for gcn_xyzr_forward.1']
    #allocation28 [shape = 'u8[16384]{0}', space=vmem, size = 0x4000, scoped, tag = 'input window, operand 21, single buffered']
    #allocation29 [shape = 'u8[16384]{0}', space=vmem, size = 0x4000, scoped, tag = 'input window, operand 23, single buffered']
    #allocation30 [shape = 's32[1]{0}', space=sflag, size = 0x4, scoped, tag = 'scoped memory for gcn_xyzr_forward.1']
    #allocation31 [shape = 'u8[16384]{0}', space=vmem, size = 0x4000, scoped, tag = 'input window, operand 24, single buffered']
    #allocation32 [shape = 'u8[16384]{0}', space=vmem, size = 0x4000, scoped, tag = 'input window, operand 25, single buffered']
    #allocation33 [shape = 's32[1]{0}', space=sflag, size = 0x4, scoped, tag = 'scoped memory for gcn_xyzr_forward.1']
    #allocation34 [shape = 'u8[16384]{0}', space=vmem, size = 0x4000, scoped, tag = 'input window, operand 26, single buffered']
    #allocation35 [shape = 'u8[16384]{0}', space=vmem, size = 0x4000, scoped, tag = 'input window, operand 27, single buffered']
    #allocation36 [shape = 's32[1]{0}', space=sflag, size = 0x4, scoped, tag = 'scoped memory for gcn_xyzr_forward.1']
    #allocation37 [shape = 'u8[16384]{0}', space=vmem, size = 0x4000, scoped, tag = 'input window, operand 28, single buffered']
    #allocation38 [shape = 'u8[16384]{0}', space=vmem, size = 0x4000, scoped, tag = 'input window, operand 29, single buffered']
    #allocation39 [shape = 's32[1]{0}', space=sflag, size = 0x4, scoped, tag = 'scoped memory for gcn_xyzr_forward.1']
    #allocation40 [shape = 'u8[24576]{0}', space=vmem, size = 0x6000, scoped, tag = 'output window, operand 0']
    #allocation41 [shape = 'u8[32768]{0}', space=vmem, size = 0x8000, scoped, tag = 'output window, operand 1']
    #allocation42 [shape = 's32[2]{0}', space=sflag, size = 0x8, scoped, tag = 'scoped memory for gcn_xyzr_forward.1']
    %77 = vsyncpa [#allocation3], 0
    %78 = vsyncpa [#allocation6], 0
    %79 = vsyncpa [#allocation9], 0
    %80 = vsyncpa [#allocation12], 0
    %81 = vsyncpa [#allocation15], 0
    %82 = vsyncpa [#allocation18], 0
    %83 = vsyncpa [#allocation21], 0
    %84 = vsyncpa [#allocation24], 0
    %85 = vsyncpa [#allocation27], 0
    %86 = vsyncpa [#allocation30], 0
    %87 = vsyncpa [#allocation33], 0
    %88 = vsyncpa [#allocation36], 0
    %89 = vsyncpa [#allocation39], 0
    %90 = vsyncpa [#allocation4], 0
    %s91 = scalar_lea.sflag [#allocation4], 1
    %92 = vsyncpa %s91, 0
    %93 = vsyncpa [#allocation42], 0
    %s94 = scalar_lea.sflag [#allocation42], 1
    %95 = vsyncpa %s94, 0
    loop: start=0, step=1, limit=4
    $region2: #{gcn_xyzr_forward.1} parent=1 // loop_pre_header
      _
    $region3: #{gcn_xyzr_forward.1} parent=1 // loop_header
      %s97 = sphi 0, %s101
      %p98 = scmp.ge.s32.totalorder %s97, 4
      %s107 = sphi 0, %s109
      %s110 = sphi 0, %s107
      %s111 = sphi 0, %s110
      %s127 = sphi 0, %s111
      %s133 = sphi 0, %s135
      %s136 = sphi 0, %s133
      %s137 = sphi 0, %s136
      %s153 = sphi 0, %s137
      %s157 = sphi 0, %s157
      %s159 = sphi 0, %s157
      %s160 = sphi 0, %s159
      %s174 = sphi 0, %s160
      %s178 = sphi 0, %s178
      %s180 = sphi 0, %s178
      %s181 = sphi 0, %s180
      %s195 = sphi 0, %s181
      %s199 = sphi 0, %s199
      %s201 = sphi 0, %s199
      %s202 = sphi 0, %s201
      %s216 = sphi 0, %s202
      %s220 = sphi 0, %s220
      %s222 = sphi 0, %s220
      %s223 = sphi 0, %s222
      %s237 = sphi 0, %s223
      %s241 = sphi 0, %s241
      %s243 = sphi 0, %s241
      %s244 = sphi 0, %s243
      %s258 = sphi 0, %s244
      %s262 = sphi 0, %s262
      %s264 = sphi 0, %s262
      %s265 = sphi 0, %s264
      %s279 = sphi 0, %s265
      %s283 = sphi 0, %s283
      %s285 = sphi 0, %s283
      %s286 = sphi 0, %s285
      %s300 = sphi 0, %s286
      %s304 = sphi 0, %s304
      %s306 = sphi 0, %s304
      %s307 = sphi 0, %s306
      %s321 = sphi 0, %s307
      %s325 = sphi 0, %s325
      %s327 = sphi 0, %s325
      %s328 = sphi 0, %s327
      %s342 = sphi 0, %s328
      %s346 = sphi 0, %s346
      %s348 = sphi 0, %s346
      %s349 = sphi 0, %s348
      %s363 = sphi 0, %s349
      %s367 = sphi 0, %s367
      %s369 = sphi 0, %s367
      %s370 = sphi 0, %s369
      %s384 = sphi 0, %s370
      %s388 = sphi 0, %s388
      %s390 = sphi 0, %s388
      %s391 = sphi 0, %s390
      %s405 = sphi 0, %s391
      %s409 = sphi 0, %s409
      %s411 = sphi 0, %s409
      %s412 = sphi 0, %s411
      %s426 = sphi 0, %s412
      %s430 = sphi 0, %s430
      %s432 = sphi 0, %s430
      %s433 = sphi 0, %s432
      %s447 = sphi 0, %s433
      %s451 = sphi 0, %s451
      %s453 = sphi 0, %s451
      %s454 = sphi 0, %s453
      %s468 = sphi 0, %s454
      %s472 = sphi 0, %s472
      %s474 = sphi 0, %s472
      %s475 = sphi 0, %s474
      %s489 = sphi 0, %s475
      %s493 = sphi 0, %s493
      %s495 = sphi 0, %s493
      %s496 = sphi 0, %s495
      %s510 = sphi 0, %s496
      %s514 = sphi 0, %s514
      %s516 = sphi 0, %s514
      %s517 = sphi 0, %s516
      %s531 = sphi 0, %s517
      %s535 = sphi 0, %s535
      %s537 = sphi 0, %s535
      %s538 = sphi 0, %s537
      %s552 = sphi 0, %s538
      %s556 = sphi 0, %s556
      %s558 = sphi 0, %s556
      %s559 = sphi 0, %s558
      %s573 = sphi 0, %s559
      %s577 = sphi 0, %s577
      %s579 = sphi 0, %s577
      %s580 = sphi 0, %s579
      %s594 = sphi 0, %s580
      %s598 = sphi 0, %s598
      %s600 = sphi 0, %s598
      %s601 = sphi 0, %s600
      %s615 = sphi 0, %s601
      %s619 = sphi 0, %s619
      %s621 = sphi 0, %s619
      %s622 = sphi 0, %s621
      %s636 = sphi 0, %s622
      %s640 = sphi 0, %s640
      %s642 = sphi 0, %s640
      %s643 = sphi 0, %s642
      %s657 = sphi 0, %s643
      %s661 = sphi 0, %s661
      %s663 = sphi 0, %s661
      %s664 = sphi 0, %s663
      %s678 = sphi 0, %s664
      %s682 = sphi 0, %s682
      %s684 = sphi 0, %s682
      %s685 = sphi 0, %s684
      %s699 = sphi 0, %s685
      %s703 = sphi 0, %s703
      %s705 = sphi 0, %s703
      %s706 = sphi 0, %s705
      %s720 = sphi 0, %s706
      %s724 = sphi 0, %s724
      %s726 = sphi 0, %s724
      %s727 = sphi 0, %s726
      %s741 = sphi 0, %s727
      %s745 = sphi 0, %s745
      %s747 = sphi 0, %s745
      %s748 = sphi 0, %s747
      %s762 = sphi 0, %s748
      %s766 = sphi 0, %s766
      %s768 = sphi 0, %s766
      %s769 = sphi 0, %s768
      %s783 = sphi 0, %s769
      %s787 = sphi 0, %s787
      %s789 = sphi 0, %s787
      %s790 = sphi 0, %s789
      %s804 = sphi 0, %s790
      %s808 = sphi 0, %s808
      %s810 = sphi 0, %s808
      %s811 = sphi 0, %s810
      %s825 = sphi 0, %s811
      %s831 = sphi 0, %s833
      %s834 = sphi 0, %s831
      %s835 = sphi 0, %s834
      %s851 = sphi 0, %s835
      %s857 = sphi 0, %s859
      %s860 = sphi 0, %s857
      %s861 = sphi 0, %s860
      %s877 = sphi 0, %s861
    $region4: #{gcn_xyzr_forward.1} parent=1 // loop_header_branch
      %100 = sbr.rel (%p98) target = $region8
    $region5: #{gcn_xyzr_forward.1} parent=1 // loop_body
      %s102 = ssub.s32 %s97, 1
      %s103 = ssub.s32 %s97, 2
      %s104 = sadd.s32 %s97, 1
      %s105 = ssub.s32 %s97, %s104
      %p106 = scmp.eq.s32.totalorder %s105, 0
      %s108 = sadd.s32 %s107, 1
      %s109 = scalar_select %p106, %s107, %s108
      %p112 = pneg %p106
      %p113 = scmp.eq.s32.totalorder %s97, 1
      %p114 = por %p112, %p113
      %p115 = scmp.ne.s32.totalorder %s107, %s110
      %p116 = scmp.eq.s32.totalorder %s97, 0
      %p117 = por %p115, %p116
      %p118 = scmp.ne.s32.totalorder %s107, %s110
      %p119 = scmp.eq.s32.totalorder %s102, 1
      %p120 = por %p118, %p119
      %p121 = scmp.ne.s32.totalorder %s110, %s111
      %p122 = scmp.eq.s32.totalorder %s102, 0
      %p123 = por %p121, %p122
      %p124 = scmp.ne.s32.totalorder %s110, %s111
      %p125 = scmp.eq.s32.totalorder %s103, 1
      %p126 = por %p124, %p125
      %p128 = scmp.ne.s32.totalorder %s111, %s127
      %p129 = scmp.eq.s32.totalorder %s103, 0
      %p130 = por %p128, %p129
      %s131 = ssub.s32 %s97, %s104
      %p132 = scmp.eq.s32.totalorder %s131, 0
      %s134 = sadd.s32 %s133, 1
      %s135 = scalar_select %p132, %s133, %s134
      %p138 = pneg %p132
      %p139 = scmp.eq.s32.totalorder %s97, 1
      %p140 = por %p138, %p139
      %p141 = scmp.ne.s32.totalorder %s133, %s136
      %p142 = scmp.eq.s32.totalorder %s97, 0
      %p143 = por %p141, %p142
      %p144 = scmp.ne.s32.totalorder %s133, %s136
      %p145 = scmp.eq.s32.totalorder %s102, 1
      %p146 = por %p144, %p145
      %p147 = scmp.ne.s32.totalorder %s136, %s137
      %p148 = scmp.eq.s32.totalorder %s102, 0
      %p149 = por %p147, %p148
      %p150 = scmp.ne.s32.totalorder %s136, %s137
      %p151 = scmp.eq.s32.totalorder %s103, 1
      %p152 = por %p150, %p151
      %p154 = scmp.ne.s32.totalorder %s137, %s153
      %p155 = scmp.eq.s32.totalorder %s103, 0
      %p156 = por %p154, %p155
      %s158 = sadd.s32 %s157, 1
      %p161 = scmp.eq.s32.totalorder %s97, 1
      %p162 = scmp.ne.s32.totalorder %s157, %s159
      %p163 = scmp.eq.s32.totalorder %s97, 0
      %p164 = por %p162, %p163
      %p165 = scmp.ne.s32.totalorder %s157, %s159
      %p166 = scmp.eq.s32.totalorder %s102, 1
      %p167 = por %p165, %p166
      %p168 = scmp.ne.s32.totalorder %s159, %s160
      %p169 = scmp.eq.s32.totalorder %s102, 0
      %p170 = por %p168, %p169
      %p171 = scmp.ne.s32.totalorder %s159, %s160
      %p172 = scmp.eq.s32.totalorder %s103, 1
      %p173 = por %p171, %p172
      %p175 = scmp.ne.s32.totalorder %s160, %s174
      %p176 = scmp.eq.s32.totalorder %s103, 0
      %p177 = por %p175, %p176
      %s179 = sadd.s32 %s178, 1
      %p182 = scmp.eq.s32.totalorder %s97, 1
      %p183 = scmp.ne.s32.totalorder %s178, %s180
      %p184 = scmp.eq.s32.totalorder %s97, 0
      %p185 = por %p183, %p184
      %p186 = scmp.ne.s32.totalorder %s178, %s180
      %p187 = scmp.eq.s32.totalorder %s102, 1
      %p188 = por %p186, %p187
      %p189 = scmp.ne.s32.totalorder %s180, %s181
      %p190 = scmp.eq.s32.totalorder %s102, 0
      %p191 = por %p189, %p190
      %p192 = scmp.ne.s32.totalorder %s180, %s181
      %p193 = scmp.eq.s32.totalorder %s103, 1
      %p194 = por %p192, %p193
      %p196 = scmp.ne.s32.totalorder %s181, %s195
      %p197 = scmp.eq.s32.totalorder %s103, 0
      %p198 = por %p196, %p197
      %s200 = sadd.s32 %s199, 1
      %p203 = scmp.eq.s32.totalorder %s97, 1
      %p204 = scmp.ne.s32.totalorder %s199, %s201
      %p205 = scmp.eq.s32.totalorder %s97, 0
      %p206 = por %p204, %p205
      %p207 = scmp.ne.s32.totalorder %s199, %s201
      %p208 = scmp.eq.s32.totalorder %s102, 1
      %p209 = por %p207, %p208
      %p210 = scmp.ne.s32.totalorder %s201, %s202
      %p211 = scmp.eq.s32.totalorder %s102, 0
      %p212 = por %p210, %p211
      %p213 = scmp.ne.s32.totalorder %s201, %s202
      %p214 = scmp.eq.s32.totalorder %s103, 1
      %p215 = por %p213, %p214
      %p217 = scmp.ne.s32.totalorder %s202, %s216
      %p218 = scmp.eq.s32.totalorder %s103, 0
      %p219 = por %p217, %p218
      %s221 = sadd.s32 %s220, 1
      %p224 = scmp.eq.s32.totalorder %s97, 1
      %p225 = scmp.ne.s32.totalorder %s220, %s222
      %p226 = scmp.eq.s32.totalorder %s97, 0
      %p227 = por %p225, %p226
      %p228 = scmp.ne.s32.totalorder %s220, %s222
      %p229 = scmp.eq.s32.totalorder %s102, 1
      %p230 = por %p228, %p229
      %p231 = scmp.ne.s32.totalorder %s222, %s223
      %p232 = scmp.eq.s32.totalorder %s102, 0
      %p233 = por %p231, %p232
      %p234 = scmp.ne.s32.totalorder %s222, %s223
      %p235 = scmp.eq.s32.totalorder %s103, 1
      %p236 = por %p234, %p235
      %p238 = scmp.ne.s32.totalorder %s223, %s237
      %p239 = scmp.eq.s32.totalorder %s103, 0
      %p240 = por %p238, %p239
      %s242 = sadd.s32 %s241, 1
      %p245 = scmp.eq.s32.totalorder %s97, 1
      %p246 = scmp.ne.s32.totalorder %s241, %s243
      %p247 = scmp.eq.s32.totalorder %s97, 0
      %p248 = por %p246, %p247
      %p249 = scmp.ne.s32.totalorder %s241, %s243
      %p250 = scmp.eq.s32.totalorder %s102, 1
      %p251 = por %p249, %p250
      %p252 = scmp.ne.s32.totalorder %s243, %s244
      %p253 = scmp.eq.s32.totalorder %s102, 0
      %p254 = por %p252, %p253
      %p255 = scmp.ne.s32.totalorder %s243, %s244
      %p256 = scmp.eq.s32.totalorder %s103, 1
      %p257 = por %p255, %p256
      %p259 = scmp.ne.s32.totalorder %s244, %s258
      %p260 = scmp.eq.s32.totalorder %s103, 0
      %p261 = por %p259, %p260
      %s263 = sadd.s32 %s262, 1
      %p266 = scmp.eq.s32.totalorder %s97, 1
      %p267 = scmp.ne.s32.totalorder %s262, %s264
      %p268 = scmp.eq.s32.totalorder %s97, 0
      %p269 = por %p267, %p268
      %p270 = scmp.ne.s32.totalorder %s262, %s264
      %p271 = scmp.eq.s32.totalorder %s102, 1
      %p272 = por %p270, %p271
      %p273 = scmp.ne.s32.totalorder %s264, %s265
      %p274 = scmp.eq.s32.totalorder %s102, 0
      %p275 = por %p273, %p274
      %p276 = scmp.ne.s32.totalorder %s264, %s265
      %p277 = scmp.eq.s32.totalorder %s103, 1
      %p278 = por %p276, %p277
      %p280 = scmp.ne.s32.totalorder %s265, %s279
      %p281 = scmp.eq.s32.totalorder %s103, 0
      %p282 = por %p280, %p281
      %s284 = sadd.s32 %s283, 1
      %p287 = scmp.eq.s32.totalorder %s97, 1
      %p288 = scmp.ne.s32.totalorder %s283, %s285
      %p289 = scmp.eq.s32.totalorder %s97, 0
      %p290 = por %p288, %p289
      %p291 = scmp.ne.s32.totalorder %s283, %s285
      %p292 = scmp.eq.s32.totalorder %s102, 1
      %p293 = por %p291, %p292
      %p294 = scmp.ne.s32.totalorder %s285, %s286
      %p295 = scmp.eq.s32.totalorder %s102, 0
      %p296 = por %p294, %p295
      %p297 = scmp.ne.s32.totalorder %s285, %s286
      %p298 = scmp.eq.s32.totalorder %s103, 1
      %p299 = por %p297, %p298
      %p301 = scmp.ne.s32.totalorder %s286, %s300
      %p302 = scmp.eq.s32.totalorder %s103, 0
      %p303 = por %p301, %p302
      %s305 = sadd.s32 %s304, 1
      %p308 = scmp.eq.s32.totalorder %s97, 1
      %p309 = scmp.ne.s32.totalorder %s304, %s306
      %p310 = scmp.eq.s32.totalorder %s97, 0
      %p311 = por %p309, %p310
      %p312 = scmp.ne.s32.totalorder %s304, %s306
      %p313 = scmp.eq.s32.totalorder %s102, 1
      %p314 = por %p312, %p313
      %p315 = scmp.ne.s32.totalorder %s306, %s307
      %p316 = scmp.eq.s32.totalorder %s102, 0
      %p317 = por %p315, %p316
      %p318 = scmp.ne.s32.totalorder %s306, %s307
      %p319 = scmp.eq.s32.totalorder %s103, 1
      %p320 = por %p318, %p319
      %p322 = scmp.ne.s32.totalorder %s307, %s321
      %p323 = scmp.eq.s32.totalorder %s103, 0
      %p324 = por %p322, %p323
      %s326 = sadd.s32 %s325, 1
      %p329 = scmp.eq.s32.totalorder %s97, 1
      %p330 = scmp.ne.s32.totalorder %s325, %s327
      %p331 = scmp.eq.s32.totalorder %s97, 0
      %p332 = por %p330, %p331
      %p333 = scmp.ne.s32.totalorder %s325, %s327
      %p334 = scmp.eq.s32.totalorder %s102, 1
      %p335 = por %p333, %p334
      %p336 = scmp.ne.s32.totalorder %s327, %s328
      %p337 = scmp.eq.s32.totalorder %s102, 0
      %p338 = por %p336, %p337
      %p339 = scmp.ne.s32.totalorder %s327, %s328
      %p340 = scmp.eq.s32.totalorder %s103, 1
      %p341 = por %p339, %p340
      %p343 = scmp.ne.s32.totalorder %s328, %s342
      %p344 = scmp.eq.s32.totalorder %s103, 0
      %p345 = por %p343, %p344
      %s347 = sadd.s32 %s346, 1
      %p350 = scmp.eq.s32.totalorder %s97, 1
      %p351 = scmp.ne.s32.totalorder %s346, %s348
      %p352 = scmp.eq.s32.totalorder %s97, 0
      %p353 = por %p351, %p352
      %p354 = scmp.ne.s32.totalorder %s346, %s348
      %p355 = scmp.eq.s32.totalorder %s102, 1
      %p356 = por %p354, %p355
      %p357 = scmp.ne.s32.totalorder %s348, %s349
      %p358 = scmp.eq.s32.totalorder %s102, 0
      %p359 = por %p357, %p358
      %p360 = scmp.ne.s32.totalorder %s348, %s349
      %p361 = scmp.eq.s32.totalorder %s103, 1
      %p362 = por %p360, %p361
      %p364 = scmp.ne.s32.totalorder %s349, %s363
      %p365 = scmp.eq.s32.totalorder %s103, 0
      %p366 = por %p364, %p365
      %s368 = sadd.s32 %s367, 1
      %p371 = scmp.eq.s32.totalorder %s97, 1
      %p372 = scmp.ne.s32.totalorder %s367, %s369
      %p373 = scmp.eq.s32.totalorder %s97, 0
      %p374 = por %p372, %p373
      %p375 = scmp.ne.s32.totalorder %s367, %s369
      %p376 = scmp.eq.s32.totalorder %s102, 1
      %p377 = por %p375, %p376
      %p378 = scmp.ne.s32.totalorder %s369, %s370
      %p379 = scmp.eq.s32.totalorder %s102, 0
      %p380 = por %p378, %p379
      %p381 = scmp.ne.s32.totalorder %s369, %s370
      %p382 = scmp.eq.s32.totalorder %s103, 1
      %p383 = por %p381, %p382
      %p385 = scmp.ne.s32.totalorder %s370, %s384
      %p386 = scmp.eq.s32.totalorder %s103, 0
      %p387 = por %p385, %p386
      %s389 = sadd.s32 %s388, 1
      %p392 = scmp.eq.s32.totalorder %s97, 1
      %p393 = scmp.ne.s32.totalorder %s388, %s390
      %p394 = scmp.eq.s32.totalorder %s97, 0
      %p395 = por %p393, %p394
      %p396 = scmp.ne.s32.totalorder %s388, %s390
      %p397 = scmp.eq.s32.totalorder %s102, 1
      %p398 = por %p396, %p397
      %p399 = scmp.ne.s32.totalorder %s390, %s391
      %p400 = scmp.eq.s32.totalorder %s102, 0
      %p401 = por %p399, %p400
      %p402 = scmp.ne.s32.totalorder %s390, %s391
      %p403 = scmp.eq.s32.totalorder %s103, 1
      %p404 = por %p402, %p403
      %p406 = scmp.ne.s32.totalorder %s391, %s405
      %p407 = scmp.eq.s32.totalorder %s103, 0
      %p408 = por %p406, %p407
      %s410 = sadd.s32 %s409, 1
      %p413 = scmp.eq.s32.totalorder %s97, 1
      %p414 = scmp.ne.s32.totalorder %s409, %s411
      %p415 = scmp.eq.s32.totalorder %s97, 0
      %p416 = por %p414, %p415
      %p417 = scmp.ne.s32.totalorder %s409, %s411
      %p418 = scmp.eq.s32.totalorder %s102, 1
      %p419 = por %p417, %p418
      %p420 = scmp.ne.s32.totalorder %s411, %s412
      %p421 = scmp.eq.s32.totalorder %s102, 0
      %p422 = por %p420, %p421
      %p423 = scmp.ne.s32.totalorder %s411, %s412
      %p424 = scmp.eq.s32.totalorder %s103, 1
      %p425 = por %p423, %p424
      %p427 = scmp.ne.s32.totalorder %s412, %s426
      %p428 = scmp.eq.s32.totalorder %s103, 0
      %p429 = por %p427, %p428
      %s431 = sadd.s32 %s430, 1
      %p434 = scmp.eq.s32.totalorder %s97, 1
      %p435 = scmp.ne.s32.totalorder %s430, %s432
      %p436 = scmp.eq.s32.totalorder %s97, 0
      %p437 = por %p435, %p436
      %p438 = scmp.ne.s32.totalorder %s430, %s432
      %p439 = scmp.eq.s32.totalorder %s102, 1
      %p440 = por %p438, %p439
      %p441 = scmp.ne.s32.totalorder %s432, %s433
      %p442 = scmp.eq.s32.totalorder %s102, 0
      %p443 = por %p441, %p442
      %p444 = scmp.ne.s32.totalorder %s432, %s433
      %p445 = scmp.eq.s32.totalorder %s103, 1
      %p446 = por %p444, %p445
      %p448 = scmp.ne.s32.totalorder %s433, %s447
      %p449 = scmp.eq.s32.totalorder %s103, 0
      %p450 = por %p448, %p449
      %s452 = sadd.s32 %s451, 1
      %p455 = scmp.eq.s32.totalorder %s97, 1
      %p456 = scmp.ne.s32.totalorder %s451, %s453
      %p457 = scmp.eq.s32.totalorder %s97, 0
      %p458 = por %p456, %p457
      %p459 = scmp.ne.s32.totalorder %s451, %s453
      %p460 = scmp.eq.s32.totalorder %s102, 1
      %p461 = por %p459, %p460
      %p462 = scmp.ne.s32.totalorder %s453, %s454
      %p463 = scmp.eq.s32.totalorder %s102, 0
      %p464 = por %p462, %p463
      %p465 = scmp.ne.s32.totalorder %s453, %s454
      %p466 = scmp.eq.s32.totalorder %s103, 1
      %p467 = por %p465, %p466
      %p469 = scmp.ne.s32.totalorder %s454, %s468
      %p470 = scmp.eq.s32.totalorder %s103, 0
      %p471 = por %p469, %p470
      %s473 = sadd.s32 %s472, 1
      %p476 = scmp.eq.s32.totalorder %s97, 1
      %p477 = scmp.ne.s32.totalorder %s472, %s474
      %p478 = scmp.eq.s32.totalorder %s97, 0
      %p479 = por %p477, %p478
      %p480 = scmp.ne.s32.totalorder %s472, %s474
      %p481 = scmp.eq.s32.totalorder %s102, 1
      %p482 = por %p480, %p481
      %p483 = scmp.ne.s32.totalorder %s474, %s475
      %p484 = scmp.eq.s32.totalorder %s102, 0
      %p485 = por %p483, %p484
      %p486 = scmp.ne.s32.totalorder %s474, %s475
      %p487 = scmp.eq.s32.totalorder %s103, 1
      %p488 = por %p486, %p487
      %p490 = scmp.ne.s32.totalorder %s475, %s489
      %p491 = scmp.eq.s32.totalorder %s103, 0
      %p492 = por %p490, %p491
      %s494 = sadd.s32 %s493, 1
      %p497 = scmp.eq.s32.totalorder %s97, 1
      %p498 = scmp.ne.s32.totalorder %s493, %s495
      %p499 = scmp.eq.s32.totalorder %s97, 0
      %p500 = por %p498, %p499
      %p501 = scmp.ne.s32.totalorder %s493, %s495
      %p502 = scmp.eq.s32.totalorder %s102, 1
      %p503 = por %p501, %p502
      %p504 = scmp.ne.s32.totalorder %s495, %s496
      %p505 = scmp.eq.s32.totalorder %s102, 0
      %p506 = por %p504, %p505
      %p507 = scmp.ne.s32.totalorder %s495, %s496
      %p508 = scmp.eq.s32.totalorder %s103, 1
      %p509 = por %p507, %p508
      %p511 = scmp.ne.s32.totalorder %s496, %s510
      %p512 = scmp.eq.s32.totalorder %s103, 0
      %p513 = por %p511, %p512
      %s515 = sadd.s32 %s514, 1
      %p518 = scmp.eq.s32.totalorder %s97, 1
      %p519 = scmp.ne.s32.totalorder %s514, %s516
      %p520 = scmp.eq.s32.totalorder %s97, 0
      %p521 = por %p519, %p520
      %p522 = scmp.ne.s32.totalorder %s514, %s516
      %p523 = scmp.eq.s32.totalorder %s102, 1
      %p524 = por %p522, %p523
      %p525 = scmp.ne.s32.totalorder %s516, %s517
      %p526 = scmp.eq.s32.totalorder %s102, 0
      %p527 = por %p525, %p526
      %p528 = scmp.ne.s32.totalorder %s516, %s517
      %p529 = scmp.eq.s32.totalorder %s103, 1
      %p530 = por %p528, %p529
      %p532 = scmp.ne.s32.totalorder %s517, %s531
      %p533 = scmp.eq.s32.totalorder %s103, 0
      %p534 = por %p532, %p533
      %s536 = sadd.s32 %s535, 1
      %p539 = scmp.eq.s32.totalorder %s97, 1
      %p540 = scmp.ne.s32.totalorder %s535, %s537
      %p541 = scmp.eq.s32.totalorder %s97, 0
      %p542 = por %p540, %p541
      %p543 = scmp.ne.s32.totalorder %s535, %s537
      %p544 = scmp.eq.s32.totalorder %s102, 1
      %p545 = por %p543, %p544
      %p546 = scmp.ne.s32.totalorder %s537, %s538
      %p547 = scmp.eq.s32.totalorder %s102, 0
      %p548 = por %p546, %p547
      %p549 = scmp.ne.s32.totalorder %s537, %s538
      %p550 = scmp.eq.s32.totalorder %s103, 1
      %p551 = por %p549, %p550
      %p553 = scmp.ne.s32.totalorder %s538, %s552
      %p554 = scmp.eq.s32.totalorder %s103, 0
      %p555 = por %p553, %p554
      %s557 = sadd.s32 %s556, 1
      %p560 = scmp.eq.s32.totalorder %s97, 1
      %p561 = scmp.ne.s32.totalorder %s556, %s558
      %p562 = scmp.eq.s32.totalorder %s97, 0
      %p563 = por %p561, %p562
      %p564 = scmp.ne.s32.totalorder %s556, %s558
      %p565 = scmp.eq.s32.totalorder %s102, 1
      %p566 = por %p564, %p565
      %p567 = scmp.ne.s32.totalorder %s558, %s559
      %p568 = scmp.eq.s32.totalorder %s102, 0
      %p569 = por %p567, %p568
      %p570 = scmp.ne.s32.totalorder %s558, %s559
      %p571 = scmp.eq.s32.totalorder %s103, 1
      %p572 = por %p570, %p571
      %p574 = scmp.ne.s32.totalorder %s559, %s573
      %p575 = scmp.eq.s32.totalorder %s103, 0
      %p576 = por %p574, %p575
      %s578 = sadd.s32 %s577, 1
      %p581 = scmp.eq.s32.totalorder %s97, 1
      %p582 = scmp.ne.s32.totalorder %s577, %s579
      %p583 = scmp.eq.s32.totalorder %s97, 0
      %p584 = por %p582, %p583
      %p585 = scmp.ne.s32.totalorder %s577, %s579
      %p586 = scmp.eq.s32.totalorder %s102, 1
      %p587 = por %p585, %p586
      %p588 = scmp.ne.s32.totalorder %s579, %s580
      %p589 = scmp.eq.s32.totalorder %s102, 0
      %p590 = por %p588, %p589
      %p591 = scmp.ne.s32.totalorder %s579, %s580
      %p592 = scmp.eq.s32.totalorder %s103, 1
      %p593 = por %p591, %p592
      %p595 = scmp.ne.s32.totalorder %s580, %s594
      %p596 = scmp.eq.s32.totalorder %s103, 0
      %p597 = por %p595, %p596
      %s599 = sadd.s32 %s598, 1
      %p602 = scmp.eq.s32.totalorder %s97, 1
      %p603 = scmp.ne.s32.totalorder %s598, %s600
      %p604 = scmp.eq.s32.totalorder %s97, 0
      %p605 = por %p603, %p604
      %p606 = scmp.ne.s32.totalorder %s598, %s600
      %p607 = scmp.eq.s32.totalorder %s102, 1
      %p608 = por %p606, %p607
      %p609 = scmp.ne.s32.totalorder %s600, %s601
      %p610 = scmp.eq.s32.totalorder %s102, 0
      %p611 = por %p609, %p610
      %p612 = scmp.ne.s32.totalorder %s600, %s601
      %p613 = scmp.eq.s32.totalorder %s103, 1
      %p614 = por %p612, %p613
      %p616 = scmp.ne.s32.totalorder %s601, %s615
      %p617 = scmp.eq.s32.totalorder %s103, 0
      %p618 = por %p616, %p617
      %s620 = sadd.s32 %s619, 1
      %p623 = scmp.eq.s32.totalorder %s97, 1
      %p624 = scmp.ne.s32.totalorder %s619, %s621
      %p625 = scmp.eq.s32.totalorder %s97, 0
      %p626 = por %p624, %p625
      %p627 = scmp.ne.s32.totalorder %s619, %s621
      %p628 = scmp.eq.s32.totalorder %s102, 1
      %p629 = por %p627, %p628
      %p630 = scmp.ne.s32.totalorder %s621, %s622
      %p631 = scmp.eq.s32.totalorder %s102, 0
      %p632 = por %p630, %p631
      %p633 = scmp.ne.s32.totalorder %s621, %s622
      %p634 = scmp.eq.s32.totalorder %s103, 1
      %p635 = por %p633, %p634
      %p637 = scmp.ne.s32.totalorder %s622, %s636
      %p638 = scmp.eq.s32.totalorder %s103, 0
      %p639 = por %p637, %p638
      %s641 = sadd.s32 %s640, 1
      %p644 = scmp.eq.s32.totalorder %s97, 1
      %p645 = scmp.ne.s32.totalorder %s640, %s642
      %p646 = scmp.eq.s32.totalorder %s97, 0
      %p647 = por %p645, %p646
      %p648 = scmp.ne.s32.totalorder %s640, %s642
      %p649 = scmp.eq.s32.totalorder %s102, 1
      %p650 = por %p648, %p649
      %p651 = scmp.ne.s32.totalorder %s642, %s643
      %p652 = scmp.eq.s32.totalorder %s102, 0
      %p653 = por %p651, %p652
      %p654 = scmp.ne.s32.totalorder %s642, %s643
      %p655 = scmp.eq.s32.totalorder %s103, 1
      %p656 = por %p654, %p655
      %p658 = scmp.ne.s32.totalorder %s643, %s657
      %p659 = scmp.eq.s32.totalorder %s103, 0
      %p660 = por %p658, %p659
      %s662 = sadd.s32 %s661, 1
      %p665 = scmp.eq.s32.totalorder %s97, 1
      %p666 = scmp.ne.s32.totalorder %s661, %s663
      %p667 = scmp.eq.s32.totalorder %s97, 0
      %p668 = por %p666, %p667
      %p669 = scmp.ne.s32.totalorder %s661, %s663
      %p670 = scmp.eq.s32.totalorder %s102, 1
      %p671 = por %p669, %p670
      %p672 = scmp.ne.s32.totalorder %s663, %s664
      %p673 = scmp.eq.s32.totalorder %s102, 0
      %p674 = por %p672, %p673
      %p675 = scmp.ne.s32.totalorder %s663, %s664
      %p676 = scmp.eq.s32.totalorder %s103, 1
      %p677 = por %p675, %p676
      %p679 = scmp.ne.s32.totalorder %s664, %s678
      %p680 = scmp.eq.s32.totalorder %s103, 0
      %p681 = por %p679, %p680
      %s683 = sadd.s32 %s682, 1
      %p686 = scmp.eq.s32.totalorder %s97, 1
      %p687 = scmp.ne.s32.totalorder %s682, %s684
      %p688 = scmp.eq.s32.totalorder %s97, 0
      %p689 = por %p687, %p688
      %p690 = scmp.ne.s32.totalorder %s682, %s684
      %p691 = scmp.eq.s32.totalorder %s102, 1
      %p692 = por %p690, %p691
      %p693 = scmp.ne.s32.totalorder %s684, %s685
      %p694 = scmp.eq.s32.totalorder %s102, 0
      %p695 = por %p693, %p694
      %p696 = scmp.ne.s32.totalorder %s684, %s685
      %p697 = scmp.eq.s32.totalorder %s103, 1
      %p698 = por %p696, %p697
      %p700 = scmp.ne.s32.totalorder %s685, %s699
      %p701 = scmp.eq.s32.totalorder %s103, 0
      %p702 = por %p700, %p701
      %s704 = sadd.s32 %s703, 1
      %p707 = scmp.eq.s32.totalorder %s97, 1
      %p708 = scmp.ne.s32.totalorder %s703, %s705
      %p709 = scmp.eq.s32.totalorder %s97, 0
      %p710 = por %p708, %p709
      %p711 = scmp.ne.s32.totalorder %s703, %s705
      %p712 = scmp.eq.s32.totalorder %s102, 1
      %p713 = por %p711, %p712
      %p714 = scmp.ne.s32.totalorder %s705, %s706
      %p715 = scmp.eq.s32.totalorder %s102, 0
      %p716 = por %p714, %p715
      %p717 = scmp.ne.s32.totalorder %s705, %s706
      %p718 = scmp.eq.s32.totalorder %s103, 1
      %p719 = por %p717, %p718
      %p721 = scmp.ne.s32.totalorder %s706, %s720
      %p722 = scmp.eq.s32.totalorder %s103, 0
      %p723 = por %p721, %p722
      %s725 = sadd.s32 %s724, 1
      %p728 = scmp.eq.s32.totalorder %s97, 1
      %p729 = scmp.ne.s32.totalorder %s724, %s726
      %p730 = scmp.eq.s32.totalorder %s97, 0
      %p731 = por %p729, %p730
      %p732 = scmp.ne.s32.totalorder %s724, %s726
      %p733 = scmp.eq.s32.totalorder %s102, 1
      %p734 = por %p732, %p733
      %p735 = scmp.ne.s32.totalorder %s726, %s727
      %p736 = scmp.eq.s32.totalorder %s102, 0
      %p737 = por %p735, %p736
      %p738 = scmp.ne.s32.totalorder %s726, %s727
      %p739 = scmp.eq.s32.totalorder %s103, 1
      %p740 = por %p738, %p739
      %p742 = scmp.ne.s32.totalorder %s727, %s741
      %p743 = scmp.eq.s32.totalorder %s103, 0
      %p744 = por %p742, %p743
      %s746 = sadd.s32 %s745, 1
      %p749 = scmp.eq.s32.totalorder %s97, 1
      %p750 = scmp.ne.s32.totalorder %s745, %s747
      %p751 = scmp.eq.s32.totalorder %s97, 0
      %p752 = por %p750, %p751
      %p753 = scmp.ne.s32.totalorder %s745, %s747
      %p754 = scmp.eq.s32.totalorder %s102, 1
      %p755 = por %p753, %p754
      %p756 = scmp.ne.s32.totalorder %s747, %s748
      %p757 = scmp.eq.s32.totalorder %s102, 0
      %p758 = por %p756, %p757
      %p759 = scmp.ne.s32.totalorder %s747, %s748
      %p760 = scmp.eq.s32.totalorder %s103, 1
      %p761 = por %p759, %p760
      %p763 = scmp.ne.s32.totalorder %s748, %s762
      %p764 = scmp.eq.s32.totalorder %s103, 0
      %p765 = por %p763, %p764
      %s767 = sadd.s32 %s766, 1
      %p770 = scmp.eq.s32.totalorder %s97, 1
      %p771 = scmp.ne.s32.totalorder %s766, %s768
      %p772 = scmp.eq.s32.totalorder %s97, 0
      %p773 = por %p771, %p772
      %p774 = scmp.ne.s32.totalorder %s766, %s768
      %p775 = scmp.eq.s32.totalorder %s102, 1
      %p776 = por %p774, %p775
      %p777 = scmp.ne.s32.totalorder %s768, %s769
      %p778 = scmp.eq.s32.totalorder %s102, 0
      %p779 = por %p777, %p778
      %p780 = scmp.ne.s32.totalorder %s768, %s769
      %p781 = scmp.eq.s32.totalorder %s103, 1
      %p782 = por %p780, %p781
      %p784 = scmp.ne.s32.totalorder %s769, %s783
      %p785 = scmp.eq.s32.totalorder %s103, 0
      %p786 = por %p784, %p785
      %s788 = sadd.s32 %s787, 1
      %p791 = scmp.eq.s32.totalorder %s97, 1
      %p792 = scmp.ne.s32.totalorder %s787, %s789
      %p793 = scmp.eq.s32.totalorder %s97, 0
      %p794 = por %p792, %p793
      %p795 = scmp.ne.s32.totalorder %s787, %s789
      %p796 = scmp.eq.s32.totalorder %s102, 1
      %p797 = por %p795, %p796
      %p798 = scmp.ne.s32.totalorder %s789, %s790
      %p799 = scmp.eq.s32.totalorder %s102, 0
      %p800 = por %p798, %p799
      %p801 = scmp.ne.s32.totalorder %s789, %s790
      %p802 = scmp.eq.s32.totalorder %s103, 1
      %p803 = por %p801, %p802
      %p805 = scmp.ne.s32.totalorder %s790, %s804
      %p806 = scmp.eq.s32.totalorder %s103, 0
      %p807 = por %p805, %p806
      %s809 = sadd.s32 %s808, 1
      %p812 = scmp.eq.s32.totalorder %s97, 1
      %p813 = scmp.ne.s32.totalorder %s808, %s810
      %p814 = scmp.eq.s32.totalorder %s97, 0
      %p815 = por %p813, %p814
      %p816 = scmp.ne.s32.totalorder %s808, %s810
      %p817 = scmp.eq.s32.totalorder %s102, 1
      %p818 = por %p816, %p817
      %p819 = scmp.ne.s32.totalorder %s810, %s811
      %p820 = scmp.eq.s32.totalorder %s102, 0
      %p821 = por %p819, %p820
      %p822 = scmp.ne.s32.totalorder %s810, %s811
      %p823 = scmp.eq.s32.totalorder %s103, 1
      %p824 = por %p822, %p823
      %p826 = scmp.ne.s32.totalorder %s811, %s825
      %p827 = scmp.eq.s32.totalorder %s103, 0
      %p828 = por %p826, %p827
      %s829 = ssub.s32 %s97, %s104
      %p830 = scmp.eq.s32.totalorder %s829, 0
      %s832 = sadd.s32 %s831, 1
      %s833 = scalar_select %p830, %s831, %s832
      %p836 = pneg %p830
      %p837 = scmp.eq.s32.totalorder %s97, 1
      %p838 = por %p836, %p837
      %p839 = scmp.ne.s32.totalorder %s831, %s834
      %p840 = scmp.eq.s32.totalorder %s97, 0
      %p841 = por %p839, %p840
      %p842 = scmp.ne.s32.totalorder %s831, %s834
      %p843 = scmp.eq.s32.totalorder %s102, 1
      %p844 = por %p842, %p843
      %p845 = scmp.ne.s32.totalorder %s834, %s835
      %p846 = scmp.eq.s32.totalorder %s102, 0
      %p847 = por %p845, %p846
      %p848 = scmp.ne.s32.totalorder %s834, %s835
      %p849 = scmp.eq.s32.totalorder %s103, 1
      %p850 = por %p848, %p849
      %p852 = scmp.ne.s32.totalorder %s835, %s851
      %p853 = scmp.eq.s32.totalorder %s103, 0
      %p854 = por %p852, %p853
      %s855 = ssub.s32 %s97, %s104
      %p856 = scmp.eq.s32.totalorder %s855, 0
      %s858 = sadd.s32 %s857, 1
      %s859 = scalar_select %p856, %s857, %s858
      %p862 = pneg %p856
      %p863 = scmp.eq.s32.totalorder %s97, 1
      %p864 = por %p862, %p863
      %p865 = scmp.ne.s32.totalorder %s857, %s860
      %p866 = scmp.eq.s32.totalorder %s97, 0
      %p867 = por %p865, %p866
      %p868 = scmp.ne.s32.totalorder %s857, %s860
      %p869 = scmp.eq.s32.totalorder %s102, 1
      %p870 = por %p868, %p869
      %p871 = scmp.ne.s32.totalorder %s860, %s861
      %p872 = scmp.eq.s32.totalorder %s102, 0
      %p873 = por %p871, %p872
      %p874 = scmp.ne.s32.totalorder %s860, %s861
      %p875 = scmp.eq.s32.totalorder %s103, 1
      %p876 = por %p874, %p875
      %p878 = scmp.ne.s32.totalorder %s861, %s877
      %p879 = scmp.eq.s32.totalorder %s103, 0
      %p880 = por %p878, %p879
      %p881 = scmp.le.s32.totalorder 1, %s97
      %p882 = scmp.lt.s32.totalorder %s97, 3
      %p883 = pnand %p881, %p882
      %p884 = pneg %p883
      // Predicated region
      $region9: #{gcn_xyzr_forward.1} parent=5 // pred_check
        _
      $region10: #{gcn_xyzr_forward.1} parent=5 // pred_check_branch
        %886 = sbr.rel (%p883) target = $region12
      $region11: #{gcn_xyzr_forward.1} parent=5 // pred_region
        %s887 = ssub.s32 %s97, 1
        // Predicated region
        $region13: #{gcn_xyzr_forward.1} parent=11 // pred_check
          %p888 = pneg %p170
        $region14: #{gcn_xyzr_forward.1} parent=11 // pred_check_branch
          %890 = sbr.rel (%p888) target = $region16
        $region15: #{gcn_xyzr_forward.1} parent=11 // pred_region
          %s892 = ssub.s32 256, 256
          %893 = vsyncadd [#allocation3], %s892
          %s894 = sshll.u32 [#allocation2], 4
          %s895 = int_to_ptr.vmem [resolvable:$true] %s894
          %900 = dma.hbm_to_vmem [thread:$0]  %s5, 256, %s895, [#allocation3], 128, 128, 8
        $region16: #{gcn_xyzr_forward.1} parent=11 // pred_fallthru
          _
        // Predicated region
        $region17: #{gcn_xyzr_forward.1} parent=11 // pred_check
          %p901 = pneg %p191
        $region18: #{gcn_xyzr_forward.1} parent=11 // pred_check_branch
          %903 = sbr.rel (%p901) target = $region20
        $region19: #{gcn_xyzr_forward.1} parent=11 // pred_region
          %s905 = ssub.s32 384, 384
          %906 = vsyncadd [#allocation6], %s905
          %s907 = sshll.u32 [#allocation5], 4
          %s908 = int_to_ptr.vmem [resolvable:$true] %s907
          %913 = dma.hbm_to_vmem [thread:$0]  %s7, 384, %s908, [#allocation6], 128, 128, 8
        $region20: #{gcn_xyzr_forward.1} parent=11 // pred_fallthru
          _
        // Predicated region
        $region21: #{gcn_xyzr_forward.1} parent=11 // pred_check
          %p914 = pneg %p212
        $region22: #{gcn_xyzr_forward.1} parent=11 // pred_check_branch
          %916 = sbr.rel (%p914) target = $region24
        $region23: #{gcn_xyzr_forward.1} parent=11 // pred_region
          %s918 = ssub.s32 384, 384
          %919 = vsyncadd [#allocation6], %s918
          %s920 = sshll.u32 [#allocation7], 4
          %s921 = int_to_ptr.vmem [resolvable:$true] %s920
          %926 = dma.hbm_to_vmem [thread:$0]  %s9, 384, %s921, [#allocation6], 128, 128, 8
        $region24: #{gcn_xyzr_forward.1} parent=11 // pred_fallthru
          _
        // Predicated region
        $region25: #{gcn_xyzr_forward.1} parent=11 // pred_check
          %p927 = pneg %p233
        $region26: #{gcn_xyzr_forward.1} parent=11 // pred_check_branch
          %929 = sbr.rel (%p927) target = $region28
        $region27: #{gcn_xyzr_forward.1} parent=11 // pred_region
          %s931 = ssub.s32 384, 384
          %932 = vsyncadd [#allocation9], %s931
          %s933 = sshll.u32 [#allocation8], 4
          %s934 = int_to_ptr.vmem [resolvable:$true] %s933
          %939 = dma.hbm_to_vmem [thread:$0]  %s11, 384, %s934, [#allocation9], 128, 128, 8
        $region28: #{gcn_xyzr_forward.1} parent=11 // pred_fallthru
          _
        // Predicated region
        $region29: #{gcn_xyzr_forward.1} parent=11 // pred_check
          %p940 = pneg %p254
        $region30: #{gcn_xyzr_forward.1} parent=11 // pred_check_branch
          %942 = sbr.rel (%p940) target = $region32
        $region31: #{gcn_xyzr_forward.1} parent=11 // pred_region
          %s944 = ssub.s32 512, 512
          %945 = vsyncadd [#allocation9], %s944
          %s946 = sshll.u32 [#allocation10], 4
          %s947 = int_to_ptr.vmem [resolvable:$true] %s946
          %952 = dma.hbm_to_vmem [thread:$0]  %s13, 512, %s947, [#allocation9], 128, 128, 8
        $region32: #{gcn_xyzr_forward.1} parent=11 // pred_fallthru
          _
        // Predicated region
        $region33: #{gcn_xyzr_forward.1} parent=11 // pred_check
          %p953 = pneg %p275
        $region34: #{gcn_xyzr_forward.1} parent=11 // pred_check_branch
          %955 = sbr.rel (%p953) target = $region36
        $region35: #{gcn_xyzr_forward.1} parent=11 // pred_region
          %s957 = ssub.s32 384, 384
          %958 = vsyncadd [#allocation12], %s957
          %s959 = sshll.u32 [#allocation11], 4
          %s960 = int_to_ptr.vmem [resolvable:$true] %s959
          %965 = dma.hbm_to_vmem [thread:$0]  %s15, 384, %s960, [#allocation12], 128, 128, 8
        $region36: #{gcn_xyzr_forward.1} parent=11 // pred_fallthru
          _
        // Predicated region
        $region37: #{gcn_xyzr_forward.1} parent=11 // pred_check
          %p966 = pneg %p296
        $region38: #{gcn_xyzr_forward.1} parent=11 // pred_check_branch
          %968 = sbr.rel (%p966) target = $region40
        $region39: #{gcn_xyzr_forward.1} parent=11 // pred_region
          %s970 = ssub.s32 384, 384
          %971 = vsyncadd [#allocation12], %s970
          %s972 = sshll.u32 [#allocation13], 4
          %s973 = int_to_ptr.vmem [resolvable:$true] %s972
          %978 = dma.hbm_to_vmem [thread:$0]  %s17, 384, %s973, [#allocation12], 128, 128, 8
        $region40: #{gcn_xyzr_forward.1} parent=11 // pred_fallthru
          _
        // Predicated region
        $region41: #{gcn_xyzr_forward.1} parent=11 // pred_check
          %p979 = pneg %p317
        $region42: #{gcn_xyzr_forward.1} parent=11 // pred_check_branch
          %981 = sbr.rel (%p979) target = $region44
        $region43: #{gcn_xyzr_forward.1} parent=11 // pred_region
          %s983 = ssub.s32 384, 384
          %984 = vsyncadd [#allocation15], %s983
          %s985 = sshll.u32 [#allocation14], 4
          %s986 = int_to_ptr.vmem [resolvable:$true] %s985
          %991 = dma.hbm_to_vmem [thread:$0]  %s19, 384, %s986, [#allocation15], 128, 128, 8
        $region44: #{gcn_xyzr_forward.1} parent=11 // pred_fallthru
          _
        // Predicated region
        $region45: #{gcn_xyzr_forward.1} parent=11 // pred_check
          %p992 = pneg %p338
        $region46: #{gcn_xyzr_forward.1} parent=11 // pred_check_branch
          %994 = sbr.rel (%p992) target = $region48
        $region47: #{gcn_xyzr_forward.1} parent=11 // pred_region
          %s996 = ssub.s32 512, 512
          %997 = vsyncadd [#allocation15], %s996
          %s998 = sshll.u32 [#allocation16], 4
          %s999 = int_to_ptr.vmem [resolvable:$true] %s998
          %1004 = dma.hbm_to_vmem [thread:$0]  %s21, 512, %s999, [#allocation15], 128, 128, 8
        $region48: #{gcn_xyzr_forward.1} parent=11 // pred_fallthru
          _
        // Predicated region
        $region49: #{gcn_xyzr_forward.1} parent=11 // pred_check
          %p1005 = pneg %p359
        $region50: #{gcn_xyzr_forward.1} parent=11 // pred_check_branch
          %1007 = sbr.rel (%p1005) target = $region52
        $region51: #{gcn_xyzr_forward.1} parent=11 // pred_region
          %s1009 = ssub.s32 384, 384
          %1010 = vsyncadd [#allocation18], %s1009
          %s1011 = sshll.u32 [#allocation17], 4
          %s1012 = int_to_ptr.vmem [resolvable:$true] %s1011
          %1017 = dma.hbm_to_vmem [thread:$0]  %s23, 384, %s1012, [#allocation18], 128, 128, 8
        $region52: #{gcn_xyzr_forward.1} parent=11 // pred_fallthru
          _
        // Predicated region
        $region53: #{gcn_xyzr_forward.1} parent=11 // pred_check
          %p1018 = pneg %p380
        $region54: #{gcn_xyzr_forward.1} parent=11 // pred_check_branch
          %1020 = sbr.rel (%p1018) target = $region56
        $region55: #{gcn_xyzr_forward.1} parent=11 // pred_region
          %s1022 = ssub.s32 384, 384
          %1023 = vsyncadd [#allocation18], %s1022
          %s1024 = sshll.u32 [#allocation19], 4
          %s1025 = int_to_ptr.vmem [resolvable:$true] %s1024
          %1030 = dma.hbm_to_vmem [thread:$0]  %s25, 384, %s1025, [#allocation18], 128, 128, 8
        $region56: #{gcn_xyzr_forward.1} parent=11 // pred_fallthru
          _
        // Predicated region
        $region57: #{gcn_xyzr_forward.1} parent=11 // pred_check
          %p1031 = pneg %p401
        $region58: #{gcn_xyzr_forward.1} parent=11 // pred_check_branch
          %1033 = sbr.rel (%p1031) target = $region60
        $region59: #{gcn_xyzr_forward.1} parent=11 // pred_region
          %s1035 = ssub.s32 384, 384
          %1036 = vsyncadd [#allocation21], %s1035
          %s1037 = sshll.u32 [#allocation20], 4
          %s1038 = int_to_ptr.vmem [resolvable:$true] %s1037
          %1043 = dma.hbm_to_vmem [thread:$0]  %s27, 384, %s1038, [#allocation21], 128, 128, 8
        $region60: #{gcn_xyzr_forward.1} parent=11 // pred_fallthru
          _
        // Predicated region
        $region61: #{gcn_xyzr_forward.1} parent=11 // pred_check
          %p1044 = pneg %p422
        $region62: #{gcn_xyzr_forward.1} parent=11 // pred_check_branch
          %1046 = sbr.rel (%p1044) target = $region64
        $region63: #{gcn_xyzr_forward.1} parent=11 // pred_region
          _
        $region64: #{gcn_xyzr_forward.1} parent=11 // pred_fallthru
          _
        // Predicated region
        $region65: #{gcn_xyzr_forward.1} parent=11 // pred_check
          %p1047 = pneg %p443
        $region66: #{gcn_xyzr_forward.1} parent=11 // pred_check_branch
          %1049 = sbr.rel (%p1047) target = $region68
        $region67: #{gcn_xyzr_forward.1} parent=11 // pred_region
          _
        $region68: #{gcn_xyzr_forward.1} parent=11 // pred_fallthru
          _
        // Predicated region
        $region69: #{gcn_xyzr_forward.1} parent=11 // pred_check
          %p1050 = pneg %p464
        $region70: #{gcn_xyzr_forward.1} parent=11 // pred_check_branch
          %1052 = sbr.rel (%p1050) target = $region72
        $region71: #{gcn_xyzr_forward.1} parent=11 // pred_region
          _
        $region72: #{gcn_xyzr_forward.1} parent=11 // pred_fallthru
          _
        // Predicated region
        $region73: #{gcn_xyzr_forward.1} parent=11 // pred_check
          %p1053 = pneg %p485
        $region74: #{gcn_xyzr_forward.1} parent=11 // pred_check_branch
          %1055 = sbr.rel (%p1053) target = $region76
        $region75: #{gcn_xyzr_forward.1} parent=11 // pred_region
          %s1057 = ssub.s32 16, 16
          %1058 = vsyncadd [#allocation21], %s1057
          %s1060 = sshll.u32 [#allocation22], 4
          %s1061 = int_to_ptr.vmem [resolvable:$true] %s1060
          %1063 = dma.hbm_to_vmem [thread:$0]  %s35, 16, %s1061, [#allocation21]
        $region76: #{gcn_xyzr_forward.1} parent=11 // pred_fallthru
          _
        // Predicated region
        $region77: #{gcn_xyzr_forward.1} parent=11 // pred_check
          %p1064 = pneg %p506
        $region78: #{gcn_xyzr_forward.1} parent=11 // pred_check_branch
          %1066 = sbr.rel (%p1064) target = $region80
        $region79: #{gcn_xyzr_forward.1} parent=11 // pred_region
          %s1068 = ssub.s32 256, 256
          %1069 = vsyncadd [#allocation24], %s1068
          %s1070 = sshll.u32 [#allocation23], 4
          %s1071 = int_to_ptr.vmem [resolvable:$true] %s1070
          %1076 = dma.hbm_to_vmem [thread:$0]  %s37, 256, %s1071, [#allocation24], 128, 128, 8
        $region80: #{gcn_xyzr_forward.1} parent=11 // pred_fallthru
          _
        // Predicated region
        $region81: #{gcn_xyzr_forward.1} parent=11 // pred_check
          %p1077 = pneg %p527
        $region82: #{gcn_xyzr_forward.1} parent=11 // pred_check_branch
          %1079 = sbr.rel (%p1077) target = $region84
        $region83: #{gcn_xyzr_forward.1} parent=11 // pred_region
          %s1081 = ssub.s32 512, 512
          %1082 = vsyncadd [#allocation24], %s1081
          %s1083 = sshll.u32 [#allocation25], 4
          %s1084 = int_to_ptr.vmem [resolvable:$true] %s1083
          %1089 = dma.hbm_to_vmem [thread:$0]  %s39, 512, %s1084, [#allocation24], 128, 128, 8
        $region84: #{gcn_xyzr_forward.1} parent=11 // pred_fallthru
          _
        // Predicated region
        $region85: #{gcn_xyzr_forward.1} parent=11 // pred_check
          %p1090 = pneg %p548
        $region86: #{gcn_xyzr_forward.1} parent=11 // pred_check_branch
          %1092 = sbr.rel (%p1090) target = $region88
        $region87: #{gcn_xyzr_forward.1} parent=11 // pred_region
          %s1094 = ssub.s32 512, 512
          %1095 = vsyncadd [#allocation27], %s1094
          %s1096 = sshll.u32 [#allocation26], 4
          %s1097 = int_to_ptr.vmem [resolvable:$true] %s1096
          %1102 = dma.hbm_to_vmem [thread:$0]  %s41, 512, %s1097, [#allocation27], 128, 128, 8
        $region88: #{gcn_xyzr_forward.1} parent=11 // pred_fallthru
          _
        // Predicated region
        $region89: #{gcn_xyzr_forward.1} parent=11 // pred_check
          %p1103 = pneg %p569
        $region90: #{gcn_xyzr_forward.1} parent=11 // pred_check_branch
          %1105 = sbr.rel (%p1103) target = $region92
        $region91: #{gcn_xyzr_forward.1} parent=11 // pred_region
          %s1107 = ssub.s32 512, 512
          %1108 = vsyncadd [#allocation27], %s1107
          %s1109 = sshll.u32 [#allocation28], 4
          %s1110 = int_to_ptr.vmem [resolvable:$true] %s1109
          %1115 = dma.hbm_to_vmem [thread:$0]  %s43, 512, %s1110, [#allocation27], 128, 128, 8
        $region92: #{gcn_xyzr_forward.1} parent=11 // pred_fallthru
          _
        // Predicated region
        $region93: #{gcn_xyzr_forward.1} parent=11 // pred_check
          %p1116 = pneg %p590
        $region94: #{gcn_xyzr_forward.1} parent=11 // pred_check_branch
          %1118 = sbr.rel (%p1116) target = $region96
        $region95: #{gcn_xyzr_forward.1} parent=11 // pred_region
          _
        $region96: #{gcn_xyzr_forward.1} parent=11 // pred_fallthru
          _
        // Predicated region
        $region97: #{gcn_xyzr_forward.1} parent=11 // pred_check
          %p1119 = pneg %p611
        $region98: #{gcn_xyzr_forward.1} parent=11 // pred_check_branch
          %1121 = sbr.rel (%p1119) target = $region100
        $region99: #{gcn_xyzr_forward.1} parent=11 // pred_region
          %s1123 = ssub.s32 512, 512
          %1124 = vsyncadd [#allocation30], %s1123
          %s1125 = sshll.u32 [#allocation29], 4
          %s1126 = int_to_ptr.vmem [resolvable:$true] %s1125
          %1131 = dma.hbm_to_vmem [thread:$0]  %s47, 512, %s1126, [#allocation30], 128, 128, 8
        $region100: #{gcn_xyzr_forward.1} parent=11 // pred_fallthru
          _
        // Predicated region
        $region101: #{gcn_xyzr_forward.1} parent=11 // pred_check
          %p1132 = pneg %p632
        $region102: #{gcn_xyzr_forward.1} parent=11 // pred_check_branch
          %1134 = sbr.rel (%p1132) target = $region104
        $region103: #{gcn_xyzr_forward.1} parent=11 // pred_region
          %s1136 = ssub.s32 512, 512
          %1137 = vsyncadd [#allocation30], %s1136
          %s1138 = sshll.u32 [#allocation31], 4
          %s1139 = int_to_ptr.vmem [resolvable:$true] %s1138
          %1144 = dma.hbm_to_vmem [thread:$0]  %s49, 512, %s1139, [#allocation30], 128, 128, 8
        $region104: #{gcn_xyzr_forward.1} parent=11 // pred_fallthru
          _
        // Predicated region
        $region105: #{gcn_xyzr_forward.1} parent=11 // pred_check
          %p1145 = pneg %p653
        $region106: #{gcn_xyzr_forward.1} parent=11 // pred_check_branch
          %1147 = sbr.rel (%p1145) target = $region108
        $region107: #{gcn_xyzr_forward.1} parent=11 // pred_region
          %s1149 = ssub.s32 512, 512
          %1150 = vsyncadd [#allocation33], %s1149
          %s1151 = sshll.u32 [#allocation32], 4
          %s1152 = int_to_ptr.vmem [resolvable:$true] %s1151
          %1157 = dma.hbm_to_vmem [thread:$0]  %s51, 512, %s1152, [#allocation33], 128, 128, 8
        $region108: #{gcn_xyzr_forward.1} parent=11 // pred_fallthru
          _
        // Predicated region
        $region109: #{gcn_xyzr_forward.1} parent=11 // pred_check
          %p1158 = pneg %p674
        $region110: #{gcn_xyzr_forward.1} parent=11 // pred_check_branch
          %1160 = sbr.rel (%p1158) target = $region112
        $region111: #{gcn_xyzr_forward.1} parent=11 // pred_region
          %s1162 = ssub.s32 512, 512
          %1163 = vsyncadd [#allocation33], %s1162
          %s1164 = sshll.u32 [#allocation34], 4
          %s1165 = int_to_ptr.vmem [resolvable:$true] %s1164
          %1170 = dma.hbm_to_vmem [thread:$0]  %s53, 512, %s1165, [#allocation33], 128, 128, 8
        $region112: #{gcn_xyzr_forward.1} parent=11 // pred_fallthru
          _
        // Predicated region
        $region113: #{gcn_xyzr_forward.1} parent=11 // pred_check
          %p1171 = pneg %p695
        $region114: #{gcn_xyzr_forward.1} parent=11 // pred_check_branch
          %1173 = sbr.rel (%p1171) target = $region116
        $region115: #{gcn_xyzr_forward.1} parent=11 // pred_region
          %s1175 = ssub.s32 512, 512
          %1176 = vsyncadd [#allocation36], %s1175
          %s1177 = sshll.u32 [#allocation35], 4
          %s1178 = int_to_ptr.vmem [resolvable:$true] %s1177
          %1183 = dma.hbm_to_vmem [thread:$0]  %s55, 512, %s1178, [#allocation36], 128, 128, 8
        $region116: #{gcn_xyzr_forward.1} parent=11 // pred_fallthru
          _
        // Predicated region
        $region117: #{gcn_xyzr_forward.1} parent=11 // pred_check
          %p1184 = pneg %p716
        $region118: #{gcn_xyzr_forward.1} parent=11 // pred_check_branch
          %1186 = sbr.rel (%p1184) target = $region120
        $region119: #{gcn_xyzr_forward.1} parent=11 // pred_region
          %s1188 = ssub.s32 512, 512
          %1189 = vsyncadd [#allocation36], %s1188
          %s1190 = sshll.u32 [#allocation37], 4
          %s1191 = int_to_ptr.vmem [resolvable:$true] %s1190
          %1196 = dma.hbm_to_vmem [thread:$0]  %s57, 512, %s1191, [#allocation36], 128, 128, 8
        $region120: #{gcn_xyzr_forward.1} parent=11 // pred_fallthru
          _
        // Predicated region
        $region121: #{gcn_xyzr_forward.1} parent=11 // pred_check
          %p1197 = pneg %p737
        $region122: #{gcn_xyzr_forward.1} parent=11 // pred_check_branch
          %1199 = sbr.rel (%p1197) target = $region124
        $region123: #{gcn_xyzr_forward.1} parent=11 // pred_region
          %s1201 = ssub.s32 512, 512
          %1202 = vsyncadd [#allocation39], %s1201
          %s1203 = sshll.u32 [#allocation38], 4
          %s1204 = int_to_ptr.vmem [resolvable:$true] %s1203
          %1209 = dma.hbm_to_vmem [thread:$0]  %s59, 512, %s1204, [#allocation39], 128, 128, 8
        $region124: #{gcn_xyzr_forward.1} parent=11 // pred_fallthru
          _
        // Predicated region
        $region125: #{gcn_xyzr_forward.1} parent=11 // pred_check
          %p1210 = pneg %p758
        $region126: #{gcn_xyzr_forward.1} parent=11 // pred_check_branch
          %1212 = sbr.rel (%p1210) target = $region128
        $region127: #{gcn_xyzr_forward.1} parent=11 // pred_region
          _
        $region128: #{gcn_xyzr_forward.1} parent=11 // pred_fallthru
          _
        // Predicated region
        $region129: #{gcn_xyzr_forward.1} parent=11 // pred_check
          %p1213 = pneg %p779
        $region130: #{gcn_xyzr_forward.1} parent=11 // pred_check_branch
          %1215 = sbr.rel (%p1213) target = $region132
        $region131: #{gcn_xyzr_forward.1} parent=11 // pred_region
          _
        $region132: #{gcn_xyzr_forward.1} parent=11 // pred_fallthru
          _
        // Predicated region
        $region133: #{gcn_xyzr_forward.1} parent=11 // pred_check
          %p1216 = pneg %p800
        $region134: #{gcn_xyzr_forward.1} parent=11 // pred_check_branch
          %1218 = sbr.rel (%p1216) target = $region136
        $region135: #{gcn_xyzr_forward.1} parent=11 // pred_region
          _
        $region136: #{gcn_xyzr_forward.1} parent=11 // pred_fallthru
          _
        // Predicated region
        $region137: #{gcn_xyzr_forward.1} parent=11 // pred_check
          %p1219 = pneg %p821
        $region138: #{gcn_xyzr_forward.1} parent=11 // pred_check_branch
          %1221 = sbr.rel (%p1219) target = $region140
        $region139: #{gcn_xyzr_forward.1} parent=11 // pred_region
          _
        $region140: #{gcn_xyzr_forward.1} parent=11 // pred_fallthru
          _
      $region12: #{gcn_xyzr_forward.1} parent=5 // pred_fallthru
        _
      %p1222 = scmp.lt.s32.totalorder %s97, 2
      // Predicated region
      $region141: #{gcn_xyzr_forward.1} parent=5 // pred_check
        %p1223 = pneg %p1222
      $region142: #{gcn_xyzr_forward.1} parent=5 // pred_check_branch
        %1225 = sbr.rel (%p1223) target = $region144
      $region143: #{gcn_xyzr_forward.1} parent=5 // pred_region
        // Predicated region
        $region145: #{gcn_xyzr_forward.1} parent=143 // pred_check
          %p1226 = pneg %p117
        $region146: #{gcn_xyzr_forward.1} parent=143 // pred_check_branch
          %1228 = sbr.rel (%p1226) target = $region148
        $region147: #{gcn_xyzr_forward.1} parent=143 // pred_region
          %p1229 = scmp.lt.s32.totalorder %s97, 1
          %s1230 = scalar_select %p1229, %s97, 1
          %s1231 = smul.addr %s1230, 3
          %s1232 = smul.addr %s1231, 8
          %s1233 = scalar_lea.vmem %s1, %s1232
        $region148: #{gcn_xyzr_forward.1} parent=143 // pred_fallthru
          _
        // Predicated region
        $region149: #{gcn_xyzr_forward.1} parent=143 // pred_check
          %p1234 = pneg %p143
        $region150: #{gcn_xyzr_forward.1} parent=143 // pred_check_branch
          %1236 = sbr.rel (%p1234) target = $region152
        $region151: #{gcn_xyzr_forward.1} parent=143 // pred_region
          %p1237 = scmp.lt.s32.totalorder %s97, 1
          %s1238 = scalar_select %p1237, %s97, 1
          %s1239 = smul.addr %s1238, 4
          %s1240 = smul.addr %s1239, 8
          %s1241 = scalar_lea.vmem %s3, %s1240
        $region152: #{gcn_xyzr_forward.1} parent=143 // pred_fallthru
          _
      $region144: #{gcn_xyzr_forward.1} parent=5 // pred_fallthru
        _
      %p1242 = scmp.le.s32.totalorder 1, %s97
      %p1243 = scmp.lt.s32.totalorder %s97, 3
      %p1244 = pnand %p1242, %p1243
      %p1245 = pneg %p1244
      // Predicated region
      $region153: #{gcn_xyzr_forward.1} parent=5 // pred_check
        _
      $region154: #{gcn_xyzr_forward.1} parent=5 // pred_check_branch
        %1247 = sbr.rel (%p1244) target = $region156
      $region155: #{gcn_xyzr_forward.1} parent=5 // pred_region
        %s1248 = ssub.s32 %s97, 1
        // Predicated region
        $region157: #{gcn_xyzr_forward.1} parent=155 // pred_check
          %p1249 = pneg %p170
        $region158: #{gcn_xyzr_forward.1} parent=155 // pred_check_branch
          %1251 = sbr.rel (%p1249) target = $region160
        $region159: #{gcn_xyzr_forward.1} parent=155 // pred_region
          %1252 = dma.done [#allocation3], 256
        $region160: #{gcn_xyzr_forward.1} parent=155 // pred_fallthru
          _
        // Predicated region
        $region161: #{gcn_xyzr_forward.1} parent=155 // pred_check
          %p1253 = pneg %p191
        $region162: #{gcn_xyzr_forward.1} parent=155 // pred_check_branch
          %1255 = sbr.rel (%p1253) target = $region164
        $region163: #{gcn_xyzr_forward.1} parent=155 // pred_region
          %1256 = dma.done [#allocation6], 384
        $region164: #{gcn_xyzr_forward.1} parent=155 // pred_fallthru
          _
        // Predicated region
        $region165: #{gcn_xyzr_forward.1} parent=155 // pred_check
          %p1257 = pneg %p212
        $region166: #{gcn_xyzr_forward.1} parent=155 // pred_check_branch
          %1259 = sbr.rel (%p1257) target = $region168
        $region167: #{gcn_xyzr_forward.1} parent=155 // pred_region
          %1260 = dma.done [#allocation6], 384
        $region168: #{gcn_xyzr_forward.1} parent=155 // pred_fallthru
          _
        // Predicated region
        $region169: #{gcn_xyzr_forward.1} parent=155 // pred_check
          %p1261 = pneg %p233
        $region170: #{gcn_xyzr_forward.1} parent=155 // pred_check_branch
          %1263 = sbr.rel (%p1261) target = $region172
        $region171: #{gcn_xyzr_forward.1} parent=155 // pred_region
          %1264 = dma.done [#allocation9], 384
        $region172: #{gcn_xyzr_forward.1} parent=155 // pred_fallthru
          _
        // Predicated region
        $region173: #{gcn_xyzr_forward.1} parent=155 // pred_check
          %p1265 = pneg %p254
        $region174: #{gcn_xyzr_forward.1} parent=155 // pred_check_branch
          %1267 = sbr.rel (%p1265) target = $region176
        $region175: #{gcn_xyzr_forward.1} parent=155 // pred_region
          %1268 = dma.done [#allocation9], 512
        $region176: #{gcn_xyzr_forward.1} parent=155 // pred_fallthru
          _
        // Predicated region
        $region177: #{gcn_xyzr_forward.1} parent=155 // pred_check
          %p1269 = pneg %p275
        $region178: #{gcn_xyzr_forward.1} parent=155 // pred_check_branch
          %1271 = sbr.rel (%p1269) target = $region180
        $region179: #{gcn_xyzr_forward.1} parent=155 // pred_region
          %1272 = dma.done [#allocation12], 384
        $region180: #{gcn_xyzr_forward.1} parent=155 // pred_fallthru
          _
        // Predicated region
        $region181: #{gcn_xyzr_forward.1} parent=155 // pred_check
          %p1273 = pneg %p296
        $region182: #{gcn_xyzr_forward.1} parent=155 // pred_check_branch
          %1275 = sbr.rel (%p1273) target = $region184
        $region183: #{gcn_xyzr_forward.1} parent=155 // pred_region
          %1276 = dma.done [#allocation12], 384
        $region184: #{gcn_xyzr_forward.1} parent=155 // pred_fallthru
          _
        // Predicated region
        $region185: #{gcn_xyzr_forward.1} parent=155 // pred_check
          %p1277 = pneg %p317
        $region186: #{gcn_xyzr_forward.1} parent=155 // pred_check_branch
          %1279 = sbr.rel (%p1277) target = $region188
        $region187: #{gcn_xyzr_forward.1} parent=155 // pred_region
          %1280 = dma.done [#allocation15], 384
        $region188: #{gcn_xyzr_forward.1} parent=155 // pred_fallthru
          _
        // Predicated region
        $region189: #{gcn_xyzr_forward.1} parent=155 // pred_check
          %p1281 = pneg %p338
        $region190: #{gcn_xyzr_forward.1} parent=155 // pred_check_branch
          %1283 = sbr.rel (%p1281) target = $region192
        $region191: #{gcn_xyzr_forward.1} parent=155 // pred_region
          %1284 = dma.done [#allocation15], 512
        $region192: #{gcn_xyzr_forward.1} parent=155 // pred_fallthru
          _
        // Predicated region
        $region193: #{gcn_xyzr_forward.1} parent=155 // pred_check
          %p1285 = pneg %p359
        $region194: #{gcn_xyzr_forward.1} parent=155 // pred_check_branch
          %1287 = sbr.rel (%p1285) target = $region196
        $region195: #{gcn_xyzr_forward.1} parent=155 // pred_region
          %1288 = dma.done [#allocation18], 384
        $region196: #{gcn_xyzr_forward.1} parent=155 // pred_fallthru
          _
        // Predicated region
        $region197: #{gcn_xyzr_forward.1} parent=155 // pred_check
          %p1289 = pneg %p380
        $region198: #{gcn_xyzr_forward.1} parent=155 // pred_check_branch
          %1291 = sbr.rel (%p1289) target = $region200
        $region199: #{gcn_xyzr_forward.1} parent=155 // pred_region
          %1292 = dma.done [#allocation18], 384
        $region200: #{gcn_xyzr_forward.1} parent=155 // pred_fallthru
          _
        // Predicated region
        $region201: #{gcn_xyzr_forward.1} parent=155 // pred_check
          %p1293 = pneg %p401
        $region202: #{gcn_xyzr_forward.1} parent=155 // pred_check_branch
          %1295 = sbr.rel (%p1293) target = $region204
        $region203: #{gcn_xyzr_forward.1} parent=155 // pred_region
          %1296 = dma.done [#allocation21], 384
        $region204: #{gcn_xyzr_forward.1} parent=155 // pred_fallthru
          _
        // Predicated region
        $region205: #{gcn_xyzr_forward.1} parent=155 // pred_check
          %p1297 = pneg %p485
        $region206: #{gcn_xyzr_forward.1} parent=155 // pred_check_branch
          %1299 = sbr.rel (%p1297) target = $region208
        $region207: #{gcn_xyzr_forward.1} parent=155 // pred_region
          %1300 = dma.done [#allocation21], 16
        $region208: #{gcn_xyzr_forward.1} parent=155 // pred_fallthru
          _
        // Predicated region
        $region209: #{gcn_xyzr_forward.1} parent=155 // pred_check
          %p1301 = pneg %p506
        $region210: #{gcn_xyzr_forward.1} parent=155 // pred_check_branch
          %1303 = sbr.rel (%p1301) target = $region212
        $region211: #{gcn_xyzr_forward.1} parent=155 // pred_region
          %1304 = dma.done [#allocation24], 256
        $region212: #{gcn_xyzr_forward.1} parent=155 // pred_fallthru
          _
        // Predicated region
        $region213: #{gcn_xyzr_forward.1} parent=155 // pred_check
          %p1305 = pneg %p527
        $region214: #{gcn_xyzr_forward.1} parent=155 // pred_check_branch
          %1307 = sbr.rel (%p1305) target = $region216
        $region215: #{gcn_xyzr_forward.1} parent=155 // pred_region
          %1308 = dma.done [#allocation24], 512
        $region216: #{gcn_xyzr_forward.1} parent=155 // pred_fallthru
          _
        // Predicated region
        $region217: #{gcn_xyzr_forward.1} parent=155 // pred_check
          %p1309 = pneg %p548
        $region218: #{gcn_xyzr_forward.1} parent=155 // pred_check_branch
          %1311 = sbr.rel (%p1309) target = $region220
        $region219: #{gcn_xyzr_forward.1} parent=155 // pred_region
          %1312 = dma.done [#allocation27], 512
        $region220: #{gcn_xyzr_forward.1} parent=155 // pred_fallthru
          _
        // Predicated region
        $region221: #{gcn_xyzr_forward.1} parent=155 // pred_check
          %p1313 = pneg %p569
        $region222: #{gcn_xyzr_forward.1} parent=155 // pred_check_branch
          %1315 = sbr.rel (%p1313) target = $region224
        $region223: #{gcn_xyzr_forward.1} parent=155 // pred_region
          %1316 = dma.done [#allocation27], 512
        $region224: #{gcn_xyzr_forward.1} parent=155 // pred_fallthru
          _
        // Predicated region
        $region225: #{gcn_xyzr_forward.1} parent=155 // pred_check
          %p1317 = pneg %p611
        $region226: #{gcn_xyzr_forward.1} parent=155 // pred_check_branch
          %1319 = sbr.rel (%p1317) target = $region228
        $region227: #{gcn_xyzr_forward.1} parent=155 // pred_region
          %1320 = dma.done [#allocation30], 512
        $region228: #{gcn_xyzr_forward.1} parent=155 // pred_fallthru
          _
        // Predicated region
        $region229: #{gcn_xyzr_forward.1} parent=155 // pred_check
          %p1321 = pneg %p632
        $region230: #{gcn_xyzr_forward.1} parent=155 // pred_check_branch
          %1323 = sbr.rel (%p1321) target = $region232
        $region231: #{gcn_xyzr_forward.1} parent=155 // pred_region
          %1324 = dma.done [#allocation30], 512
        $region232: #{gcn_xyzr_forward.1} parent=155 // pred_fallthru
          _
        // Predicated region
        $region233: #{gcn_xyzr_forward.1} parent=155 // pred_check
          %p1325 = pneg %p653
        $region234: #{gcn_xyzr_forward.1} parent=155 // pred_check_branch
          %1327 = sbr.rel (%p1325) target = $region236
        $region235: #{gcn_xyzr_forward.1} parent=155 // pred_region
          %1328 = dma.done [#allocation33], 512
        $region236: #{gcn_xyzr_forward.1} parent=155 // pred_fallthru
          _
        // Predicated region
        $region237: #{gcn_xyzr_forward.1} parent=155 // pred_check
          %p1329 = pneg %p674
        $region238: #{gcn_xyzr_forward.1} parent=155 // pred_check_branch
          %1331 = sbr.rel (%p1329) target = $region240
        $region239: #{gcn_xyzr_forward.1} parent=155 // pred_region
          %1332 = dma.done [#allocation33], 512
        $region240: #{gcn_xyzr_forward.1} parent=155 // pred_fallthru
          _
        // Predicated region
        $region241: #{gcn_xyzr_forward.1} parent=155 // pred_check
          %p1333 = pneg %p695
        $region242: #{gcn_xyzr_forward.1} parent=155 // pred_check_branch
          %1335 = sbr.rel (%p1333) target = $region244
        $region243: #{gcn_xyzr_forward.1} parent=155 // pred_region
          %1336 = dma.done [#allocation36], 512
        $region244: #{gcn_xyzr_forward.1} parent=155 // pred_fallthru
          _
        // Predicated region
        $region245: #{gcn_xyzr_forward.1} parent=155 // pred_check
          %p1337 = pneg %p716
        $region246: #{gcn_xyzr_forward.1} parent=155 // pred_check_branch
          %1339 = sbr.rel (%p1337) target = $region248
        $region247: #{gcn_xyzr_forward.1} parent=155 // pred_region
          %1340 = dma.done [#allocation36], 512
        $region248: #{gcn_xyzr_forward.1} parent=155 // pred_fallthru
          _
        // Predicated region
        $region249: #{gcn_xyzr_forward.1} parent=155 // pred_check
          %p1341 = pneg %p737
        $region250: #{gcn_xyzr_forward.1} parent=155 // pred_check_branch
          %1343 = sbr.rel (%p1341) target = $region252
        $region251: #{gcn_xyzr_forward.1} parent=155 // pred_region
          %1344 = dma.done [#allocation39], 512
        $region252: #{gcn_xyzr_forward.1} parent=155 // pred_fallthru
          _
        %p1345 = scmp.lt.s32.totalorder %s102, 1
        %s1346 = scalar_select %p1345, %s102, 1
        %s1347 = smul.addr %s1346, 3
        %s1348 = smul.addr %s1347, 8
        %s1349 = scalar_lea.vmem %s1, %s1348
        %p1350 = pneg %p123
        %p1351 = pneg %p120
        %p1352 = scmp.lt.s32.totalorder %s102, 1
        %s1353 = scalar_select %p1352, %s102, 1
        %s1354 = smul.addr %s1353, 4
        %s1355 = smul.addr %s1354, 8
        %s1356 = scalar_lea.vmem %s3, %s1355
        %p1357 = pneg %p149
        %p1358 = pneg %p146
        %p1359 = pneg %p170
        %p1360 = pneg %p167
        %p1361 = pneg %p191
        %p1362 = pneg %p188
        %p1363 = pneg %p212
        %p1364 = pneg %p209
        %p1365 = pneg %p233
        %p1366 = pneg %p230
        %p1367 = pneg %p254
        %p1368 = pneg %p251
        %p1369 = pneg %p275
        %p1370 = pneg %p272
        %p1371 = pneg %p296
        %p1372 = pneg %p293
        %p1373 = pneg %p317
        %p1374 = pneg %p314
        %p1375 = pneg %p338
        %p1376 = pneg %p335
        %p1377 = pneg %p359
        %p1378 = pneg %p356
        %p1379 = pneg %p380
        %p1380 = pneg %p377
        %p1381 = pneg %p401
        %p1382 = pneg %p398
        %p1383 = pneg %p422
        %p1384 = pneg %p419
        %p1385 = pneg %p443
        %p1386 = pneg %p440
        %p1387 = pneg %p464
        %p1388 = pneg %p461
        %p1389 = pneg %p485
        %p1390 = pneg %p482
        %p1391 = pneg %p506
        %p1392 = pneg %p503
        %p1393 = pneg %p527
        %p1394 = pneg %p524
        %p1395 = pneg %p548
        %p1396 = pneg %p545
        %p1397 = pneg %p569
        %p1398 = pneg %p566
        %p1399 = pneg %p590
        %p1400 = pneg %p587
        %p1401 = pneg %p611
        %p1402 = pneg %p608
        %p1403 = pneg %p632
        %p1404 = pneg %p629
        %p1405 = pneg %p653
        %p1406 = pneg %p650
        %p1407 = pneg %p674
        %p1408 = pneg %p671
        %p1409 = pneg %p695
        %p1410 = pneg %p692
        %p1411 = pneg %p716
        %p1412 = pneg %p713
        %p1413 = pneg %p737
        %p1414 = pneg %p734
        %p1415 = pneg %p758
        %p1416 = pneg %p755
        %p1417 = pneg %p779
        %p1418 = pneg %p776
        %p1419 = pneg %p800
        %p1420 = pneg %p797
        %p1421 = pneg %p821
        %p1422 = pneg %p818
        %p1423 = pneg %p847
        %p1424 = pneg %p844
        %s1425 = sand.u32 %s834, 1
        %s1426 = scalar_lea.sflag [#allocation4], %s1425
        %s1427 = sand.u32 %s834, 1
        %s1428 = smul.addr %s1427, 24
        %s1429 = scalar_lea.vmem [#allocation40], %s1428
        %p1430 = pneg %p873
        %p1431 = pneg %p870
        %s1432 = sand.u32 %s860, 1
        %s1433 = scalar_lea.sflag [#allocation42], %s1432
        %s1434 = sand.u32 %s860, 1
        %s1435 = smul.addr %s1434, 32
        %s1436 = scalar_lea.vmem [#allocation41], %s1435
        %p1437 = scmp.lt.s32.totalorder %s102, 1
        %s1438 = scalar_select %p1437, %s102, 1
        %s1439 = smul.addr %s1438, 3
        %s1440 = smul.addr %s1439, 8
        %s1441 = scalar_lea.vmem %s1, %s1440
        %p1442 = scmp.lt.s32.totalorder %s102, 1
        %s1443 = scalar_select %p1442, %s102, 1
        %s1444 = smul.addr %s1443, 4
        %s1445 = smul.addr %s1444, 8
        %s1446 = scalar_lea.vmem %s3, %s1445
        %v1447 = vld [vmem:[%s1441] sm:$0xff]
        %v1448 = vld [vmem:[%s1441 + $0x8] sm:$0xff]
        %v1449 = vld [vmem:[%s1441 + $0x10] sm:$0xff]
        %v1450 = vld [vmem:[#allocation2] sm:$0xff]
        %v1451 = vld [vmem:[#allocation2 + $0x8] sm:$0x3]
        %v1452 = vld [vmem:[#allocation5] sm:$0xff]
        %v1453 = vld [vmem:[#allocation5 + $0x8] sm:$0xff]
        %v1454 = vld [vmem:[#allocation5 + $0x10] sm:$0xff]
        %v1455 = vld [vmem:[#allocation7] sm:$0xff]
        %v1456 = vld [vmem:[#allocation7 + $0x8] sm:$0xff]
        %v1457 = vld [vmem:[#allocation7 + $0x10] sm:$0xff]
        %v1458 = vld [vmem:[#allocation8] sm:$0xff]
        %v1459 = vld [vmem:[#allocation8 + $0x8] sm:$0xff]
        %v1460 = vld [vmem:[#allocation8 + $0x10] sm:$0xff]
        %vm1461 = vcmask 195584
        %v1463 = vsel %vm1461, %v1452, 0
        %v1466 = vsel %vm1461, %v1453, 0
        %v1469 = vsel %vm1461, %v1454, 0
        %1471 = vmatprep.subr.mxu0 0.0
        %1472 = vmatpush1.msra.mxu0 %v1447
        %1473 = vmatprep.subr.mxu0 0.0
        %1474 = vmatpush1.msra.mxu0 %v1448
        %1475 = vmatprep.subr.mxu0 0.0
        %1476 = vmatpush1.msra.mxu0 %v1449
        %1477 = vmatprep.subr.mxu0 0.0
        %1478 = vmatpush1.msra.mxu0 0.0
        %1479 = vmatprep.subr.mxu0 0.0
        %1480 = vmatpush1.msra.mxu0 0.0
        %1481 = vmatprep.subr.mxu0 0.0
        %1482 = vmatpush1.msra.mxu0 0.0
        %1483 = vmatprep.subr.mxu0 0.0
        %1484 = vmatpush1.msra.mxu0 0.0
        %1485 = vmatprep.subr.mxu0 0.0
        %1486 = vmatpush1.msra.mxu0 0.0
        %1487 = vmatprep.subr.mxu0 0.0
        %1488 = vmatpush1.msra.mxu0 0.0
        %1489 = vmatprep.subr.mxu0 0.0
        %1490 = vmatpush1.msra.mxu0 0.0
        %1491 = vmatprep.subr.mxu0 0.0
        %1492 = vmatpush1.msra.mxu0 0.0
        %1493 = vmatprep.subr.mxu0 0.0
        %1494 = vmatpush1.msra.mxu0 0.0
        %1495 = vmatprep.subr.mxu0 0.0
        %1496 = vmatpush1.msra.mxu0 0.0
        %1497 = vmatprep.subr.mxu0 0.0
        %1498 = vmatpush1.msra.mxu0 0.0
        %1499 = vmatprep.subr.mxu0 0.0
        %1500 = vmatpush1.msra.mxu0 0.0
        %1501 = vmatprep.subr.mxu0 0.0
        %1502 = vmatpush1.msra.mxu0 0.0
        %1503 = vmatprep.subr.mxu0 0.0
        %1504 = vmatpush1.msra.mxu0 0.0
        %1505 = vmatprep.subr.mxu0 0.0
        %1506 = vmatpush1.msra.mxu0 0.0
        %1507 = vmatprep.subr.mxu0 0.0
        %1508 = vmatpush1.msra.mxu0 0.0
        %1509 = vmatprep.subr.mxu0 0.0
        %1510 = vmatpush1.msra.mxu0 0.0
        %1511 = vmatprep.subr.mxu0 0.0
        %1512 = vmatpush1.msra.mxu0 0.0
        %1513 = vmatprep.subr.mxu0 0.0
        %1514 = vmatpush1.msra.mxu0 0.0
        %1515 = vmatprep.subr.mxu0 0.0
        %1516 = vmatpush1.msra.mxu0 0.0
        %1517 = vmatprep.subr.mxu0 0.0
        %1518 = vmatpush1.msra.mxu0 0.0
        %1519 = vmatprep.subr.mxu0 0.0
        %1520 = vmatpush1.msra.mxu0 0.0
        %1521 = vmatprep.subr.mxu0 0.0
        %1522 = vmatpush1.msra.mxu0 0.0
        %1523 = vmatprep.subr.mxu0 0.0
        %1524 = vmatpush1.msra.mxu0 0.0
        %1525 = vmatprep.subr.mxu0 0.0
        %1526 = vmatpush1.msra.mxu0 0.0
        %1527 = vmatprep.subr.mxu0 0.0
        %1528 = vmatpush1.msra.mxu0 0.0
        %1529 = vmatprep.subr.mxu0 0.0
        %1530 = vmatpush1.msra.mxu0 0.0
        %1531 = vmatprep.subr.mxu0 0.0
        %1532 = vmatpush1.msra.mxu0 0.0
        %1533 = vmatprep.subr.mxu0 0.0
        %1534 = vmatpush1.msra.mxu0 0.0
        %1535 = vmatprep.mubr.f32.mxu0 0.0
        %1536 = vmatmul.mubr.f32.gmra.mrb[0].mxu0 %v1463
        %v1537 = vpop.f32.mrb[0].mxu0
        %v1538 = vadd.f32 0.0, %v1537
        %v1539 = vpop.f32.mrb[0].mxu0
        %1540 = vmatprep.mubr.f32.mxu0 0.0
        %1541 = vmatmul.mubr.f32.gmra.mrb[0].mxu0 %v1466
        %v1542 = vpop.f32.mrb[0].mxu0
        %v1543 = vadd.f32 0.0, %v1542
        %v1544 = vpop.f32.mrb[0].mxu0
        %1545 = vmatprep.mubr.f32.mxu0 0.0
        %1546 = vmatmul.mubr.f32.gmra.mrb[0].mxu0 %v1469
        %v1547 = vpop.f32.mrb[0].mxu0
        %v1548 = vadd.f32 0.0, %v1547
        %v1549 = vpop.f32.mrb[0].mxu0
        %1550 = vdwg.mxu0
        %vm1551 = vcmask 80896
        %v1553 = vsel %vm1551, %v1538, 0
        %v1556 = vsel %vm1551, %v1543, 0
        %v1559 = vsel %vm1551, %v1548, 0
        %vm1561 = vcmask 1041408
        %v1563 = vsel %vm1561, %v1451, 0
        %1565 = vmatprep.subr.mxu0 0.0
        %1566 = vmatpush1.msra.mxu0 %v1450
        %1567 = vmatprep.subr.mxu0 0.0
        %1568 = vmatpush1.msra.mxu0 %v1563
        %1569 = vmatprep.subr.mxu0 0.0
        %1570 = vmatpush1.msra.mxu0 0.0
        %1571 = vmatprep.subr.mxu0 0.0
        %1572 = vmatpush1.msra.mxu0 0.0
        %1573 = vmatprep.subr.mxu0 0.0
        %1574 = vmatpush1.msra.mxu0 0.0
        %1575 = vmatprep.subr.mxu0 0.0
        %1576 = vmatpush1.msra.mxu0 0.0
        %1577 = vmatprep.subr.mxu0 0.0
        %1578 = vmatpush1.msra.mxu0 0.0
        %1579 = vmatprep.subr.mxu0 0.0
        %1580 = vmatpush1.msra.mxu0 0.0
        %1581 = vmatprep.subr.mxu0 0.0
        %1582 = vmatpush1.msra.mxu0 0.0
        %1583 = vmatprep.subr.mxu0 0.0
        %1584 = vmatpush1.msra.mxu0 0.0
        %1585 = vmatprep.subr.mxu0 0.0
        %1586 = vmatpush1.msra.mxu0 0.0
        %1587 = vmatprep.subr.mxu0 0.0
        %1588 = vmatpush1.msra.mxu0 0.0
        %1589 = vmatprep.subr.mxu0 0.0
        %1590 = vmatpush1.msra.mxu0 0.0
        %1591 = vmatprep.subr.mxu0 0.0
        %1592 = vmatpush1.msra.mxu0 0.0
        %1593 = vmatprep.subr.mxu0 0.0
        %1594 = vmatpush1.msra.mxu0 0.0
        %1595 = vmatprep.subr.mxu0 0.0
        %1596 = vmatpush1.msra.mxu0 0.0
        %1597 = vmatprep.subr.mxu0 0.0
        %1598 = vmatpush1.msra.mxu0 0.0
        %1599 = vmatprep.subr.mxu0 0.0
        %1600 = vmatpush1.msra.mxu0 0.0
        %1601 = vmatprep.subr.mxu0 0.0
        %1602 = vmatpush1.msra.mxu0 0.0
        %1603 = vmatprep.subr.mxu0 0.0
        %1604 = vmatpush1.msra.mxu0 0.0
        %1605 = vmatprep.subr.mxu0 0.0
        %1606 = vmatpush1.msra.mxu0 0.0
        %1607 = vmatprep.subr.mxu0 0.0
        %1608 = vmatpush1.msra.mxu0 0.0
        %1609 = vmatprep.subr.mxu0 0.0
        %1610 = vmatpush1.msra.mxu0 0.0
        %1611 = vmatprep.subr.mxu0 0.0
        %1612 = vmatpush1.msra.mxu0 0.0
        %1613 = vmatprep.subr.mxu0 0.0
        %1614 = vmatpush1.msra.mxu0 0.0
        %1615 = vmatprep.subr.mxu0 0.0
        %1616 = vmatpush1.msra.mxu0 0.0
        %1617 = vmatprep.subr.mxu0 0.0
        %1618 = vmatpush1.msra.mxu0 0.0
        %1619 = vmatprep.subr.mxu0 0.0
        %1620 = vmatpush1.msra.mxu0 0.0
        %1621 = vmatprep.subr.mxu0 0.0
        %1622 = vmatpush1.msra.mxu0 0.0
        %1623 = vmatprep.subr.mxu0 0.0
        %1624 = vmatpush1.msra.mxu0 0.0
        %1625 = vmatprep.subr.mxu0 0.0
        %1626 = vmatpush1.msra.mxu0 0.0
        %1627 = vmatprep.subr.mxu0 0.0
        %1628 = vmatpush1.msra.mxu0 0.0
        %1629 = vmatprep.mubr.f32.mxu0 0.0
        %1630 = vmatmul.mubr.f32.gmra.mrb[0].mxu0 %v1553
        %v1631 = vpop.f32.mrb[0].mxu0
        %v1632 = vadd.f32 0.0, %v1631
        %v1633 = vpop.f32.mrb[0].mxu0
        %1634 = vmatprep.mubr.f32.mxu0 0.0
        %1635 = vmatmul.mubr.f32.gmra.mrb[0].mxu0 %v1556
        %v1636 = vpop.f32.mrb[0].mxu0
        %v1637 = vadd.f32 0.0, %v1636
        %v1638 = vpop.f32.mrb[0].mxu0
        %1639 = vmatprep.mubr.f32.mxu0 0.0
        %1640 = vmatmul.mubr.f32.gmra.mrb[0].mxu0 %v1559
        %v1641 = vpop.f32.mrb[0].mxu0
        %v1642 = vadd.f32 0.0, %v1641
        %v1643 = vpop.f32.mrb[0].mxu0
        %1644 = vdwg.mxu0
        %v1645 = vmul.f32 %v1632, %v1455
        %v1646 = vmul.f32 %v1637, %v1456
        %v1647 = vmul.f32 %v1642, %v1457
        %v1648 = vadd.f32 %v1645, %v1458
        %v1649 = vadd.f32 %v1646, %v1459
        %v1650 = vadd.f32 %v1647, %v1460
        %v1651 = vtanh.pop %v1648
        %v1652 = vtanh.pop %v1649
        %v1653 = vtanh.pop %v1650
        %v1654 = vld [vmem:[#allocation10] sm:$0xff]
        %v1655 = vld [vmem:[#allocation10 + $0x8] sm:$0xff]
        %v1656 = vld [vmem:[#allocation10 + $0x10] sm:$0xff]
        %v1657 = vld [vmem:[#allocation10 + $0x18] sm:$0xff]
        %v1658 = vld [vmem:[#allocation11] sm:$0xff]
        %v1659 = vld [vmem:[#allocation11 + $0x8] sm:$0xff]
        %v1660 = vld [vmem:[#allocation11 + $0x10] sm:$0xff]
        %v1661 = vld [vmem:[#allocation13] sm:$0xff]
        %v1662 = vld [vmem:[#allocation13 + $0x8] sm:$0xff]
        %v1663 = vld [vmem:[#allocation13 + $0x10] sm:$0xff]
        %v1664 = vld [vmem:[#allocation14] sm:$0xff]
        %v1665 = vld [vmem:[#allocation14 + $0x8] sm:$0xff]
        %v1666 = vld [vmem:[#allocation14 + $0x10] sm:$0xff]
        %vm1667 = vcmask 261120
        %v1669 = vsel %vm1667, %v1651, 0
        %v1672 = vsel %vm1667, %v1652, 0
        %v1675 = vsel %vm1667, %v1653, 0
        %1677 = vmatprep.subr.mxu0 0.0
        %1678 = vmatpush1.msra.mxu0 %v1654
        %1679 = vmatprep.subr.mxu0 0.0
        %1680 = vmatpush1.msra.mxu0 %v1655
        %1681 = vmatprep.subr.mxu0 0.0
        %1682 = vmatpush1.msra.mxu0 %v1656
        %1683 = vmatprep.subr.mxu0 0.0
        %1684 = vmatpush1.msra.mxu0 %v1657
        %1685 = vmatprep.subr.mxu0 0.0
        %1686 = vmatpush1.msra.mxu0 0.0
        %1687 = vmatprep.subr.mxu0 0.0
        %1688 = vmatpush1.msra.mxu0 0.0
        %1689 = vmatprep.subr.mxu0 0.0
        %1690 = vmatpush1.msra.mxu0 0.0
        %1691 = vmatprep.subr.mxu0 0.0
        %1692 = vmatpush1.msra.mxu0 0.0
        %1693 = vmatprep.subr.mxu0 0.0
        %1694 = vmatpush1.msra.mxu0 0.0
        %1695 = vmatprep.subr.mxu0 0.0
        %1696 = vmatpush1.msra.mxu0 0.0
        %1697 = vmatprep.subr.mxu0 0.0
        %1698 = vmatpush1.msra.mxu0 0.0
        %1699 = vmatprep.subr.mxu0 0.0
        %1700 = vmatpush1.msra.mxu0 0.0
        %1701 = vmatprep.subr.mxu0 0.0
        %1702 = vmatpush1.msra.mxu0 0.0
        %1703 = vmatprep.subr.mxu0 0.0
        %1704 = vmatpush1.msra.mxu0 0.0
        %1705 = vmatprep.subr.mxu0 0.0
        %1706 = vmatpush1.msra.mxu0 0.0
        %1707 = vmatprep.subr.mxu0 0.0
        %1708 = vmatpush1.msra.mxu0 0.0
        %1709 = vmatprep.subr.mxu0 0.0
        %1710 = vmatpush1.msra.mxu0 0.0
        %1711 = vmatprep.subr.mxu0 0.0
        %1712 = vmatpush1.msra.mxu0 0.0
        %1713 = vmatprep.subr.mxu0 0.0
        %1714 = vmatpush1.msra.mxu0 0.0
        %1715 = vmatprep.subr.mxu0 0.0
        %1716 = vmatpush1.msra.mxu0 0.0
        %1717 = vmatprep.subr.mxu0 0.0
        %1718 = vmatpush1.msra.mxu0 0.0
        %1719 = vmatprep.subr.mxu0 0.0
        %1720 = vmatpush1.msra.mxu0 0.0
        %1721 = vmatprep.subr.mxu0 0.0
        %1722 = vmatpush1.msra.mxu0 0.0
        %1723 = vmatprep.subr.mxu0 0.0
        %1724 = vmatpush1.msra.mxu0 0.0
        %1725 = vmatprep.subr.mxu0 0.0
        %1726 = vmatpush1.msra.mxu0 0.0
        %1727 = vmatprep.subr.mxu0 0.0
        %1728 = vmatpush1.msra.mxu0 0.0
        %1729 = vmatprep.subr.mxu0 0.0
        %1730 = vmatpush1.msra.mxu0 0.0
        %1731 = vmatprep.subr.mxu0 0.0
        %1732 = vmatpush1.msra.mxu0 0.0
        %1733 = vmatprep.subr.mxu0 0.0
        %1734 = vmatpush1.msra.mxu0 0.0
        %1735 = vmatprep.subr.mxu0 0.0
        %1736 = vmatpush1.msra.mxu0 0.0
        %1737 = vmatprep.subr.mxu0 0.0
        %1738 = vmatpush1.msra.mxu0 0.0
        %1739 = vmatprep.subr.mxu0 0.0
        %1740 = vmatpush1.msra.mxu0 0.0
        %1741 = vmatprep.mubr.f32.mxu0 0.0
        %1742 = vmatmul.mubr.f32.gmra.mrb[0].mxu0 %v1669
        %v1743 = vpop.f32.mrb[0].mxu0
        %v1744 = vadd.f32 0.0, %v1743
        %v1745 = vpop.f32.mrb[0].mxu0
        %1746 = vmatprep.mubr.f32.mxu0 0.0
        %1747 = vmatmul.mubr.f32.gmra.mrb[0].mxu0 %v1672
        %v1748 = vpop.f32.mrb[0].mxu0
        %v1749 = vadd.f32 0.0, %v1748
        %v1750 = vpop.f32.mrb[0].mxu0
        %1751 = vmatprep.mubr.f32.mxu0 0.0
        %1752 = vmatmul.mubr.f32.gmra.mrb[0].mxu0 %v1675
        %v1753 = vpop.f32.mrb[0].mxu0
        %v1754 = vadd.f32 0.0, %v1753
        %v1755 = vpop.f32.mrb[0].mxu0
        %1756 = vdwg.mxu0
        %v1758 = vsel %vm1461, %v1658, 0
        %v1761 = vsel %vm1461, %v1659, 0
        %v1764 = vsel %vm1461, %v1660, 0
        %1766 = vmatprep.subr.mxu0 0.0
        %1767 = vmatpush1.msra.mxu0 %v1744
        %1768 = vmatprep.subr.mxu0 0.0
        %1769 = vmatpush1.msra.mxu0 %v1749
        %1770 = vmatprep.subr.mxu0 0.0
        %1771 = vmatpush1.msra.mxu0 %v1754
        %1772 = vmatprep.subr.mxu0 0.0
        %1773 = vmatpush1.msra.mxu0 0.0
        %1774 = vmatprep.subr.mxu0 0.0
        %1775 = vmatpush1.msra.mxu0 0.0
        %1776 = vmatprep.subr.mxu0 0.0
        %1777 = vmatpush1.msra.mxu0 0.0
        %1778 = vmatprep.subr.mxu0 0.0
        %1779 = vmatpush1.msra.mxu0 0.0
        %1780 = vmatprep.subr.mxu0 0.0
        %1781 = vmatpush1.msra.mxu0 0.0
        %1782 = vmatprep.subr.mxu0 0.0
        %1783 = vmatpush1.msra.mxu0 0.0
        %1784 = vmatprep.subr.mxu0 0.0
        %1785 = vmatpush1.msra.mxu0 0.0
        %1786 = vmatprep.subr.mxu0 0.0
        %1787 = vmatpush1.msra.mxu0 0.0
        %1788 = vmatprep.subr.mxu0 0.0
        %1789 = vmatpush1.msra.mxu0 0.0
        %1790 = vmatprep.subr.mxu0 0.0
        %1791 = vmatpush1.msra.mxu0 0.0
        %1792 = vmatprep.subr.mxu0 0.0
        %1793 = vmatpush1.msra.mxu0 0.0
        %1794 = vmatprep.subr.mxu0 0.0
        %1795 = vmatpush1.msra.mxu0 0.0
        %1796 = vmatprep.subr.mxu0 0.0
        %1797 = vmatpush1.msra.mxu0 0.0
        %1798 = vmatprep.subr.mxu0 0.0
        %1799 = vmatpush1.msra.mxu0 0.0
        %1800 = vmatprep.subr.mxu0 0.0
        %1801 = vmatpush1.msra.mxu0 0.0
        %1802 = vmatprep.subr.mxu0 0.0
        %1803 = vmatpush1.msra.mxu0 0.0
        %1804 = vmatprep.subr.mxu0 0.0
        %1805 = vmatpush1.msra.mxu0 0.0
        %1806 = vmatprep.subr.mxu0 0.0
        %1807 = vmatpush1.msra.mxu0 0.0
        %1808 = vmatprep.subr.mxu0 0.0
        %1809 = vmatpush1.msra.mxu0 0.0
        %1810 = vmatprep.subr.mxu0 0.0
        %1811 = vmatpush1.msra.mxu0 0.0
        %1812 = vmatprep.subr.mxu0 0.0
        %1813 = vmatpush1.msra.mxu0 0.0
        %1814 = vmatprep.subr.mxu0 0.0
        %1815 = vmatpush1.msra.mxu0 0.0
        %1816 = vmatprep.subr.mxu0 0.0
        %1817 = vmatpush1.msra.mxu0 0.0
        %1818 = vmatprep.subr.mxu0 0.0
        %1819 = vmatpush1.msra.mxu0 0.0
        %1820 = vmatprep.subr.mxu0 0.0
        %1821 = vmatpush1.msra.mxu0 0.0
        %1822 = vmatprep.subr.mxu0 0.0
        %1823 = vmatpush1.msra.mxu0 0.0
        %1824 = vmatprep.subr.mxu0 0.0
        %1825 = vmatpush1.msra.mxu0 0.0
        %1826 = vmatprep.subr.mxu0 0.0
        %1827 = vmatpush1.msra.mxu0 0.0
        %1828 = vmatprep.subr.mxu0 0.0
        %1829 = vmatpush1.msra.mxu0 0.0
        %1830 = vmatprep.mubr.f32.mxu0 0.0
        %1831 = vmatmul.mubr.f32.gmra.mrb[0].mxu0 %v1758
        %v1832 = vpop.f32.mrb[0].mxu0
        %v1833 = vadd.f32 0.0, %v1832
        %v1834 = vpop.f32.mrb[0].mxu0
        %1835 = vmatprep.mubr.f32.mxu0 0.0
        %1836 = vmatmul.mubr.f32.gmra.mrb[0].mxu0 %v1761
        %v1837 = vpop.f32.mrb[0].mxu0
        %v1838 = vadd.f32 0.0, %v1837
        %v1839 = vpop.f32.mrb[0].mxu0
        %1840 = vmatprep.mubr.f32.mxu0 0.0
        %1841 = vmatmul.mubr.f32.gmra.mrb[0].mxu0 %v1764
        %v1842 = vpop.f32.mrb[0].mxu0
        %v1843 = vadd.f32 0.0, %v1842
        %v1844 = vpop.f32.mrb[0].mxu0
        %1845 = vdwg.mxu0
        %v1846 = vmul.f32 %v1833, %v1661
        %v1847 = vmul.f32 %v1838, %v1662
        %v1848 = vmul.f32 %v1843, %v1663
        %v1849 = vadd.f32 %v1846, %v1664
        %v1850 = vadd.f32 %v1847, %v1665
        %v1851 = vadd.f32 %v1848, %v1666
        %v1852 = vtanh.pop %v1849
        %v1853 = vtanh.pop %v1850
        %v1854 = vtanh.pop %v1851
        %v1855 = vld [vmem:[#allocation16] sm:$0xff]
        %v1856 = vld [vmem:[#allocation16 + $0x8] sm:$0xff]
        %v1857 = vld [vmem:[#allocation16 + $0x10] sm:$0xff]
        %v1858 = vld [vmem:[#allocation16 + $0x18] sm:$0xff]
        %v1859 = vld [vmem:[#allocation17] sm:$0xff]
        %v1860 = vld [vmem:[#allocation17 + $0x8] sm:$0xff]
        %v1861 = vld [vmem:[#allocation17 + $0x10] sm:$0xff]
        %v1862 = vld [vmem:[#allocation19] sm:$0xff]
        %v1863 = vld [vmem:[#allocation19 + $0x8] sm:$0xff]
        %v1864 = vld [vmem:[#allocation19 + $0x10] sm:$0xff]
        %v1865 = vld [vmem:[#allocation20] sm:$0xff]
        %v1866 = vld [vmem:[#allocation20 + $0x8] sm:$0xff]
        %v1867 = vld [vmem:[#allocation20 + $0x10] sm:$0xff]
        %v1869 = vsel %vm1667, %v1852, 0
        %v1872 = vsel %vm1667, %v1853, 0
        %v1875 = vsel %vm1667, %v1854, 0
        %1877 = vmatprep.subr.mxu0 0.0
        %1878 = vmatpush1.msra.mxu0 %v1855
        %1879 = vmatprep.subr.mxu0 0.0
        %1880 = vmatpush1.msra.mxu0 %v1856
        %1881 = vmatprep.subr.mxu0 0.0
        %1882 = vmatpush1.msra.mxu0 %v1857
        %1883 = vmatprep.subr.mxu0 0.0
        %1884 = vmatpush1.msra.mxu0 %v1858
        %1885 = vmatprep.subr.mxu0 0.0
        %1886 = vmatpush1.msra.mxu0 0.0
        %1887 = vmatprep.subr.mxu0 0.0
        %1888 = vmatpush1.msra.mxu0 0.0
        %1889 = vmatprep.subr.mxu0 0.0
        %1890 = vmatpush1.msra.mxu0 0.0
        %1891 = vmatprep.subr.mxu0 0.0
        %1892 = vmatpush1.msra.mxu0 0.0
        %1893 = vmatprep.subr.mxu0 0.0
        %1894 = vmatpush1.msra.mxu0 0.0
        %1895 = vmatprep.subr.mxu0 0.0
        %1896 = vmatpush1.msra.mxu0 0.0
        %1897 = vmatprep.subr.mxu0 0.0
        %1898 = vmatpush1.msra.mxu0 0.0
        %1899 = vmatprep.subr.mxu0 0.0
        %1900 = vmatpush1.msra.mxu0 0.0
        %1901 = vmatprep.subr.mxu0 0.0
        %1902 = vmatpush1.msra.mxu0 0.0
        %1903 = vmatprep.subr.mxu0 0.0
        %1904 = vmatpush1.msra.mxu0 0.0
        %1905 = vmatprep.subr.mxu0 0.0
        %1906 = vmatpush1.msra.mxu0 0.0
        %1907 = vmatprep.subr.mxu0 0.0
        %1908 = vmatpush1.msra.mxu0 0.0
        %1909 = vmatprep.subr.mxu0 0.0
        %1910 = vmatpush1.msra.mxu0 0.0
        %1911 = vmatprep.subr.mxu0 0.0
        %1912 = vmatpush1.msra.mxu0 0.0
        %1913 = vmatprep.subr.mxu0 0.0
        %1914 = vmatpush1.msra.mxu0 0.0
        %1915 = vmatprep.subr.mxu0 0.0
        %1916 = vmatpush1.msra.mxu0 0.0
        %1917 = vmatprep.subr.mxu0 0.0
        %1918 = vmatpush1.msra.mxu0 0.0
        %1919 = vmatprep.subr.mxu0 0.0
        %1920 = vmatpush1.msra.mxu0 0.0
        %1921 = vmatprep.subr.mxu0 0.0
        %1922 = vmatpush1.msra.mxu0 0.0
        %1923 = vmatprep.subr.mxu0 0.0
        %1924 = vmatpush1.msra.mxu0 0.0
        %1925 = vmatprep.subr.mxu0 0.0
        %1926 = vmatpush1.msra.mxu0 0.0
        %1927 = vmatprep.subr.mxu0 0.0
        %1928 = vmatpush1.msra.mxu0 0.0
        %1929 = vmatprep.subr.mxu0 0.0
        %1930 = vmatpush1.msra.mxu0 0.0
        %1931 = vmatprep.subr.mxu0 0.0
        %1932 = vmatpush1.msra.mxu0 0.0
        %1933 = vmatprep.subr.mxu0 0.0
        %1934 = vmatpush1.msra.mxu0 0.0
        %1935 = vmatprep.subr.mxu0 0.0
        %1936 = vmatpush1.msra.mxu0 0.0
        %1937 = vmatprep.subr.mxu0 0.0
        %1938 = vmatpush1.msra.mxu0 0.0
        %1939 = vmatprep.subr.mxu0 0.0
        %1940 = vmatpush1.msra.mxu0 0.0
        %1941 = vmatprep.mubr.f32.mxu0 0.0
        %1942 = vmatmul.mubr.f32.gmra.mrb[0].mxu0 %v1869
        %v1943 = vpop.f32.mrb[0].mxu0
        %v1944 = vadd.f32 0.0, %v1943
        %v1945 = vpop.f32.mrb[0].mxu0
        %1946 = vmatprep.mubr.f32.mxu0 0.0
        %1947 = vmatmul.mubr.f32.gmra.mrb[0].mxu0 %v1872
        %v1948 = vpop.f32.mrb[0].mxu0
        %v1949 = vadd.f32 0.0, %v1948
        %v1950 = vpop.f32.mrb[0].mxu0
        %1951 = vmatprep.mubr.f32.mxu0 0.0
        %1952 = vmatmul.mubr.f32.gmra.mrb[0].mxu0 %v1875
        %v1953 = vpop.f32.mrb[0].mxu0
        %v1954 = vadd.f32 0.0, %v1953
        %v1955 = vpop.f32.mrb[0].mxu0
        %1956 = vdwg.mxu0
        %v1958 = vsel %vm1461, %v1859, 0
        %v1961 = vsel %vm1461, %v1860, 0
        %v1964 = vsel %vm1461, %v1861, 0
        %1966 = vmatprep.subr.mxu0 0.0
        %1967 = vmatpush1.msra.mxu0 %v1944
        %1968 = vmatprep.subr.mxu0 0.0
        %1969 = vmatpush1.msra.mxu0 %v1949
        %1970 = vmatprep.subr.mxu0 0.0
        %1971 = vmatpush1.msra.mxu0 %v1954
        %1972 = vmatprep.subr.mxu0 0.0
        %1973 = vmatpush1.msra.mxu0 0.0
        %1974 = vmatprep.subr.mxu0 0.0
        %1975 = vmatpush1.msra.mxu0 0.0
        %1976 = vmatprep.subr.mxu0 0.0
        %1977 = vmatpush1.msra.mxu0 0.0
        %1978 = vmatprep.subr.mxu0 0.0
        %1979 = vmatpush1.msra.mxu0 0.0
        %1980 = vmatprep.subr.mxu0 0.0
        %1981 = vmatpush1.msra.mxu0 0.0
        %1982 = vmatprep.subr.mxu0 0.0
        %1983 = vmatpush1.msra.mxu0 0.0
        %1984 = vmatprep.subr.mxu0 0.0
        %1985 = vmatpush1.msra.mxu0 0.0
        %1986 = vmatprep.subr.mxu0 0.0
        %1987 = vmatpush1.msra.mxu0 0.0
        %1988 = vmatprep.subr.mxu0 0.0
        %1989 = vmatpush1.msra.mxu0 0.0
        %1990 = vmatprep.subr.mxu0 0.0
        %1991 = vmatpush1.msra.mxu0 0.0
        %1992 = vmatprep.subr.mxu0 0.0
        %1993 = vmatpush1.msra.mxu0 0.0
        %1994 = vmatprep.subr.mxu0 0.0
        %1995 = vmatpush1.msra.mxu0 0.0
        %1996 = vmatprep.subr.mxu0 0.0
        %1997 = vmatpush1.msra.mxu0 0.0
        %1998 = vmatprep.subr.mxu0 0.0
        %1999 = vmatpush1.msra.mxu0 0.0
        %2000 = vmatprep.subr.mxu0 0.0
        %2001 = vmatpush1.msra.mxu0 0.0
        %2002 = vmatprep.subr.mxu0 0.0
        %2003 = vmatpush1.msra.mxu0 0.0
        %2004 = vmatprep.subr.mxu0 0.0
        %2005 = vmatpush1.msra.mxu0 0.0
        %2006 = vmatprep.subr.mxu0 0.0
        %2007 = vmatpush1.msra.mxu0 0.0
        %2008 = vmatprep.subr.mxu0 0.0
        %2009 = vmatpush1.msra.mxu0 0.0
        %2010 = vmatprep.subr.mxu0 0.0
        %2011 = vmatpush1.msra.mxu0 0.0
        %2012 = vmatprep.subr.mxu0 0.0
        %2013 = vmatpush1.msra.mxu0 0.0
        %2014 = vmatprep.subr.mxu0 0.0
        %2015 = vmatpush1.msra.mxu0 0.0
        %2016 = vmatprep.subr.mxu0 0.0
        %2017 = vmatpush1.msra.mxu0 0.0
        %2018 = vmatprep.subr.mxu0 0.0
        %2019 = vmatpush1.msra.mxu0 0.0
        %2020 = vmatprep.subr.mxu0 0.0
        %2021 = vmatpush1.msra.mxu0 0.0
        %2022 = vmatprep.subr.mxu0 0.0
        %2023 = vmatpush1.msra.mxu0 0.0
        %2024 = vmatprep.subr.mxu0 0.0
        %2025 = vmatpush1.msra.mxu0 0.0
        %2026 = vmatprep.subr.mxu0 0.0
        %2027 = vmatpush1.msra.mxu0 0.0
        %2028 = vmatprep.subr.mxu0 0.0
        %2029 = vmatpush1.msra.mxu0 0.0
        %2030 = vmatprep.mubr.f32.mxu0 0.0
        %2031 = vmatmul.mubr.f32.gmra.mrb[0].mxu0 %v1958
        %v2032 = vpop.f32.mrb[0].mxu0
        %v2033 = vadd.f32 0.0, %v2032
        %v2034 = vpop.f32.mrb[0].mxu0
        %2035 = vmatprep.mubr.f32.mxu0 0.0
        %2036 = vmatmul.mubr.f32.gmra.mrb[0].mxu0 %v1961
        %v2037 = vpop.f32.mrb[0].mxu0
        %v2038 = vadd.f32 0.0, %v2037
        %v2039 = vpop.f32.mrb[0].mxu0
        %2040 = vmatprep.mubr.f32.mxu0 0.0
        %2041 = vmatmul.mubr.f32.gmra.mrb[0].mxu0 %v1964
        %v2042 = vpop.f32.mrb[0].mxu0
        %v2043 = vadd.f32 0.0, %v2042
        %v2044 = vpop.f32.mrb[0].mxu0
        %2045 = vdwg.mxu0
        %v2046 = vmul.f32 %v2033, %v1862
        %v2047 = vmul.f32 %v2038, %v1863
        %v2048 = vmul.f32 %v2043, %v1864
        %v2049 = vadd.f32 %v2046, %v1865
        %v2050 = vadd.f32 %v2047, %v1866
        %v2051 = vadd.f32 %v2048, %v1867
        %v2052 = vtanh.pop %v2049
        %v2053 = vtanh.pop %v2050
        %v2054 = vtanh.pop %v2051
        %v2055 = vadd.f32 %v2052, %v1651
        %v2056 = vadd.f32 %v2053, %v1652
        %v2057 = vadd.f32 %v2054, %v1653
        %v2058 = vld [vmem:[%s29] sm:$0xff]
        %v2059 = vld [vmem:[%s29 + $0x8] sm:$0xff]
        %v2060 = vld [vmem:[%s29 + $0x10] sm:$0xff]
        %v2061 = vld [vmem:[%s29 + $0x18] sm:$0xff]
        %v2062 = vld [vmem:[%s31] sm:$0x1]
        %v2063 = vld [vmem:[%s33] sm:$0xff]
        %v2064 = vld [vmem:[%s33 + $0x8] sm:$0xff]
        %v2065 = vld [vmem:[%s33 + $0x10] sm:$0xff]
        %v2066 = vld [vmem:[%s33 + $0x18] sm:$0xff]
        %v2067 = vld [vmem:[#allocation22] sm:$0x1]
        %v2069 = vlaneseq
        %v2070 = vshrl.u32 %v2069, 7
        %v2071 = vsub.s32 0, %v2070
        %v2072 = vrot.slane %v2062, %v2071
        %v2075 = vsel %vm1667, %v2055, 0
        %v2078 = vsel %vm1667, %v2056, 0
        %v2081 = vsel %vm1667, %v2057, 0
        %2083 = vmatprep.subr.mxu0 0.0
        %2084 = vmatpush1.msra.mxu0 %v2058
        %2085 = vmatprep.subr.mxu0 0.0
        %2086 = vmatpush1.msra.mxu0 %v2059
        %2087 = vmatprep.subr.mxu0 0.0
        %2088 = vmatpush1.msra.mxu0 %v2060
        %2089 = vmatprep.subr.mxu0 0.0
        %2090 = vmatpush1.msra.mxu0 %v2061
        %2091 = vmatprep.subr.mxu0 0.0
        %2092 = vmatpush1.msra.mxu0 0.0
        %2093 = vmatprep.subr.mxu0 0.0
        %2094 = vmatpush1.msra.mxu0 0.0
        %2095 = vmatprep.subr.mxu0 0.0
        %2096 = vmatpush1.msra.mxu0 0.0
        %2097 = vmatprep.subr.mxu0 0.0
        %2098 = vmatpush1.msra.mxu0 0.0
        %2099 = vmatprep.subr.mxu0 0.0
        %2100 = vmatpush1.msra.mxu0 0.0
        %2101 = vmatprep.subr.mxu0 0.0
        %2102 = vmatpush1.msra.mxu0 0.0
        %2103 = vmatprep.subr.mxu0 0.0
        %2104 = vmatpush1.msra.mxu0 0.0
        %2105 = vmatprep.subr.mxu0 0.0
        %2106 = vmatpush1.msra.mxu0 0.0
        %2107 = vmatprep.subr.mxu0 0.0
        %2108 = vmatpush1.msra.mxu0 0.0
        %2109 = vmatprep.subr.mxu0 0.0
        %2110 = vmatpush1.msra.mxu0 0.0
        %2111 = vmatprep.subr.mxu0 0.0
        %2112 = vmatpush1.msra.mxu0 0.0
        %2113 = vmatprep.subr.mxu0 0.0
        %2114 = vmatpush1.msra.mxu0 0.0
        %2115 = vmatprep.subr.mxu0 0.0
        %2116 = vmatpush1.msra.mxu0 0.0
        %2117 = vmatprep.subr.mxu0 0.0
        %2118 = vmatpush1.msra.mxu0 0.0
        %2119 = vmatprep.subr.mxu0 0.0
        %2120 = vmatpush1.msra.mxu0 0.0
        %2121 = vmatprep.subr.mxu0 0.0
        %2122 = vmatpush1.msra.mxu0 0.0
        %2123 = vmatprep.subr.mxu0 0.0
        %2124 = vmatpush1.msra.mxu0 0.0
        %2125 = vmatprep.subr.mxu0 0.0
        %2126 = vmatpush1.msra.mxu0 0.0
        %2127 = vmatprep.subr.mxu0 0.0
        %2128 = vmatpush1.msra.mxu0 0.0
        %2129 = vmatprep.subr.mxu0 0.0
        %2130 = vmatpush1.msra.mxu0 0.0
        %2131 = vmatprep.subr.mxu0 0.0
        %2132 = vmatpush1.msra.mxu0 0.0
        %2133 = vmatprep.subr.mxu0 0.0
        %2134 = vmatpush1.msra.mxu0 0.0
        %2135 = vmatprep.subr.mxu0 0.0
        %2136 = vmatpush1.msra.mxu0 0.0
        %2137 = vmatprep.subr.mxu0 0.0
        %2138 = vmatpush1.msra.mxu0 0.0
        %2139 = vmatprep.subr.mxu0 0.0
        %2140 = vmatpush1.msra.mxu0 0.0
        %2141 = vmatprep.subr.mxu0 0.0
        %2142 = vmatpush1.msra.mxu0 0.0
        %2143 = vmatprep.subr.mxu0 0.0
        %2144 = vmatpush1.msra.mxu0 0.0
        %2145 = vmatprep.subr.mxu0 0.0
        %2146 = vmatpush1.msra.mxu0 0.0
        %2147 = vmatprep.mubr.f32.mxu0 0.0
        %2148 = vmatmul.mubr.f32.gmra.mrb[0].mxu0 %v2075
        %v2149 = vpop.f32.mrb[0].mxu0
        %v2150 = vadd.f32 %v2072, %v2149
        %v2151 = vpop.f32.mrb[0].mxu0
        %2152 = vmatprep.mubr.f32.mxu0 0.0
        %2153 = vmatmul.mubr.f32.gmra.mrb[0].mxu0 %v2078
        %v2154 = vpop.f32.mrb[0].mxu0
        %v2155 = vadd.f32 %v2072, %v2154
        %v2156 = vpop.f32.mrb[0].mxu0
        %2157 = vmatprep.mubr.f32.mxu0 0.0
        %2158 = vmatmul.mubr.f32.gmra.mrb[0].mxu0 %v2081
        %v2159 = vpop.f32.mrb[0].mxu0
        %v2160 = vadd.f32 %v2072, %v2159
        %v2161 = vpop.f32.mrb[0].mxu0
        %2162 = vdwg.mxu0
        %v2163 = vmax.f32 %v2150, 0.0
        %v2164 = vmax.f32 %v2155, 0.0
        %v2165 = vmax.f32 %v2160, 0.0
        %v2167 = vlaneseq
        %v2168 = vshrl.u32 %v2167, 7
        %v2169 = vsub.s32 0, %v2168
        %v2170 = vrot.slane %v2067, %v2169
        %v2173 = vsel %vm1667, %v2163, 0
        %v2176 = vsel %vm1667, %v2164, 0
        %v2179 = vsel %vm1667, %v2165, 0
        %2181 = vmatprep.subr.mxu0 0.0
        %2182 = vmatpush1.msra.mxu0 %v2063
        %2183 = vmatprep.subr.mxu0 0.0
        %2184 = vmatpush1.msra.mxu0 %v2064
        %2185 = vmatprep.subr.mxu0 0.0
        %2186 = vmatpush1.msra.mxu0 %v2065
        %2187 = vmatprep.subr.mxu0 0.0
        %2188 = vmatpush1.msra.mxu0 %v2066
        %2189 = vmatprep.subr.mxu0 0.0
        %2190 = vmatpush1.msra.mxu0 0.0
        %2191 = vmatprep.subr.mxu0 0.0
        %2192 = vmatpush1.msra.mxu0 0.0
        %2193 = vmatprep.subr.mxu0 0.0
        %2194 = vmatpush1.msra.mxu0 0.0
        %2195 = vmatprep.subr.mxu0 0.0
        %2196 = vmatpush1.msra.mxu0 0.0
        %2197 = vmatprep.subr.mxu0 0.0
        %2198 = vmatpush1.msra.mxu0 0.0
        %2199 = vmatprep.subr.mxu0 0.0
        %2200 = vmatpush1.msra.mxu0 0.0
        %2201 = vmatprep.subr.mxu0 0.0
        %2202 = vmatpush1.msra.mxu0 0.0
        %2203 = vmatprep.subr.mxu0 0.0
        %2204 = vmatpush1.msra.mxu0 0.0
        %2205 = vmatprep.subr.mxu0 0.0
        %2206 = vmatpush1.msra.mxu0 0.0
        %2207 = vmatprep.subr.mxu0 0.0
        %2208 = vmatpush1.msra.mxu0 0.0
        %2209 = vmatprep.subr.mxu0 0.0
        %2210 = vmatpush1.msra.mxu0 0.0
        %2211 = vmatprep.subr.mxu0 0.0
        %2212 = vmatpush1.msra.mxu0 0.0
        %2213 = vmatprep.subr.mxu0 0.0
        %2214 = vmatpush1.msra.mxu0 0.0
        %2215 = vmatprep.subr.mxu0 0.0
        %2216 = vmatpush1.msra.mxu0 0.0
        %2217 = vmatprep.subr.mxu0 0.0
        %2218 = vmatpush1.msra.mxu0 0.0
        %2219 = vmatprep.subr.mxu0 0.0
        %2220 = vmatpush1.msra.mxu0 0.0
        %2221 = vmatprep.subr.mxu0 0.0
        %2222 = vmatpush1.msra.mxu0 0.0
        %2223 = vmatprep.subr.mxu0 0.0
        %2224 = vmatpush1.msra.mxu0 0.0
        %2225 = vmatprep.subr.mxu0 0.0
        %2226 = vmatpush1.msra.mxu0 0.0
        %2227 = vmatprep.subr.mxu0 0.0
        %2228 = vmatpush1.msra.mxu0 0.0
        %2229 = vmatprep.subr.mxu0 0.0
        %2230 = vmatpush1.msra.mxu0 0.0
        %2231 = vmatprep.subr.mxu0 0.0
        %2232 = vmatpush1.msra.mxu0 0.0
        %2233 = vmatprep.subr.mxu0 0.0
        %2234 = vmatpush1.msra.mxu0 0.0
        %2235 = vmatprep.subr.mxu0 0.0
        %2236 = vmatpush1.msra.mxu0 0.0
        %2237 = vmatprep.subr.mxu0 0.0
        %2238 = vmatpush1.msra.mxu0 0.0
        %2239 = vmatprep.subr.mxu0 0.0
        %2240 = vmatpush1.msra.mxu0 0.0
        %2241 = vmatprep.subr.mxu0 0.0
        %2242 = vmatpush1.msra.mxu0 0.0
        %2243 = vmatprep.subr.mxu0 0.0
        %2244 = vmatpush1.msra.mxu0 0.0
        %2245 = vmatprep.mubr.f32.mxu0 0.0
        %2246 = vmatmul.mubr.f32.gmra.mrb[0].mxu0 %v2173
        %v2247 = vpop.f32.mrb[0].mxu0
        %v2248 = vadd.f32 %v2170, %v2247
        %v2249 = vpop.f32.mrb[0].mxu0
        %2250 = vmatprep.mubr.f32.mxu0 0.0
        %2251 = vmatmul.mubr.f32.gmra.mrb[0].mxu0 %v2176
        %v2252 = vpop.f32.mrb[0].mxu0
        %v2253 = vadd.f32 %v2170, %v2252
        %v2254 = vpop.f32.mrb[0].mxu0
        %2255 = vmatprep.mubr.f32.mxu0 0.0
        %2256 = vmatmul.mubr.f32.gmra.mrb[0].mxu0 %v2179
        %v2257 = vpop.f32.mrb[0].mxu0
        %v2258 = vadd.f32 %v2170, %v2257
        %v2259 = vpop.f32.mrb[0].mxu0
        %2260 = vdwg.mxu0
        %2261 = vst.msk [vmem:[%s1429] sm:$0xff] %vm1551, %v2248
        %2262 = vst.msk [vmem:[%s1429 + $0x8] sm:$0xff] %vm1551, %v2253
        %2263 = vst.msk [vmem:[%s1429 + $0x10] sm:$0xff] %vm1551, %v2258
        %v2264 = vld [vmem:[%s1446] sm:$0xff]
        %v2265 = vld [vmem:[%s1446 + $0x8] sm:$0xff]
        %v2266 = vld [vmem:[%s1446 + $0x10] sm:$0xff]
        %v2267 = vld [vmem:[%s1446 + $0x18] sm:$0xff]
        %v2268 = vld [vmem:[#allocation23] sm:$0xff]
        %v2269 = vld [vmem:[#allocation23 + $0x8] sm:$0x3]
        %v2270 = vld [vmem:[#allocation25] sm:$0xff]
        %v2271 = vld [vmem:[#allocation25 + $0x8] sm:$0xff]
        %v2272 = vld [vmem:[#allocation25 + $0x10] sm:$0xff]
        %v2273 = vld [vmem:[#allocation25 + $0x18] sm:$0xff]
        %v2274 = vld [vmem:[#allocation26] sm:$0xff]
        %v2275 = vld [vmem:[#allocation26 + $0x8] sm:$0xff]
        %v2276 = vld [vmem:[#allocation26 + $0x10] sm:$0xff]
        %v2277 = vld [vmem:[#allocation26 + $0x18] sm:$0xff]
        %v2278 = vld [vmem:[#allocation28] sm:$0xff]
        %v2279 = vld [vmem:[#allocation28 + $0x8] sm:$0xff]
        %v2280 = vld [vmem:[#allocation28 + $0x10] sm:$0xff]
        %v2281 = vld [vmem:[#allocation28 + $0x18] sm:$0xff]
        %v2283 = vsel %vm1667, %v2270, 0
        %v2286 = vsel %vm1667, %v2271, 0
        %v2289 = vsel %vm1667, %v2272, 0
        %v2292 = vsel %vm1667, %v2273, 0
        %2294 = vmatprep.subr.mxu0 0.0
        %2295 = vmatpush1.msra.mxu0 %v2264
        %2296 = vmatprep.subr.mxu0 0.0
        %2297 = vmatpush1.msra.mxu0 %v2265
        %2298 = vmatprep.subr.mxu0 0.0
        %2299 = vmatpush1.msra.mxu0 %v2266
        %2300 = vmatprep.subr.mxu0 0.0
        %2301 = vmatpush1.msra.mxu0 %v2267
        %2302 = vmatprep.subr.mxu0 0.0
        %2303 = vmatpush1.msra.mxu0 0.0
        %2304 = vmatprep.subr.mxu0 0.0
        %2305 = vmatpush1.msra.mxu0 0.0
        %2306 = vmatprep.subr.mxu0 0.0
        %2307 = vmatpush1.msra.mxu0 0.0
        %2308 = vmatprep.subr.mxu0 0.0
        %2309 = vmatpush1.msra.mxu0 0.0
        %2310 = vmatprep.subr.mxu0 0.0
        %2311 = vmatpush1.msra.mxu0 0.0
        %2312 = vmatprep.subr.mxu0 0.0
        %2313 = vmatpush1.msra.mxu0 0.0
        %2314 = vmatprep.subr.mxu0 0.0
        %2315 = vmatpush1.msra.mxu0 0.0
        %2316 = vmatprep.subr.mxu0 0.0
        %2317 = vmatpush1.msra.mxu0 0.0
        %2318 = vmatprep.subr.mxu0 0.0
        %2319 = vmatpush1.msra.mxu0 0.0
        %2320 = vmatprep.subr.mxu0 0.0
        %2321 = vmatpush1.msra.mxu0 0.0
        %2322 = vmatprep.subr.mxu0 0.0
        %2323 = vmatpush1.msra.mxu0 0.0
        %2324 = vmatprep.subr.mxu0 0.0
        %2325 = vmatpush1.msra.mxu0 0.0
        %2326 = vmatprep.subr.mxu0 0.0
        %2327 = vmatpush1.msra.mxu0 0.0
        %2328 = vmatprep.subr.mxu0 0.0
        %2329 = vmatpush1.msra.mxu0 0.0
        %2330 = vmatprep.subr.mxu0 0.0
        %2331 = vmatpush1.msra.mxu0 0.0
        %2332 = vmatprep.subr.mxu0 0.0
        %2333 = vmatpush1.msra.mxu0 0.0
        %2334 = vmatprep.subr.mxu0 0.0
        %2335 = vmatpush1.msra.mxu0 0.0
        %2336 = vmatprep.subr.mxu0 0.0
        %2337 = vmatpush1.msra.mxu0 0.0
        %2338 = vmatprep.subr.mxu0 0.0
        %2339 = vmatpush1.msra.mxu0 0.0
        %2340 = vmatprep.subr.mxu0 0.0
        %2341 = vmatpush1.msra.mxu0 0.0
        %2342 = vmatprep.subr.mxu0 0.0
        %2343 = vmatpush1.msra.mxu0 0.0
        %2344 = vmatprep.subr.mxu0 0.0
        %2345 = vmatpush1.msra.mxu0 0.0
        %2346 = vmatprep.subr.mxu0 0.0
        %2347 = vmatpush1.msra.mxu0 0.0
        %2348 = vmatprep.subr.mxu0 0.0
        %2349 = vmatpush1.msra.mxu0 0.0
        %2350 = vmatprep.subr.mxu0 0.0
        %2351 = vmatpush1.msra.mxu0 0.0
        %2352 = vmatprep.subr.mxu0 0.0
        %2353 = vmatpush1.msra.mxu0 0.0
        %2354 = vmatprep.subr.mxu0 0.0
        %2355 = vmatpush1.msra.mxu0 0.0
        %2356 = vmatprep.subr.mxu0 0.0
        %2357 = vmatpush1.msra.mxu0 0.0
        %2358 = vmatprep.mubr.f32.mxu0 0.0
        %2359 = vmatmul.mubr.f32.gmra.mrb[0].mxu0 %v2283
        %v2360 = vpop.f32.mrb[0].mxu0
        %v2361 = vadd.f32 0.0, %v2360
        %v2362 = vpop.f32.mrb[0].mxu0
        %2363 = vmatprep.mubr.f32.mxu0 0.0
        %2364 = vmatmul.mubr.f32.gmra.mrb[0].mxu0 %v2286
        %v2365 = vpop.f32.mrb[0].mxu0
        %v2366 = vadd.f32 0.0, %v2365
        %v2367 = vpop.f32.mrb[0].mxu0
        %2368 = vmatprep.mubr.f32.mxu0 0.0
        %2369 = vmatmul.mubr.f32.gmra.mrb[0].mxu0 %v2289
        %v2370 = vpop.f32.mrb[0].mxu0
        %v2371 = vadd.f32 0.0, %v2370
        %v2372 = vpop.f32.mrb[0].mxu0
        %2373 = vmatprep.mubr.f32.mxu0 0.0
        %2374 = vmatmul.mubr.f32.gmra.mrb[0].mxu0 %v2292
        %v2375 = vpop.f32.mrb[0].mxu0
        %v2376 = vadd.f32 0.0, %v2375
        %v2377 = vpop.f32.mrb[0].mxu0
        %2378 = vdwg.mxu0
        %v2380 = vsel %vm1551, %v2361, 0
        %v2383 = vsel %vm1551, %v2366, 0
        %v2386 = vsel %vm1551, %v2371, 0
        %v2389 = vsel %vm1551, %v2376, 0
        %v2392 = vsel %vm1561, %v2269, 0
        %2394 = vmatprep.subr.mxu0 0.0
        %2395 = vmatpush1.msra.mxu0 %v2268
        %2396 = vmatprep.subr.mxu0 0.0
        %2397 = vmatpush1.msra.mxu0 %v2392
        %2398 = vmatprep.subr.mxu0 0.0
        %2399 = vmatpush1.msra.mxu0 0.0
        %2400 = vmatprep.subr.mxu0 0.0
        %2401 = vmatpush1.msra.mxu0 0.0
        %2402 = vmatprep.subr.mxu0 0.0
        %2403 = vmatpush1.msra.mxu0 0.0
        %2404 = vmatprep.subr.mxu0 0.0
        %2405 = vmatpush1.msra.mxu0 0.0
        %2406 = vmatprep.subr.mxu0 0.0
        %2407 = vmatpush1.msra.mxu0 0.0
        %2408 = vmatprep.subr.mxu0 0.0
        %2409 = vmatpush1.msra.mxu0 0.0
        %2410 = vmatprep.subr.mxu0 0.0
        %2411 = vmatpush1.msra.mxu0 0.0
        %2412 = vmatprep.subr.mxu0 0.0
        %2413 = vmatpush1.msra.mxu0 0.0
        %2414 = vmatprep.subr.mxu0 0.0
        %2415 = vmatpush1.msra.mxu0 0.0
        %2416 = vmatprep.subr.mxu0 0.0
        %2417 = vmatpush1.msra.mxu0 0.0
        %2418 = vmatprep.subr.mxu0 0.0
        %2419 = vmatpush1.msra.mxu0 0.0
        %2420 = vmatprep.subr.mxu0 0.0
        %2421 = vmatpush1.msra.mxu0 0.0
        %2422 = vmatprep.subr.mxu0 0.0
        %2423 = vmatpush1.msra.mxu0 0.0
        %2424 = vmatprep.subr.mxu0 0.0
        %2425 = vmatpush1.msra.mxu0 0.0
        %2426 = vmatprep.subr.mxu0 0.0
        %2427 = vmatpush1.msra.mxu0 0.0
        %2428 = vmatprep.subr.mxu0 0.0
        %2429 = vmatpush1.msra.mxu0 0.0
        %2430 = vmatprep.subr.mxu0 0.0
        %2431 = vmatpush1.msra.mxu0 0.0
        %2432 = vmatprep.subr.mxu0 0.0
        %2433 = vmatpush1.msra.mxu0 0.0
        %2434 = vmatprep.subr.mxu0 0.0
        %2435 = vmatpush1.msra.mxu0 0.0
        %2436 = vmatprep.subr.mxu0 0.0
        %2437 = vmatpush1.msra.mxu0 0.0
        %2438 = vmatprep.subr.mxu0 0.0
        %2439 = vmatpush1.msra.mxu0 0.0
        %2440 = vmatprep.subr.mxu0 0.0
        %2441 = vmatpush1.msra.mxu0 0.0
        %2442 = vmatprep.subr.mxu0 0.0
        %2443 = vmatpush1.msra.mxu0 0.0
        %2444 = vmatprep.subr.mxu0 0.0
        %2445 = vmatpush1.msra.mxu0 0.0
        %2446 = vmatprep.subr.mxu0 0.0
        %2447 = vmatpush1.msra.mxu0 0.0
        %2448 = vmatprep.subr.mxu0 0.0
        %2449 = vmatpush1.msra.mxu0 0.0
        %2450 = vmatprep.subr.mxu0 0.0
        %2451 = vmatpush1.msra.mxu0 0.0
        %2452 = vmatprep.subr.mxu0 0.0
        %2453 = vmatpush1.msra.mxu0 0.0
        %2454 = vmatprep.subr.mxu0 0.0
        %2455 = vmatpush1.msra.mxu0 0.0
        %2456 = vmatprep.subr.mxu0 0.0
        %2457 = vmatpush1.msra.mxu0 0.0
        %2458 = vmatprep.mubr.f32.mxu0 0.0
        %2459 = vmatmul.mubr.f32.gmra.mrb[0].mxu0 %v2380
        %v2460 = vpop.f32.mrb[0].mxu0
        %v2461 = vadd.f32 0.0, %v2460
        %v2462 = vpop.f32.mrb[0].mxu0
        %2463 = vmatprep.mubr.f32.mxu0 0.0
        %2464 = vmatmul.mubr.f32.gmra.mrb[0].mxu0 %v2383
        %v2465 = vpop.f32.mrb[0].mxu0
        %v2466 = vadd.f32 0.0, %v2465
        %v2467 = vpop.f32.mrb[0].mxu0
        %2468 = vmatprep.mubr.f32.mxu0 0.0
        %2469 = vmatmul.mubr.f32.gmra.mrb[0].mxu0 %v2386
        %v2470 = vpop.f32.mrb[0].mxu0
        %v2471 = vadd.f32 0.0, %v2470
        %v2472 = vpop.f32.mrb[0].mxu0
        %2473 = vmatprep.mubr.f32.mxu0 0.0
        %2474 = vmatmul.mubr.f32.gmra.mrb[0].mxu0 %v2389
        %v2475 = vpop.f32.mrb[0].mxu0
        %v2476 = vadd.f32 0.0, %v2475
        %v2477 = vpop.f32.mrb[0].mxu0
        %2478 = vdwg.mxu0
        %v2479 = vmul.f32 %v2461, %v2274
        %v2480 = vmul.f32 %v2466, %v2275
        %v2481 = vmul.f32 %v2471, %v2276
        %v2482 = vmul.f32 %v2476, %v2277
        %v2483 = vadd.f32 %v2479, %v2278
        %v2484 = vadd.f32 %v2480, %v2279
        %v2485 = vadd.f32 %v2481, %v2280
        %v2486 = vadd.f32 %v2482, %v2281
        %v2487 = vtanh.pop %v2483
        %v2488 = vtanh.pop %v2484
        %v2489 = vtanh.pop %v2485
        %v2490 = vtanh.pop %v2486
        %v2491 = vld [vmem:[%s45] sm:$0xff]
        %v2492 = vld [vmem:[%s45 + $0x8] sm:$0xff]
        %v2493 = vld [vmem:[%s45 + $0x10] sm:$0xff]
        %v2494 = vld [vmem:[%s45 + $0x18] sm:$0xff]
        %v2495 = vld [vmem:[#allocation29] sm:$0xff]
        %v2496 = vld [vmem:[#allocation29 + $0x8] sm:$0xff]
        %v2497 = vld [vmem:[#allocation29 + $0x10] sm:$0xff]
        %v2498 = vld [vmem:[#allocation29 + $0x18] sm:$0xff]
        %v2499 = vld [vmem:[#allocation31] sm:$0xff]
        %v2500 = vld [vmem:[#allocation31 + $0x8] sm:$0xff]
        %v2501 = vld [vmem:[#allocation31 + $0x10] sm:$0xff]
        %v2502 = vld [vmem:[#allocation31 + $0x18] sm:$0xff]
        %v2503 = vld [vmem:[#allocation32] sm:$0xff]
        %v2504 = vld [vmem:[#allocation32 + $0x8] sm:$0xff]
        %v2505 = vld [vmem:[#allocation32 + $0x10] sm:$0xff]
        %v2506 = vld [vmem:[#allocation32 + $0x18] sm:$0xff]
        %v2508 = vsel %vm1667, %v2487, 0
        %v2511 = vsel %vm1667, %v2488, 0
        %v2514 = vsel %vm1667, %v2489, 0
        %v2517 = vsel %vm1667, %v2490, 0
        %2519 = vmatprep.subr.mxu0 0.0
        %2520 = vmatpush1.msra.mxu0 %v2491
        %2521 = vmatprep.subr.mxu0 0.0
        %2522 = vmatpush1.msra.mxu0 %v2492
        %2523 = vmatprep.subr.mxu0 0.0
        %2524 = vmatpush1.msra.mxu0 %v2493
        %2525 = vmatprep.subr.mxu0 0.0
        %2526 = vmatpush1.msra.mxu0 %v2494
        %2527 = vmatprep.subr.mxu0 0.0
        %2528 = vmatpush1.msra.mxu0 0.0
        %2529 = vmatprep.subr.mxu0 0.0
        %2530 = vmatpush1.msra.mxu0 0.0
        %2531 = vmatprep.subr.mxu0 0.0
        %2532 = vmatpush1.msra.mxu0 0.0
        %2533 = vmatprep.subr.mxu0 0.0
        %2534 = vmatpush1.msra.mxu0 0.0
        %2535 = vmatprep.subr.mxu0 0.0
        %2536 = vmatpush1.msra.mxu0 0.0
        %2537 = vmatprep.subr.mxu0 0.0
        %2538 = vmatpush1.msra.mxu0 0.0
        %2539 = vmatprep.subr.mxu0 0.0
        %2540 = vmatpush1.msra.mxu0 0.0
        %2541 = vmatprep.subr.mxu0 0.0
        %2542 = vmatpush1.msra.mxu0 0.0
        %2543 = vmatprep.subr.mxu0 0.0
        %2544 = vmatpush1.msra.mxu0 0.0
        %2545 = vmatprep.subr.mxu0 0.0
        %2546 = vmatpush1.msra.mxu0 0.0
        %2547 = vmatprep.subr.mxu0 0.0
        %2548 = vmatpush1.msra.mxu0 0.0
        %2549 = vmatprep.subr.mxu0 0.0
        %2550 = vmatpush1.msra.mxu0 0.0
        %2551 = vmatprep.subr.mxu0 0.0
        %2552 = vmatpush1.msra.mxu0 0.0
        %2553 = vmatprep.subr.mxu0 0.0
        %2554 = vmatpush1.msra.mxu0 0.0
        %2555 = vmatprep.subr.mxu0 0.0
        %2556 = vmatpush1.msra.mxu0 0.0
        %2557 = vmatprep.subr.mxu0 0.0
        %2558 = vmatpush1.msra.mxu0 0.0
        %2559 = vmatprep.subr.mxu0 0.0
        %2560 = vmatpush1.msra.mxu0 0.0
        %2561 = vmatprep.subr.mxu0 0.0
        %2562 = vmatpush1.msra.mxu0 0.0
        %2563 = vmatprep.subr.mxu0 0.0
        %2564 = vmatpush1.msra.mxu0 0.0
        %2565 = vmatprep.subr.mxu0 0.0
        %2566 = vmatpush1.msra.mxu0 0.0
        %2567 = vmatprep.subr.mxu0 0.0
        %2568 = vmatpush1.msra.mxu0 0.0
        %2569 = vmatprep.subr.mxu0 0.0
        %2570 = vmatpush1.msra.mxu0 0.0
        %2571 = vmatprep.subr.mxu0 0.0
        %2572 = vmatpush1.msra.mxu0 0.0
        %2573 = vmatprep.subr.mxu0 0.0
        %2574 = vmatpush1.msra.mxu0 0.0
        %2575 = vmatprep.subr.mxu0 0.0
        %2576 = vmatpush1.msra.mxu0 0.0
        %2577 = vmatprep.subr.mxu0 0.0
        %2578 = vmatpush1.msra.mxu0 0.0
        %2579 = vmatprep.subr.mxu0 0.0
        %2580 = vmatpush1.msra.mxu0 0.0
        %2581 = vmatprep.subr.mxu0 0.0
        %2582 = vmatpush1.msra.mxu0 0.0
        %2583 = vmatprep.mubr.f32.mxu0 0.0
        %2584 = vmatmul.mubr.f32.gmra.mrb[0].mxu0 %v2508
        %v2585 = vpop.f32.mrb[0].mxu0
        %v2586 = vadd.f32 0.0, %v2585
        %v2587 = vpop.f32.mrb[0].mxu0
        %2588 = vmatprep.mubr.f32.mxu0 0.0
        %2589 = vmatmul.mubr.f32.gmra.mrb[0].mxu0 %v2511
        %v2590 = vpop.f32.mrb[0].mxu0
        %v2591 = vadd.f32 0.0, %v2590
        %v2592 = vpop.f32.mrb[0].mxu0
        %2593 = vmatprep.mubr.f32.mxu0 0.0
        %2594 = vmatmul.mubr.f32.gmra.mrb[0].mxu0 %v2514
        %v2595 = vpop.f32.mrb[0].mxu0
        %v2596 = vadd.f32 0.0, %v2595
        %v2597 = vpop.f32.mrb[0].mxu0
        %2598 = vmatprep.mubr.f32.mxu0 0.0
        %2599 = vmatmul.mubr.f32.gmra.mrb[0].mxu0 %v2517
        %v2600 = vpop.f32.mrb[0].mxu0
        %v2601 = vadd.f32 0.0, %v2600
        %v2602 = vpop.f32.mrb[0].mxu0
        %2603 = vdwg.mxu0
        %v2605 = vsel %vm1667, %v2495, 0
        %v2608 = vsel %vm1667, %v2496, 0
        %v2611 = vsel %vm1667, %v2497, 0
        %v2614 = vsel %vm1667, %v2498, 0
        %2616 = vmatprep.subr.mxu0 0.0
        %2617 = vmatpush1.msra.mxu0 %v2586
        %2618 = vmatprep.subr.mxu0 0.0
        %2619 = vmatpush1.msra.mxu0 %v2591
        %2620 = vmatprep.subr.mxu0 0.0
        %2621 = vmatpush1.msra.mxu0 %v2596
        %2622 = vmatprep.subr.mxu0 0.0
        %2623 = vmatpush1.msra.mxu0 %v2601
        %2624 = vmatprep.subr.mxu0 0.0
        %2625 = vmatpush1.msra.mxu0 0.0
        %2626 = vmatprep.subr.mxu0 0.0
        %2627 = vmatpush1.msra.mxu0 0.0
        %2628 = vmatprep.subr.mxu0 0.0
        %2629 = vmatpush1.msra.mxu0 0.0
        %2630 = vmatprep.subr.mxu0 0.0
        %2631 = vmatpush1.msra.mxu0 0.0
        %2632 = vmatprep.subr.mxu0 0.0
        %2633 = vmatpush1.msra.mxu0 0.0
        %2634 = vmatprep.subr.mxu0 0.0
        %2635 = vmatpush1.msra.mxu0 0.0
        %2636 = vmatprep.subr.mxu0 0.0
        %2637 = vmatpush1.msra.mxu0 0.0
        %2638 = vmatprep.subr.mxu0 0.0
        %2639 = vmatpush1.msra.mxu0 0.0
        %2640 = vmatprep.subr.mxu0 0.0
        %2641 = vmatpush1.msra.mxu0 0.0
        %2642 = vmatprep.subr.mxu0 0.0
        %2643 = vmatpush1.msra.mxu0 0.0
        %2644 = vmatprep.subr.mxu0 0.0
        %2645 = vmatpush1.msra.mxu0 0.0
        %2646 = vmatprep.subr.mxu0 0.0
        %2647 = vmatpush1.msra.mxu0 0.0
        %2648 = vmatprep.subr.mxu0 0.0
        %2649 = vmatpush1.msra.mxu0 0.0
        %2650 = vmatprep.subr.mxu0 0.0
        %2651 = vmatpush1.msra.mxu0 0.0
        %2652 = vmatprep.subr.mxu0 0.0
        %2653 = vmatpush1.msra.mxu0 0.0
        %2654 = vmatprep.subr.mxu0 0.0
        %2655 = vmatpush1.msra.mxu0 0.0
        %2656 = vmatprep.subr.mxu0 0.0
        %2657 = vmatpush1.msra.mxu0 0.0
        %2658 = vmatprep.subr.mxu0 0.0
        %2659 = vmatpush1.msra.mxu0 0.0
        %2660 = vmatprep.subr.mxu0 0.0
        %2661 = vmatpush1.msra.mxu0 0.0
        %2662 = vmatprep.subr.mxu0 0.0
        %2663 = vmatpush1.msra.mxu0 0.0
        %2664 = vmatprep.subr.mxu0 0.0
        %2665 = vmatpush1.msra.mxu0 0.0
        %2666 = vmatprep.subr.mxu0 0.0
        %2667 = vmatpush1.msra.mxu0 0.0
        %2668 = vmatprep.subr.mxu0 0.0
        %2669 = vmatpush1.msra.mxu0 0.0
        %2670 = vmatprep.subr.mxu0 0.0
        %2671 = vmatpush1.msra.mxu0 0.0
        %2672 = vmatprep.subr.mxu0 0.0
        %2673 = vmatpush1.msra.mxu0 0.0
        %2674 = vmatprep.subr.mxu0 0.0
        %2675 = vmatpush1.msra.mxu0 0.0
        %2676 = vmatprep.subr.mxu0 0.0
        %2677 = vmatpush1.msra.mxu0 0.0
        %2678 = vmatprep.subr.mxu0 0.0
        %2679 = vmatpush1.msra.mxu0 0.0
        %2680 = vmatprep.mubr.f32.mxu0 0.0
        %2681 = vmatmul.mubr.f32.gmra.mrb[0].mxu0 %v2605
        %v2682 = vpop.f32.mrb[0].mxu0
        %v2683 = vadd.f32 0.0, %v2682
        %v2684 = vpop.f32.mrb[0].mxu0
        %2685 = vmatprep.mubr.f32.mxu0 0.0
        %2686 = vmatmul.mubr.f32.gmra.mrb[0].mxu0 %v2608
        %v2687 = vpop.f32.mrb[0].mxu0
        %v2688 = vadd.f32 0.0, %v2687
        %v2689 = vpop.f32.mrb[0].mxu0
        %2690 = vmatprep.mubr.f32.mxu0 0.0
        %2691 = vmatmul.mubr.f32.gmra.mrb[0].mxu0 %v2611
        %v2692 = vpop.f32.mrb[0].mxu0
        %v2693 = vadd.f32 0.0, %v2692
        %v2694 = vpop.f32.mrb[0].mxu0
        %2695 = vmatprep.mubr.f32.mxu0 0.0
        %2696 = vmatmul.mubr.f32.gmra.mrb[0].mxu0 %v2614
        %v2697 = vpop.f32.mrb[0].mxu0
        %v2698 = vadd.f32 0.0, %v2697
        %v2699 = vpop.f32.mrb[0].mxu0
        %2700 = vdwg.mxu0
        %v2701 = vmul.f32 %v2683, %v2499
        %v2702 = vmul.f32 %v2688, %v2500
        %v2703 = vmul.f32 %v2693, %v2501
        %v2704 = vmul.f32 %v2698, %v2502
        %v2705 = vadd.f32 %v2701, %v2503
        %v2706 = vadd.f32 %v2702, %v2504
        %v2707 = vadd.f32 %v2703, %v2505
        %v2708 = vadd.f32 %v2704, %v2506
        %v2709 = vtanh.pop %v2705
        %v2710 = vtanh.pop %v2706
        %v2711 = vtanh.pop %v2707
        %v2712 = vtanh.pop %v2708
        %v2713 = vld [vmem:[#allocation34] sm:$0xff]
        %v2714 = vld [vmem:[#allocation34 + $0x8] sm:$0xff]
        %v2715 = vld [vmem:[#allocation34 + $0x10] sm:$0xff]
        %v2716 = vld [vmem:[#allocation34 + $0x18] sm:$0xff]
        %v2717 = vld [vmem:[#allocation35] sm:$0xff]
        %v2718 = vld [vmem:[#allocation35 + $0x8] sm:$0xff]
        %v2719 = vld [vmem:[#allocation35 + $0x10] sm:$0xff]
        %v2720 = vld [vmem:[#allocation35 + $0x18] sm:$0xff]
        %v2721 = vld [vmem:[#allocation37] sm:$0xff]
        %v2722 = vld [vmem:[#allocation37 + $0x8] sm:$0xff]
        %v2723 = vld [vmem:[#allocation37 + $0x10] sm:$0xff]
        %v2724 = vld [vmem:[#allocation37 + $0x18] sm:$0xff]
        %v2725 = vld [vmem:[#allocation38] sm:$0xff]
        %v2726 = vld [vmem:[#allocation38 + $0x8] sm:$0xff]
        %v2727 = vld [vmem:[#allocation38 + $0x10] sm:$0xff]
        %v2728 = vld [vmem:[#allocation38 + $0x18] sm:$0xff]
        %v2730 = vsel %vm1667, %v2709, 0
        %v2733 = vsel %vm1667, %v2710, 0
        %v2736 = vsel %vm1667, %v2711, 0
        %v2739 = vsel %vm1667, %v2712, 0
        %2741 = vmatprep.subr.mxu0 0.0
        %2742 = vmatpush1.msra.mxu0 %v2713
        %2743 = vmatprep.subr.mxu0 0.0
        %2744 = vmatpush1.msra.mxu0 %v2714
        %2745 = vmatprep.subr.mxu0 0.0
        %2746 = vmatpush1.msra.mxu0 %v2715
        %2747 = vmatprep.subr.mxu0 0.0
        %2748 = vmatpush1.msra.mxu0 %v2716
        %2749 = vmatprep.subr.mxu0 0.0
        %2750 = vmatpush1.msra.mxu0 0.0
        %2751 = vmatprep.subr.mxu0 0.0
        %2752 = vmatpush1.msra.mxu0 0.0
        %2753 = vmatprep.subr.mxu0 0.0
        %2754 = vmatpush1.msra.mxu0 0.0
        %2755 = vmatprep.subr.mxu0 0.0
        %2756 = vmatpush1.msra.mxu0 0.0
        %2757 = vmatprep.subr.mxu0 0.0
        %2758 = vmatpush1.msra.mxu0 0.0
        %2759 = vmatprep.subr.mxu0 0.0
        %2760 = vmatpush1.msra.mxu0 0.0
        %2761 = vmatprep.subr.mxu0 0.0
        %2762 = vmatpush1.msra.mxu0 0.0
        %2763 = vmatprep.subr.mxu0 0.0
        %2764 = vmatpush1.msra.mxu0 0.0
        %2765 = vmatprep.subr.mxu0 0.0
        %2766 = vmatpush1.msra.mxu0 0.0
        %2767 = vmatprep.subr.mxu0 0.0
        %2768 = vmatpush1.msra.mxu0 0.0
        %2769 = vmatprep.subr.mxu0 0.0
        %2770 = vmatpush1.msra.mxu0 0.0
        %2771 = vmatprep.subr.mxu0 0.0
        %2772 = vmatpush1.msra.mxu0 0.0
        %2773 = vmatprep.subr.mxu0 0.0
        %2774 = vmatpush1.msra.mxu0 0.0
        %2775 = vmatprep.subr.mxu0 0.0
        %2776 = vmatpush1.msra.mxu0 0.0
        %2777 = vmatprep.subr.mxu0 0.0
        %2778 = vmatpush1.msra.mxu0 0.0
        %2779 = vmatprep.subr.mxu0 0.0
        %2780 = vmatpush1.msra.mxu0 0.0
        %2781 = vmatprep.subr.mxu0 0.0
        %2782 = vmatpush1.msra.mxu0 0.0
        %2783 = vmatprep.subr.mxu0 0.0
        %2784 = vmatpush1.msra.mxu0 0.0
        %2785 = vmatprep.subr.mxu0 0.0
        %2786 = vmatpush1.msra.mxu0 0.0
        %2787 = vmatprep.subr.mxu0 0.0
        %2788 = vmatpush1.msra.mxu0 0.0
        %2789 = vmatprep.subr.mxu0 0.0
        %2790 = vmatpush1.msra.mxu0 0.0
        %2791 = vmatprep.subr.mxu0 0.0
        %2792 = vmatpush1.msra.mxu0 0.0
        %2793 = vmatprep.subr.mxu0 0.0
        %2794 = vmatpush1.msra.mxu0 0.0
        %2795 = vmatprep.subr.mxu0 0.0
        %2796 = vmatpush1.msra.mxu0 0.0
        %2797 = vmatprep.subr.mxu0 0.0
        %2798 = vmatpush1.msra.mxu0 0.0
        %2799 = vmatprep.subr.mxu0 0.0
        %2800 = vmatpush1.msra.mxu0 0.0
        %2801 = vmatprep.subr.mxu0 0.0
        %2802 = vmatpush1.msra.mxu0 0.0
        %2803 = vmatprep.subr.mxu0 0.0
        %2804 = vmatpush1.msra.mxu0 0.0
        %2805 = vmatprep.mubr.f32.mxu0 0.0
        %2806 = vmatmul.mubr.f32.gmra.mrb[0].mxu0 %v2730
        %v2807 = vpop.f32.mrb[0].mxu0
        %v2808 = vadd.f32 0.0, %v2807
        %v2809 = vpop.f32.mrb[0].mxu0
        %2810 = vmatprep.mubr.f32.mxu0 0.0
        %2811 = vmatmul.mubr.f32.gmra.mrb[0].mxu0 %v2733
        %v2812 = vpop.f32.mrb[0].mxu0
        %v2813 = vadd.f32 0.0, %v2812
        %v2814 = vpop.f32.mrb[0].mxu0
        %2815 = vmatprep.mubr.f32.mxu0 0.0
        %2816 = vmatmul.mubr.f32.gmra.mrb[0].mxu0 %v2736
        %v2817 = vpop.f32.mrb[0].mxu0
        %v2818 = vadd.f32 0.0, %v2817
        %v2819 = vpop.f32.mrb[0].mxu0
        %2820 = vmatprep.mubr.f32.mxu0 0.0
        %2821 = vmatmul.mubr.f32.gmra.mrb[0].mxu0 %v2739
        %v2822 = vpop.f32.mrb[0].mxu0
        %v2823 = vadd.f32 0.0, %v2822
        %v2824 = vpop.f32.mrb[0].mxu0
        %2825 = vdwg.mxu0
        %v2827 = vsel %vm1667, %v2717, 0
        %v2830 = vsel %vm1667, %v2718, 0
        %v2833 = vsel %vm1667, %v2719, 0
        %v2836 = vsel %vm1667, %v2720, 0
        %2838 = vmatprep.subr.mxu0 0.0
        %2839 = vmatpush1.msra.mxu0 %v2808
        %2840 = vmatprep.subr.mxu0 0.0
        %2841 = vmatpush1.msra.mxu0 %v2813
        %2842 = vmatprep.subr.mxu0 0.0
        %2843 = vmatpush1.msra.mxu0 %v2818
        %2844 = vmatprep.subr.mxu0 0.0
        %2845 = vmatpush1.msra.mxu0 %v2823
        %2846 = vmatprep.subr.mxu0 0.0
        %2847 = vmatpush1.msra.mxu0 0.0
        %2848 = vmatprep.subr.mxu0 0.0
        %2849 = vmatpush1.msra.mxu0 0.0
        %2850 = vmatprep.subr.mxu0 0.0
        %2851 = vmatpush1.msra.mxu0 0.0
        %2852 = vmatprep.subr.mxu0 0.0
        %2853 = vmatpush1.msra.mxu0 0.0
        %2854 = vmatprep.subr.mxu0 0.0
        %2855 = vmatpush1.msra.mxu0 0.0
        %2856 = vmatprep.subr.mxu0 0.0
        %2857 = vmatpush1.msra.mxu0 0.0
        %2858 = vmatprep.subr.mxu0 0.0
        %2859 = vmatpush1.msra.mxu0 0.0
        %2860 = vmatprep.subr.mxu0 0.0
        %2861 = vmatpush1.msra.mxu0 0.0
        %2862 = vmatprep.subr.mxu0 0.0
        %2863 = vmatpush1.msra.mxu0 0.0
        %2864 = vmatprep.subr.mxu0 0.0
        %2865 = vmatpush1.msra.mxu0 0.0
        %2866 = vmatprep.subr.mxu0 0.0
        %2867 = vmatpush1.msra.mxu0 0.0
        %2868 = vmatprep.subr.mxu0 0.0
        %2869 = vmatpush1.msra.mxu0 0.0
        %2870 = vmatprep.subr.mxu0 0.0
        %2871 = vmatpush1.msra.mxu0 0.0
        %2872 = vmatprep.subr.mxu0 0.0
        %2873 = vmatpush1.msra.mxu0 0.0
        %2874 = vmatprep.subr.mxu0 0.0
        %2875 = vmatpush1.msra.mxu0 0.0
        %2876 = vmatprep.subr.mxu0 0.0
        %2877 = vmatpush1.msra.mxu0 0.0
        %2878 = vmatprep.subr.mxu0 0.0
        %2879 = vmatpush1.msra.mxu0 0.0
        %2880 = vmatprep.subr.mxu0 0.0
        %2881 = vmatpush1.msra.mxu0 0.0
        %2882 = vmatprep.subr.mxu0 0.0
        %2883 = vmatpush1.msra.mxu0 0.0
        %2884 = vmatprep.subr.mxu0 0.0
        %2885 = vmatpush1.msra.mxu0 0.0
        %2886 = vmatprep.subr.mxu0 0.0
        %2887 = vmatpush1.msra.mxu0 0.0
        %2888 = vmatprep.subr.mxu0 0.0
        %2889 = vmatpush1.msra.mxu0 0.0
        %2890 = vmatprep.subr.mxu0 0.0
        %2891 = vmatpush1.msra.mxu0 0.0
        %2892 = vmatprep.subr.mxu0 0.0
        %2893 = vmatpush1.msra.mxu0 0.0
        %2894 = vmatprep.subr.mxu0 0.0
        %2895 = vmatpush1.msra.mxu0 0.0
        %2896 = vmatprep.subr.mxu0 0.0
        %2897 = vmatpush1.msra.mxu0 0.0
        %2898 = vmatprep.subr.mxu0 0.0
        %2899 = vmatpush1.msra.mxu0 0.0
        %2900 = vmatprep.subr.mxu0 0.0
        %2901 = vmatpush1.msra.mxu0 0.0
        %2902 = vmatprep.mubr.f32.mxu0 0.0
        %2903 = vmatmul.mubr.f32.gmra.mrb[0].mxu0 %v2827
        %v2904 = vpop.f32.mrb[0].mxu0
        %v2905 = vadd.f32 0.0, %v2904
        %v2906 = vpop.f32.mrb[0].mxu0
        %2907 = vmatprep.mubr.f32.mxu0 0.0
        %2908 = vmatmul.mubr.f32.gmra.mrb[0].mxu0 %v2830
        %v2909 = vpop.f32.mrb[0].mxu0
        %v2910 = vadd.f32 0.0, %v2909
        %v2911 = vpop.f32.mrb[0].mxu0
        %2912 = vmatprep.mubr.f32.mxu0 0.0
        %2913 = vmatmul.mubr.f32.gmra.mrb[0].mxu0 %v2833
        %v2914 = vpop.f32.mrb[0].mxu0
        %v2915 = vadd.f32 0.0, %v2914
        %v2916 = vpop.f32.mrb[0].mxu0
        %2917 = vmatprep.mubr.f32.mxu0 0.0
        %2918 = vmatmul.mubr.f32.gmra.mrb[0].mxu0 %v2836
        %v2919 = vpop.f32.mrb[0].mxu0
        %v2920 = vadd.f32 0.0, %v2919
        %v2921 = vpop.f32.mrb[0].mxu0
        %2922 = vdwg.mxu0
        %v2923 = vmul.f32 %v2905, %v2721
        %v2924 = vmul.f32 %v2910, %v2722
        %v2925 = vmul.f32 %v2915, %v2723
        %v2926 = vmul.f32 %v2920, %v2724
        %v2927 = vadd.f32 %v2923, %v2725
        %v2928 = vadd.f32 %v2924, %v2726
        %v2929 = vadd.f32 %v2925, %v2727
        %v2930 = vadd.f32 %v2926, %v2728
        %v2931 = vtanh.pop %v2927
        %v2932 = vtanh.pop %v2928
        %v2933 = vtanh.pop %v2929
        %v2934 = vtanh.pop %v2930
        %v2935 = vadd.f32 %v2931, %v2487
        %v2936 = vadd.f32 %v2932, %v2488
        %v2937 = vadd.f32 %v2933, %v2489
        %v2938 = vadd.f32 %v2934, %v2490
        %v2939 = vld [vmem:[%s61] sm:$0xff]
        %v2940 = vld [vmem:[%s61 + $0x8] sm:$0xff]
        %v2941 = vld [vmem:[%s61 + $0x10] sm:$0xff]
        %v2942 = vld [vmem:[%s61 + $0x18] sm:$0xff]
        %v2943 = vld [vmem:[%s63] sm:$0x1]
        %v2944 = vld [vmem:[%s65] sm:$0xff]
        %v2945 = vld [vmem:[%s65 + $0x8] sm:$0xff]
        %v2946 = vld [vmem:[%s65 + $0x10] sm:$0xff]
        %v2947 = vld [vmem:[%s65 + $0x18] sm:$0xff]
        %v2948 = vld [vmem:[%s67] sm:$0x1]
        %v2950 = vlaneseq
        %v2951 = vshrl.u32 %v2950, 7
        %v2952 = vsub.s32 0, %v2951
        %v2953 = vrot.slane %v2943, %v2952
        %v2956 = vsel %vm1667, %v2935, 0
        %v2959 = vsel %vm1667, %v2936, 0
        %v2962 = vsel %vm1667, %v2937, 0
        %v2965 = vsel %vm1667, %v2938, 0
        %2967 = vmatprep.subr.mxu0 0.0
        %2968 = vmatpush1.msra.mxu0 %v2939
        %2969 = vmatprep.subr.mxu0 0.0
        %2970 = vmatpush1.msra.mxu0 %v2940
        %2971 = vmatprep.subr.mxu0 0.0
        %2972 = vmatpush1.msra.mxu0 %v2941
        %2973 = vmatprep.subr.mxu0 0.0
        %2974 = vmatpush1.msra.mxu0 %v2942
        %2975 = vmatprep.subr.mxu0 0.0
        %2976 = vmatpush1.msra.mxu0 0.0
        %2977 = vmatprep.subr.mxu0 0.0
        %2978 = vmatpush1.msra.mxu0 0.0
        %2979 = vmatprep.subr.mxu0 0.0
        %2980 = vmatpush1.msra.mxu0 0.0
        %2981 = vmatprep.subr.mxu0 0.0
        %2982 = vmatpush1.msra.mxu0 0.0
        %2983 = vmatprep.subr.mxu0 0.0
        %2984 = vmatpush1.msra.mxu0 0.0
        %2985 = vmatprep.subr.mxu0 0.0
        %2986 = vmatpush1.msra.mxu0 0.0
        %2987 = vmatprep.subr.mxu0 0.0
        %2988 = vmatpush1.msra.mxu0 0.0
        %2989 = vmatprep.subr.mxu0 0.0
        %2990 = vmatpush1.msra.mxu0 0.0
        %2991 = vmatprep.subr.mxu0 0.0
        %2992 = vmatpush1.msra.mxu0 0.0
        %2993 = vmatprep.subr.mxu0 0.0
        %2994 = vmatpush1.msra.mxu0 0.0
        %2995 = vmatprep.subr.mxu0 0.0
        %2996 = vmatpush1.msra.mxu0 0.0
        %2997 = vmatprep.subr.mxu0 0.0
        %2998 = vmatpush1.msra.mxu0 0.0
        %2999 = vmatprep.subr.mxu0 0.0
        %3000 = vmatpush1.msra.mxu0 0.0
        %3001 = vmatprep.subr.mxu0 0.0
        %3002 = vmatpush1.msra.mxu0 0.0
        %3003 = vmatprep.subr.mxu0 0.0
        %3004 = vmatpush1.msra.mxu0 0.0
        %3005 = vmatprep.subr.mxu0 0.0
        %3006 = vmatpush1.msra.mxu0 0.0
        %3007 = vmatprep.subr.mxu0 0.0
        %3008 = vmatpush1.msra.mxu0 0.0
        %3009 = vmatprep.subr.mxu0 0.0
        %3010 = vmatpush1.msra.mxu0 0.0
        %3011 = vmatprep.subr.mxu0 0.0
        %3012 = vmatpush1.msra.mxu0 0.0
        %3013 = vmatprep.subr.mxu0 0.0
        %3014 = vmatpush1.msra.mxu0 0.0
        %3015 = vmatprep.subr.mxu0 0.0
        %3016 = vmatpush1.msra.mxu0 0.0
        %3017 = vmatprep.subr.mxu0 0.0
        %3018 = vmatpush1.msra.mxu0 0.0
        %3019 = vmatprep.subr.mxu0 0.0
        %3020 = vmatpush1.msra.mxu0 0.0
        %3021 = vmatprep.subr.mxu0 0.0
        %3022 = vmatpush1.msra.mxu0 0.0
        %3023 = vmatprep.subr.mxu0 0.0
        %3024 = vmatpush1.msra.mxu0 0.0
        %3025 = vmatprep.subr.mxu0 0.0
        %3026 = vmatpush1.msra.mxu0 0.0
        %3027 = vmatprep.subr.mxu0 0.0
        %3028 = vmatpush1.msra.mxu0 0.0
        %3029 = vmatprep.subr.mxu0 0.0
        %3030 = vmatpush1.msra.mxu0 0.0
        %3031 = vmatprep.mubr.f32.mxu0 0.0
        %3032 = vmatmul.mubr.f32.gmra.mrb[0].mxu0 %v2956
        %v3033 = vpop.f32.mrb[0].mxu0
        %v3034 = vadd.f32 %v2953, %v3033
        %v3035 = vpop.f32.mrb[0].mxu0
        %3036 = vmatprep.mubr.f32.mxu0 0.0
        %3037 = vmatmul.mubr.f32.gmra.mrb[0].mxu0 %v2959
        %v3038 = vpop.f32.mrb[0].mxu0
        %v3039 = vadd.f32 %v2953, %v3038
        %v3040 = vpop.f32.mrb[0].mxu0
        %3041 = vmatprep.mubr.f32.mxu0 0.0
        %3042 = vmatmul.mubr.f32.gmra.mrb[0].mxu0 %v2962
        %v3043 = vpop.f32.mrb[0].mxu0
        %v3044 = vadd.f32 %v2953, %v3043
        %v3045 = vpop.f32.mrb[0].mxu0
        %3046 = vmatprep.mubr.f32.mxu0 0.0
        %3047 = vmatmul.mubr.f32.gmra.mrb[0].mxu0 %v2965
        %v3048 = vpop.f32.mrb[0].mxu0
        %v3049 = vadd.f32 %v2953, %v3048
        %v3050 = vpop.f32.mrb[0].mxu0
        %3051 = vdwg.mxu0
        %v3052 = vmax.f32 %v3034, 0.0
        %v3053 = vmax.f32 %v3039, 0.0
        %v3054 = vmax.f32 %v3044, 0.0
        %v3055 = vmax.f32 %v3049, 0.0
        %v3057 = vlaneseq
        %v3058 = vshrl.u32 %v3057, 7
        %v3059 = vsub.s32 0, %v3058
        %v3060 = vrot.slane %v2948, %v3059
        %v3063 = vsel %vm1667, %v3052, 0
        %v3066 = vsel %vm1667, %v3053, 0
        %v3069 = vsel %vm1667, %v3054, 0
        %v3072 = vsel %vm1667, %v3055, 0
        %3074 = vmatprep.subr.mxu0 0.0
        %3075 = vmatpush1.msra.mxu0 %v2944
        %3076 = vmatprep.subr.mxu0 0.0
        %3077 = vmatpush1.msra.mxu0 %v2945
        %3078 = vmatprep.subr.mxu0 0.0
        %3079 = vmatpush1.msra.mxu0 %v2946
        %3080 = vmatprep.subr.mxu0 0.0
        %3081 = vmatpush1.msra.mxu0 %v2947
        %3082 = vmatprep.subr.mxu0 0.0
        %3083 = vmatpush1.msra.mxu0 0.0
        %3084 = vmatprep.subr.mxu0 0.0
        %3085 = vmatpush1.msra.mxu0 0.0
        %3086 = vmatprep.subr.mxu0 0.0
        %3087 = vmatpush1.msra.mxu0 0.0
        %3088 = vmatprep.subr.mxu0 0.0
        %3089 = vmatpush1.msra.mxu0 0.0
        %3090 = vmatprep.subr.mxu0 0.0
        %3091 = vmatpush1.msra.mxu0 0.0
        %3092 = vmatprep.subr.mxu0 0.0
        %3093 = vmatpush1.msra.mxu0 0.0
        %3094 = vmatprep.subr.mxu0 0.0
        %3095 = vmatpush1.msra.mxu0 0.0
        %3096 = vmatprep.subr.mxu0 0.0
        %3097 = vmatpush1.msra.mxu0 0.0
        %3098 = vmatprep.subr.mxu0 0.0
        %3099 = vmatpush1.msra.mxu0 0.0
        %3100 = vmatprep.subr.mxu0 0.0
        %3101 = vmatpush1.msra.mxu0 0.0
        %3102 = vmatprep.subr.mxu0 0.0
        %3103 = vmatpush1.msra.mxu0 0.0
        %3104 = vmatprep.subr.mxu0 0.0
        %3105 = vmatpush1.msra.mxu0 0.0
        %3106 = vmatprep.subr.mxu0 0.0
        %3107 = vmatpush1.msra.mxu0 0.0
        %3108 = vmatprep.subr.mxu0 0.0
        %3109 = vmatpush1.msra.mxu0 0.0
        %3110 = vmatprep.subr.mxu0 0.0
        %3111 = vmatpush1.msra.mxu0 0.0
        %3112 = vmatprep.subr.mxu0 0.0
        %3113 = vmatpush1.msra.mxu0 0.0
        %3114 = vmatprep.subr.mxu0 0.0
        %3115 = vmatpush1.msra.mxu0 0.0
        %3116 = vmatprep.subr.mxu0 0.0
        %3117 = vmatpush1.msra.mxu0 0.0
        %3118 = vmatprep.subr.mxu0 0.0
        %3119 = vmatpush1.msra.mxu0 0.0
        %3120 = vmatprep.subr.mxu0 0.0
        %3121 = vmatpush1.msra.mxu0 0.0
        %3122 = vmatprep.subr.mxu0 0.0
        %3123 = vmatpush1.msra.mxu0 0.0
        %3124 = vmatprep.subr.mxu0 0.0
        %3125 = vmatpush1.msra.mxu0 0.0
        %3126 = vmatprep.subr.mxu0 0.0
        %3127 = vmatpush1.msra.mxu0 0.0
        %3128 = vmatprep.subr.mxu0 0.0
        %3129 = vmatpush1.msra.mxu0 0.0
        %3130 = vmatprep.subr.mxu0 0.0
        %3131 = vmatpush1.msra.mxu0 0.0
        %3132 = vmatprep.subr.mxu0 0.0
        %3133 = vmatpush1.msra.mxu0 0.0
        %3134 = vmatprep.subr.mxu0 0.0
        %3135 = vmatpush1.msra.mxu0 0.0
        %3136 = vmatprep.subr.mxu0 0.0
        %3137 = vmatpush1.msra.mxu0 0.0
        %3138 = vmatprep.mubr.f32.mxu0 0.0
        %3139 = vmatmul.mubr.f32.gmra.mrb[0].mxu0 %v3063
        %v3140 = vpop.f32.mrb[0].mxu0
        %v3141 = vadd.f32 %v3060, %v3140
        %v3142 = vpop.f32.mrb[0].mxu0
        %3143 = vmatprep.mubr.f32.mxu0 0.0
        %3144 = vmatmul.mubr.f32.gmra.mrb[0].mxu0 %v3066
        %v3145 = vpop.f32.mrb[0].mxu0
        %v3146 = vadd.f32 %v3060, %v3145
        %v3147 = vpop.f32.mrb[0].mxu0
        %3148 = vmatprep.mubr.f32.mxu0 0.0
        %3149 = vmatmul.mubr.f32.gmra.mrb[0].mxu0 %v3069
        %v3150 = vpop.f32.mrb[0].mxu0
        %v3151 = vadd.f32 %v3060, %v3150
        %v3152 = vpop.f32.mrb[0].mxu0
        %3153 = vmatprep.mubr.f32.mxu0 0.0
        %3154 = vmatmul.mubr.f32.gmra.mrb[0].mxu0 %v3072
        %v3155 = vpop.f32.mrb[0].mxu0
        %v3156 = vadd.f32 %v3060, %v3155
        %v3157 = vpop.f32.mrb[0].mxu0
        %3158 = vdwg.mxu0
        %v3159 = vmul.f32 %v3141, %v3141
        %v3160 = vmul.f32 %v3146, %v3146
        %v3161 = vadd.f32 %v3159, %v3160
        %v3162 = vmul.f32 %v3151, %v3151
        %v3163 = vadd.f32 %v3161, %v3162
        %v3164 = vmul.f32 %v3156, %v3156
        %v3165 = vadd.f32 %v3163, %v3164
        %v3166 = vrsqrt.pop %v3165
        %v3167 = vmul.f32 %v3165, %v3166
        %vm3168 = vcmp.eq.f32.partialorder %v3165, inf
        %v3169 = vsel %vm3168, %v3165, %v3167
        %vm3170 = vcmp.eq.f32.partialorder %v3165, 0.0
        %v3171 = vand.u32 %v3165, 2147483648
        %v3172 = vsel %vm3170, %v3171, %v3169
        %v3173 = vmax.f32 %v3172, 1e-12
        %v3174 = vrcp.pop %v3173
        %v3175 = vmul.f32 1.0, %v3174
        %v3176 = vmul.f32 %v3141, %v3175
        %v3177 = vmul.f32 %v3146, %v3175
        %v3178 = vmul.f32 %v3151, %v3175
        %v3179 = vmul.f32 %v3156, %v3175
        %3180 = vst.msk [vmem:[%s1436] sm:$0xff] %vm1551, %v3176
        %3181 = vst.msk [vmem:[%s1436 + $0x8] sm:$0xff] %vm1551, %v3177
        %3182 = vst.msk [vmem:[%s1436 + $0x10] sm:$0xff] %vm1551, %v3178
        %3183 = vst.msk [vmem:[%s1436 + $0x18] sm:$0xff] %vm1551, %v3179
        %s3184 = sand.u32 %s834, 1
        %s3185 = scalar_lea.sflag [#allocation4], %s3184
        %s3186 = sand.u32 %s834, 1
        %s3187 = smul.addr %s3186, 24
        %s3188 = scalar_lea.vmem [#allocation40], %s3187
        %s3189 = sand.u32 %s860, 1
        %s3190 = scalar_lea.sflag [#allocation42], %s3189
        %s3191 = sand.u32 %s860, 1
        %s3192 = smul.addr %s3191, 32
        %s3193 = scalar_lea.vmem [#allocation41], %s3192
        // Predicated region
        $region253: #{gcn_xyzr_forward.1} parent=155 // pred_check
          %p3194 = pneg %p844
        $region254: #{gcn_xyzr_forward.1} parent=155 // pred_check_branch
          %3196 = sbr.rel (%p3194) target = $region256
        $region255: #{gcn_xyzr_forward.1} parent=155 // pred_region
          %s3198 = ssub.s32 384, 384
          %3199 = vsyncadd %s3185, %s3198
          %s3200 = smul.addr %s102, 3
          %s3201 = smul.addr %s3200, 128
          %s3202 = scalar_lea.hbm %s69, %s3201
          %s3203 = sshll.u32 %s3188, 4
          %s3204 = int_to_ptr.vmem [resolvable:$true] %s3203
          %3209 = dma.vmem_to_hbm [thread:$0]  %s3204, 384, %s3202, %s3185, 128, 128, 8
        $region256: #{gcn_xyzr_forward.1} parent=155 // pred_fallthru
          _
        // Predicated region
        $region257: #{gcn_xyzr_forward.1} parent=155 // pred_check
          %p3210 = pneg %p870
        $region258: #{gcn_xyzr_forward.1} parent=155 // pred_check_branch
          %3212 = sbr.rel (%p3210) target = $region260
        $region259: #{gcn_xyzr_forward.1} parent=155 // pred_region
          %s3214 = ssub.s32 512, 512
          %3215 = vsyncadd %s3190, %s3214
          %s3216 = smul.addr %s102, 4
          %s3217 = smul.addr %s3216, 128
          %s3218 = scalar_lea.hbm %s71, %s3217
          %s3219 = sshll.u32 %s3193, 4
          %s3220 = int_to_ptr.vmem [resolvable:$true] %s3219
          %3225 = dma.vmem_to_hbm [thread:$0]  %s3220, 512, %s3218, %s3190, 128, 128, 8
        $region260: #{gcn_xyzr_forward.1} parent=155 // pred_fallthru
          _
      $region156: #{gcn_xyzr_forward.1} parent=5 // pred_fallthru
        _
      %p3226 = scmp.le.s32.totalorder 2, %s97
      // Predicated region
      $region261: #{gcn_xyzr_forward.1} parent=5 // pred_check
        %p3227 = pneg %p3226
      $region262: #{gcn_xyzr_forward.1} parent=5 // pred_check_branch
        %3229 = sbr.rel (%p3227) target = $region264
      $region263: #{gcn_xyzr_forward.1} parent=5 // pred_region
        %s3230 = ssub.s32 %s97, 2
        // Predicated region
        $region265: #{gcn_xyzr_forward.1} parent=263 // pred_check
          %p3231 = pneg %p850
        $region266: #{gcn_xyzr_forward.1} parent=263 // pred_check_branch
          %3233 = sbr.rel (%p3231) target = $region268
        $region267: #{gcn_xyzr_forward.1} parent=263 // pred_region
          %s3234 = sand.u32 %s835, 1
          %s3235 = scalar_lea.sflag [#allocation4], %s3234
          %s3236 = sand.u32 %s835, 1
          %s3237 = smul.addr %s3236, 24
          %s3238 = scalar_lea.vmem [#allocation40], %s3237
          %3239 = dma.done %s3235, 384
        $region268: #{gcn_xyzr_forward.1} parent=263 // pred_fallthru
          _
        // Predicated region
        $region269: #{gcn_xyzr_forward.1} parent=263 // pred_check
          %p3240 = pneg %p876
        $region270: #{gcn_xyzr_forward.1} parent=263 // pred_check_branch
          %3242 = sbr.rel (%p3240) target = $region272
        $region271: #{gcn_xyzr_forward.1} parent=263 // pred_region
          %s3243 = sand.u32 %s861, 1
          %s3244 = scalar_lea.sflag [#allocation42], %s3243
          %s3245 = sand.u32 %s861, 1
          %s3246 = smul.addr %s3245, 32
          %s3247 = scalar_lea.vmem [#allocation41], %s3246
          %3248 = dma.done %s3244, 512
        $region272: #{gcn_xyzr_forward.1} parent=263 // pred_fallthru
          _
      $region264: #{gcn_xyzr_forward.1} parent=5 // pred_fallthru
        _
    $region6: #{gcn_xyzr_forward.1} parent=1 // loop_footer
      %s101 = sadd.s32 1, %s97
    $region7: #{gcn_xyzr_forward.1} parent=1 // loop_footer_branch
      %96 = sbr.rel target = $region3
    $region8: #{gcn_xyzr_forward.1} parent=1 // loop_exit
      _
    %3249 = vsyncpa [#allocation3], 1
    %s3250 = scalar_lea.sflag [#allocation3], 1
    %3251 = vsyncpa %s3250, 1
    %3252 = vsyncpa [#allocation6], 1
    %3253 = vsyncpa [#allocation9], 1
    %3254 = vsyncpa [#allocation12], 1
    %3255 = vsyncpa [#allocation15], 1
    %3256 = vsyncpa [#allocation18], 1
    %3257 = vsyncpa [#allocation21], 1
    %3258 = vsyncpa [#allocation24], 1
    %3259 = vsyncpa [#allocation27], 1
    %3260 = vsyncpa [#allocation30], 1
    %3261 = vsyncpa [#allocation33], 1
    %3262 = vsyncpa [#allocation36], 1
    %3263 = vsyncpa [#allocation39], 1
    %3264 = vsyncpa [#allocation4], 1
    %s3265 = scalar_lea.sflag [#allocation4], 1
    %3266 = vsyncpa %s3265, 1
    %3267 = vsyncpa [#allocation42], 1
    %s3268 = scalar_lea.sflag [#allocation42], 1
    %3269 = vsyncpa %s3268, 1

</llo_original>
